<compile_context>
chip_gen: v5e
topology: v5e:2x2
jax: 0.10.0
libtpu: 0.0.40
codegen_flags: <defaults>
</compile_context>

<pallas_src>
import functools

import jax
import jax.numpy as jnp
from jax import lax
from jax.experimental import pallas as pl
from jax.experimental.pallas import tpu as pltpu


def _resnet_block_kernel(x_ref, w1_ref, b1_ref, w2_ref, b2_ref, o_ref,
                         xpt_ref, hpt_ref, acc1_ref, acc2_ref, *, dilation):
    # x_ref  : (1, H, W, C)        full image for this batch element (resident)
    # w1_ref : (3, 3, C, C)        conv1 weights (kh, kw, Cin, Cout), matmul dtype
    # b1_ref : (1, C) f32
    # w2_ref : (3, 3, C, C)        conv2 weights
    # b2_ref : (1, C) f32
    # o_ref  : (1, TH, W, C)       output row tile
    # xpt_ref: (TH+2+2d, W+2d, C)  zero-bordered input rows needed by this tile
    # hpt_ref: (TH+2, W+2, C)      zero-bordered tanh(conv1) intermediate
    # acc1/acc2: f32 VMEM accumulators
    d = dilation
    _, H, W, C = x_ref.shape
    TH = o_ref.shape[1]
    Rh = TH + 2            # rows of the intermediate needed (conv2 halo = 1)
    Rx = Rh + 2 * d        # input rows needed (conv1 halo = d on top of that)

    t = pl.program_id(1)
    r0 = t * TH            # first output image row of this tile

    # ---------------------------------------------------------------------
    # Stage 1: gather input rows [r0-1-d, r0+TH+d] into xpt with zero padding.
    # Only the borders are zero-filled; the interior is overwritten.
    # xpt row j <-> image row (r0 - 1 - d + j); xpt col c <-> image col (c - d).
    # ---------------------------------------------------------------------
    xpt_ref[:, :d, :] = jnp.zeros((Rx, d, C), xpt_ref.dtype)          # left pad
    xpt_ref[:, d + W:, :] = jnp.zeros((Rx, d, C), xpt_ref.dtype)      # right pad

    # Middle rows (image rows r0 .. r0+TH-1) are always inside the image.
    xpt_ref[d + 1:d + 1 + TH, d:d + W, :] = (
        x_ref[0, pl.ds(r0, TH), :, :].astype(xpt_ref.dtype))

    # Top / bottom halo rows may fall outside the image -> masked per-row copy.
    for j in list(range(d + 1)) + list(range(d + 1 + TH, Rx)):
        r = r0 - 1 - d + j
        valid = jnp.logical_and(r >= 0, r < H)
        rc = jnp.clip(r, 0, H - 1)
        row = x_ref[0, pl.ds(rc, 1), :, :]                            # (1, W, C)
        row = jnp.where(valid, row, jnp.zeros_like(row))
        xpt_ref[j:j + 1, d:d + W, :] = row.astype(xpt_ref.dtype)

    # ---------------------------------------------------------------------
    # Stage 2: conv1 (3x3, dilation d) for Rh rows, accumulated in f32 VMEM.
    # Bias broadcast is hoisted into the accumulator init (done once per tile).
    # Each tap is a ref-sliced patch -> matmul on the MXU.
    # ---------------------------------------------------------------------
    acc1_ref[...] = jnp.broadcast_to(b1_ref[...].astype(jnp.float32), (Rh, W, C))
    M1 = Rh * W
    for ky in range(3):
        for kx in range(3):
            patch = xpt_ref[ky * d:ky * d + Rh, kx * d:kx * d + W, :]  # (Rh,W,C)
            acc1_ref[...] += jnp.dot(
                patch.reshape(M1, C), w1_ref[ky, kx],
                preferred_element_type=jnp.float32).reshape(Rh, W, C)
    h = jnp.tanh(acc1_ref[...])                                        # f32

    # ---------------------------------------------------------------------
    # Stage 3: write tanh(conv1) into the 1-padded intermediate scratch.
    # Only the 1-column side borders need zeroing; the vertical halo rows are
    # real conv1 rows except at the image top/bottom where ZeroPad2d(1) applies.
    # ---------------------------------------------------------------------
    hpt_ref[:, :1, :] = jnp.zeros((Rh, 1, C), hpt_ref.dtype)
    hpt_ref[:, 1 + W:, :] = jnp.zeros((Rh, 1, C), hpt_ref.dtype)
    hpt_ref[:, 1:1 + W, :] = h.astype(hpt_ref.dtype)

    @pl.when(r0 == 0)                       # image row r0-1 does not exist
    def _():
        hpt_ref[0:1, 1:1 + W, :] = jnp.zeros((1, W, C), hpt_ref.dtype)

    @pl.when(r0 + TH == H)                  # image row r0+TH does not exist
    def _():
        hpt_ref[Rh - 1:Rh, 1:1 + W, :] = jnp.zeros((1, W, C), hpt_ref.dtype)

    # ---------------------------------------------------------------------
    # Stage 4: conv2 (3x3, dilation 1) over the padded intermediate.
    # ---------------------------------------------------------------------
    acc2_ref[...] = jnp.broadcast_to(b2_ref[...].astype(jnp.float32), (TH, W, C))
    M2 = TH * W
    for ky in range(3):
        for kx in range(3):
            patch = hpt_ref[ky:ky + TH, kx:kx + W, :]                  # (TH,W,C)
            acc2_ref[...] += jnp.dot(
                patch.reshape(M2, C), w2_ref[ky, kx],
                preferred_element_type=jnp.float32).reshape(TH, W, C)

    # ---------------------------------------------------------------------
    # Stage 5: residual (re-read from the input ref) + final tanh.
    # ---------------------------------------------------------------------
    x_tile = x_ref[0, pl.ds(r0, TH), :, :].astype(jnp.float32)
    o_ref[0] = jnp.tanh(x_tile + acc2_ref[...]).astype(o_ref.dtype)


def _pick_tile_h(H, target):
    """Largest divisor of H that is <= target (row-tile height)."""
    for th in range(min(H, target), 0, -1):
        if H % th == 0:
            return th
    return H


def resnet_block_nhwc(x_nhwc, w1, b1, w2, b2, *, dilation=1, tile_h=8,
                      matmul_dtype=jnp.bfloat16):
    """x_nhwc: (N,H,W,C). w1/w2: (3,3,Cin,Cout). b1/b2: (C,)."""
    N, H, W, C = x_nhwc.shape
    d = int(dilation)
    TH = _pick_tile_h(H, tile_h)   # tunable: bigger at scale, halve on v7x (64 MiB VMEM)
    nT = H // TH
    Rh = TH + 2
    Rx = Rh + 2 * d

    w1m = w1.astype(matmul_dtype)
    w2m = w2.astype(matmul_dtype)
    b1r = b1.reshape(1, C).astype(jnp.float32)
    b2r = b2.reshape(1, C).astype(jnp.float32)

    kernel = functools.partial(_resnet_block_kernel, dilation=d)

    return pl.pallas_call(
        kernel,
        out_shape=jax.ShapeDtypeStruct((N, H, W, C), x_nhwc.dtype),
        grid=(N, nT),
        in_specs=[
            # full image per batch element; constant block index across the row
            # axis -> DMA'd once per n and kept resident in VMEM.
            pl.BlockSpec((1, H, W, C), lambda n, t: (n, 0, 0, 0)),
            pl.BlockSpec((3, 3, C, C), lambda n, t: (0, 0, 0, 0)),
            pl.BlockSpec((1, C), lambda n, t: (0, 0)),
            pl.BlockSpec((3, 3, C, C), lambda n, t: (0, 0, 0, 0)),
            pl.BlockSpec((1, C), lambda n, t: (0, 0)),
        ],
        out_specs=pl.BlockSpec((1, TH, W, C), lambda n, t: (n, t, 0, 0)),
        scratch_shapes=[
            pltpu.VMEM((Rx, W + 2 * d, C), matmul_dtype),   # padded input rows
            pltpu.VMEM((Rh, W + 2, C), matmul_dtype),       # padded intermediate
            pltpu.VMEM((Rh, W, C), jnp.float32),            # conv1 accumulator
            pltpu.VMEM((TH, W, C), jnp.float32),            # conv2 accumulator
        ],
        compiler_params=pltpu.CompilerParams(
            dimension_semantics=("parallel", "parallel"),
            vmem_limit_bytes=32 * 1024 * 1024),
    )(x_nhwc, w1m, b1r, w2m, b2r)


def resnet_block_nchw(x_nchw, w1, b1, w2, b2, *, dilation=1, tile_h=8,
                      matmul_dtype=jnp.bfloat16):
    """PyTorch-style entry point. x: (N,C,H,W); weights: (Cout,Cin,3,3)."""
    x_nhwc = jnp.transpose(x_nchw, (0, 2, 3, 1))
    w1k = jnp.transpose(w1, (2, 3, 1, 0))   # (O,I,kh,kw) -> (kh,kw,I,O)
    w2k = jnp.transpose(w2, (2, 3, 1, 0))
    out_nhwc = resnet_block_nhwc(x_nhwc, w1k, b1, w2k, b2, dilation=dilation,
                                 tile_h=tile_h, matmul_dtype=matmul_dtype)
    return jnp.transpose(out_nhwc, (0, 3, 1, 2))


def _reference_nchw(x, w1, b1, w2, b2, dilation=1):
    """Pure-JAX reference matching the PyTorch forward (NCHW, f32)."""
    d = dilation
    dn = lax.conv_dimension_numbers(x.shape, w1.shape, ("NCHW", "OIHW", "NCHW"))
    h = lax.conv_general_dilated(x, w1, (1, 1), [(d, d), (d, d)],
                                 rhs_dilation=(d, d), dimension_numbers=dn)
    h = jnp.tanh(h + b1[None, :, None, None])
    y = lax.conv_general_dilated(h, w2, (1, 1), [(1, 1), (1, 1)],
                                 dimension_numbers=dn)
    y = y + b2[None, :, None, None]
    return jnp.tanh(x + y)


if __name__ == "__main__":
    N, C, H, W = 2, 4, 16, 16

    key = jax.random.PRNGKey(0)
    kx_, kw1, kb1, kw2, kb2 = jax.random.split(key, 5)
    x = jax.random.normal(kx_, (N, C, H, W), jnp.float32)
    # Conv2d(in=C, out=C, kernel=3), bias=True (use_spectral_norm=False)
    fan_in = C * 3 * 3
    bound = 1.0 / (fan_in ** 0.5)
    w1 = jax.random.uniform(kw1, (C, C, 3, 3), jnp.float32, -bound, bound)
    b1 = jax.random.uniform(kb1, (C,), jnp.float32, -bound, bound)
    w2 = jax.random.uniform(kw2, (C, C, 3, 3), jnp.float32, -bound, bound)
    b2 = jax.random.uniform(kb2, (C,), jnp.float32, -bound, bound)

    # dilation=1 (module default): exact f32 path + default bf16 fast path.
    ref1 = _reference_nchw(x, w1, b1, w2, b2, dilation=1)
    out_f32 = jax.block_until_ready(
        resnet_block_nchw(x, w1, b1, w2, b2, dilation=1,
                          matmul_dtype=jnp.float32))
    assert out_f32.shape == (N, C, H, W)
    assert jnp.allclose(out_f32, ref1, atol=1e-5, rtol=1e-5), "f32 mismatch (d=1)"

    out_bf16 = jax.block_until_ready(
        resnet_block_nchw(x, w1, b1, w2, b2, dilation=1))
    assert jnp.allclose(out_bf16, ref1, atol=5e-2), "bf16 mismatch (d=1)"

    # dilation=2: exercise the dilated-halo path (f32 for a tight check).
    ref2 = _reference_nchw(x, w1, b1, w2, b2, dilation=2)
    out_d2 = jax.block_until_ready(
        resnet_block_nchw(x, w1, b1, w2, b2, dilation=2,
                          matmul_dtype=jnp.float32))
    assert jnp.allclose(out_d2, ref2, atol=1e-5, rtol=1e-5), "f32 mismatch (d=2)"

    print("KERNEL_OK")
</pallas_src>

<mosaic_0001>
module attributes {stable_mosaic.version = 11 : i64} {
  func.func @_resnet_block_kernel(%arg0: i32, %arg1: i32, %arg2: memref<1x16x16x4xf32, #tpu.memory_space<vmem>>, %arg3: memref<3x3x4x4xf32, #tpu.memory_space<vmem>>, %arg4: memref<1x4xf32, #tpu.memory_space<vmem>>, %arg5: memref<3x3x4x4xf32, #tpu.memory_space<vmem>>, %arg6: memref<1x4xf32, #tpu.memory_space<vmem>>, %arg7: memref<1x8x16x4xf32, #tpu.memory_space<vmem>>, %arg8: memref<12x18x4xf32, #tpu.memory_space<vmem>>, %arg9: memref<10x18x4xf32, #tpu.memory_space<vmem>>, %arg10: memref<10x16x4xf32, #tpu.memory_space<vmem>>, %arg11: memref<8x16x4xf32, #tpu.memory_space<vmem>>) attributes {dimension_semantics = [#tpu.dimension_semantics<parallel>, #tpu.dimension_semantics<parallel>], iteration_bounds = array<i64: 2, 2>, scalar_prefetch = 0 : i64, scratch_operands = 4 : i64, tpu.core_type = #tpu.core_type<tc>, window_params = [{transform_indices = @transform_0, window_bounds = array<i64: 1, 16, 16, 4>}, {pipeline_mode = #tpu.pipeline_mode<synchronous>, transform_indices = @transform_1, window_bounds = array<i64: 3, 3, 4, 4>}, {pipeline_mode = #tpu.pipeline_mode<synchronous>, transform_indices = @transform_2, window_bounds = array<i64: 1, 4>}, {pipeline_mode = #tpu.pipeline_mode<synchronous>, transform_indices = @transform_3, window_bounds = array<i64: 3, 3, 4, 4>}, {pipeline_mode = #tpu.pipeline_mode<synchronous>, transform_indices = @transform_4, window_bounds = array<i64: 1, 4>}, {transform_indices = @transform_5, window_bounds = array<i64: 1, 8, 16, 4>}]} {
    %c8_i32 = arith.constant 8 : i32
    %0 = arith.muli %arg1, %c8_i32 : i32
    %cst = arith.constant 0.000000e+00 : f32
    %1 = vector.broadcast %cst : f32 to vector<12x1x4xf32>
    %c0 = arith.constant 0 : index
    %c0_0 = arith.constant 0 : index
    %c0_1 = arith.constant 0 : index
    %2 = vector.load %arg8[%c0, %c0_0, %c0_1] : memref<12x18x4xf32, #tpu.memory_space<vmem>>, vector<12x1x4xf32>
    tpu.vector_store %arg8[%c0, %c0_0, %c0_1], %1 {strides = array<i32>} : memref<12x18x4xf32, #tpu.memory_space<vmem>>, vector<12x1x4xf32>,
    %cst_2 = arith.constant 0.000000e+00 : f32
    %3 = vector.broadcast %cst_2 : f32 to vector<12x1x4xf32>
    %c0_3 = arith.constant 0 : index
    %c17 = arith.constant 17 : index
    %c0_4 = arith.constant 0 : index
    %4 = vector.load %arg8[%c0_3, %c17, %c0_4] : memref<12x18x4xf32, #tpu.memory_space<vmem>>, vector<12x1x4xf32>
    tpu.vector_store %arg8[%c0_3, %c17, %c0_4], %3 {strides = array<i32>} : memref<12x18x4xf32, #tpu.memory_space<vmem>>, vector<12x1x4xf32>,
    %c0_5 = arith.constant 0 : index
    %5 = arith.index_cast %0 : i32 to index
    %c0_6 = arith.constant 0 : index
    %c0_7 = arith.constant 0 : index
    %6 = vector.load %arg2[%c0_5, %5, %c0_6, %c0_7] : memref<1x16x16x4xf32, #tpu.memory_space<vmem>>, vector<1x8x16x4xf32>
    %7 = vector.shape_cast %6 : vector<1x8x16x4xf32> to vector<8x16x4xf32>
    %c2 = arith.constant 2 : index
    %c1 = arith.constant 1 : index
    %c0_8 = arith.constant 0 : index
    %8 = vector.load %arg8[%c2, %c1, %c0_8] : memref<12x18x4xf32, #tpu.memory_space<vmem>>, vector<8x16x4xf32>
    tpu.vector_store %arg8[%c2, %c1, %c0_8], %7 {strides = array<i32>} : memref<12x18x4xf32, #tpu.memory_space<vmem>>, vector<8x16x4xf32>,
    %c1_i32 = arith.constant 1 : i32
    %9 = arith.subi %0, %c1_i32 : i32
    %c1_i32_9 = arith.constant 1 : i32
    %10 = arith.subi %9, %c1_i32_9 : i32
    %c0_i32 = arith.constant 0 : i32
    %11 = arith.addi %10, %c0_i32 : i32
    %c0_i32_10 = arith.constant 0 : i32
    %12 = arith.cmpi sge, %11, %c0_i32_10 : i32
    %c16_i32 = arith.constant 16 : i32
    %13 = arith.cmpi slt, %11, %c16_i32 : i32
    %14 = arith.andi %12, %13 : i1
    %c0_i32_11 = arith.constant 0 : i32
    %c15_i32 = arith.constant 15 : i32
    %15 = arith.maxsi %c0_i32_11, %11 : i32
    %16 = arith.minsi %c15_i32, %15 : i32
    %c0_12 = arith.constant 0 : index
    %17 = arith.index_cast %16 : i32 to index
    %c0_13 = arith.constant 0 : index
    %c0_14 = arith.constant 0 : index
    %18 = vector.load %arg2[%c0_12, %17, %c0_13, %c0_14] : memref<1x16x16x4xf32, #tpu.memory_space<vmem>>, vector<1x1x16x4xf32>
    %19 = vector.shape_cast %18 : vector<1x1x16x4xf32> to vector<1x16x4xf32>
    %cst_15 = arith.constant 0.000000e+00 : f32
    %20 = vector.broadcast %cst_15 : f32 to vector<1x16x4xf32>
    %21 = arith.select %14, %19, %20 : vector<1x16x4xf32>
    %c0_16 = arith.constant 0 : index
    %c1_17 = arith.constant 1 : index
    %c0_18 = arith.constant 0 : index
    %22 = vector.load %arg8[%c0_16, %c1_17, %c0_18] : memref<12x18x4xf32, #tpu.memory_space<vmem>>, vector<1x16x4xf32>
    tpu.vector_store %arg8[%c0_16, %c1_17, %c0_18], %21 {strides = array<i32>} : memref<12x18x4xf32, #tpu.memory_space<vmem>>, vector<1x16x4xf32>,
    %c1_i32_19 = arith.constant 1 : i32
    %23 = arith.subi %0, %c1_i32_19 : i32
    %c1_i32_20 = arith.constant 1 : i32
    %24 = arith.subi %23, %c1_i32_20 : i32
    %c1_i32_21 = arith.constant 1 : i32
    %25 = arith.addi %24, %c1_i32_21 : i32
    %c0_i32_22 = arith.constant 0 : i32
    %26 = arith.cmpi sge, %25, %c0_i32_22 : i32
    %c16_i32_23 = arith.constant 16 : i32
    %27 = arith.cmpi slt, %25, %c16_i32_23 : i32
    %28 = arith.andi %26, %27 : i1
    %c0_i32_24 = arith.constant 0 : i32
    %c15_i32_25 = arith.constant 15 : i32
    %29 = arith.maxsi %c0_i32_24, %25 : i32
    %30 = arith.minsi %c15_i32_25, %29 : i32
    %c0_26 = arith.constant 0 : index
    %31 = arith.index_cast %30 : i32 to index
    %c0_27 = arith.constant 0 : index
    %c0_28 = arith.constant 0 : index
    %32 = vector.load %arg2[%c0_26, %31, %c0_27, %c0_28] : memref<1x16x16x4xf32, #tpu.memory_space<vmem>>, vector<1x1x16x4xf32>
    %33 = vector.shape_cast %32 : vector<1x1x16x4xf32> to vector<1x16x4xf32>
    %cst_29 = arith.constant 0.000000e+00 : f32
    %34 = vector.broadcast %cst_29 : f32 to vector<1x16x4xf32>
    %35 = arith.select %28, %33, %34 : vector<1x16x4xf32>
    %c1_30 = arith.constant 1 : index
    %c1_31 = arith.constant 1 : index
    %c0_32 = arith.constant 0 : index
    %36 = vector.load %arg8[%c1_30, %c1_31, %c0_32] : memref<12x18x4xf32, #tpu.memory_space<vmem>>, vector<1x16x4xf32>
    tpu.vector_store %arg8[%c1_30, %c1_31, %c0_32], %35 {strides = array<i32>} : memref<12x18x4xf32, #tpu.memory_space<vmem>>, vector<1x16x4xf32>,
    %c1_i32_33 = arith.constant 1 : i32
    %37 = arith.subi %0, %c1_i32_33 : i32
    %c1_i32_34 = arith.constant 1 : i32
    %38 = arith.subi %37, %c1_i32_34 : i32
    %c10_i32 = arith.constant 10 : i32
    %39 = arith.addi %38, %c10_i32 : i32
    %c0_i32_35 = arith.constant 0 : i32
    %40 = arith.cmpi sge, %39, %c0_i32_35 : i32
    %c16_i32_36 = arith.constant 16 : i32
    %41 = arith.cmpi slt, %39, %c16_i32_36 : i32
    %42 = arith.andi %40, %41 : i1
    %c0_i32_37 = arith.constant 0 : i32
    %c15_i32_38 = arith.constant 15 : i32
    %43 = arith.maxsi %c0_i32_37, %39 : i32
    %44 = arith.minsi %c15_i32_38, %43 : i32
    %c0_39 = arith.constant 0 : index
    %45 = arith.index_cast %44 : i32 to index
    %c0_40 = arith.constant 0 : index
    %c0_41 = arith.constant 0 : index
    %46 = vector.load %arg2[%c0_39, %45, %c0_40, %c0_41] : memref<1x16x16x4xf32, #tpu.memory_space<vmem>>, vector<1x1x16x4xf32>
    %47 = vector.shape_cast %46 : vector<1x1x16x4xf32> to vector<1x16x4xf32>
    %cst_42 = arith.constant 0.000000e+00 : f32
    %48 = vector.broadcast %cst_42 : f32 to vector<1x16x4xf32>
    %49 = arith.select %42, %47, %48 : vector<1x16x4xf32>
    %c10 = arith.constant 10 : index
    %c1_43 = arith.constant 1 : index
    %c0_44 = arith.constant 0 : index
    %50 = vector.load %arg8[%c10, %c1_43, %c0_44] : memref<12x18x4xf32, #tpu.memory_space<vmem>>, vector<1x16x4xf32>
    tpu.vector_store %arg8[%c10, %c1_43, %c0_44], %49 {strides = array<i32>} : memref<12x18x4xf32, #tpu.memory_space<vmem>>, vector<1x16x4xf32>,
    %c1_i32_45 = arith.constant 1 : i32
    %51 = arith.subi %0, %c1_i32_45 : i32
    %c1_i32_46 = arith.constant 1 : i32
    %52 = arith.subi %51, %c1_i32_46 : i32
    %c11_i32 = arith.constant 11 : i32
    %53 = arith.addi %52, %c11_i32 : i32
    %c0_i32_47 = arith.constant 0 : i32
    %54 = arith.cmpi sge, %53, %c0_i32_47 : i32
    %c16_i32_48 = arith.constant 16 : i32
    %55 = arith.cmpi slt, %53, %c16_i32_48 : i32
    %56 = arith.andi %54, %55 : i1
    %c0_i32_49 = arith.constant 0 : i32
    %c15_i32_50 = arith.constant 15 : i32
    %57 = arith.maxsi %c0_i32_49, %53 : i32
    %58 = arith.minsi %c15_i32_50, %57 : i32
    %c0_51 = arith.constant 0 : index
    %59 = arith.index_cast %58 : i32 to index
    %c0_52 = arith.constant 0 : index
    %c0_53 = arith.constant 0 : index
    %60 = vector.load %arg2[%c0_51, %59, %c0_52, %c0_53] : memref<1x16x16x4xf32, #tpu.memory_space<vmem>>, vector<1x1x16x4xf32>
    %61 = vector.shape_cast %60 : vector<1x1x16x4xf32> to vector<1x16x4xf32>
    %cst_54 = arith.constant 0.000000e+00 : f32
    %62 = vector.broadcast %cst_54 : f32 to vector<1x16x4xf32>
    %63 = arith.select %56, %61, %62 : vector<1x16x4xf32>
    %c11 = arith.constant 11 : index
    %c1_55 = arith.constant 1 : index
    %c0_56 = arith.constant 0 : index
    %64 = vector.load %arg8[%c11, %c1_55, %c0_56] : memref<12x18x4xf32, #tpu.memory_space<vmem>>, vector<1x16x4xf32>
    tpu.vector_store %arg8[%c11, %c1_55, %c0_56], %63 {strides = array<i32>} : memref<12x18x4xf32, #tpu.memory_space<vmem>>, vector<1x16x4xf32>,
    %c0_57 = arith.constant 0 : index
    %c0_58 = arith.constant 0 : index
    %65 = vector.load %arg4[%c0_57, %c0_58] : memref<1x4xf32, #tpu.memory_space<vmem>>, vector<1x4xf32>
    %66 = vector.shape_cast %65 : vector<1x4xf32> to vector<1x1x4xf32>
    %67 = vector.broadcast %66 : vector<1x1x4xf32> to vector<10x16x4xf32>
    %c0_59 = arith.constant 0 : index
    %c0_60 = arith.constant 0 : index
    %c0_61 = arith.constant 0 : index
    %68 = vector.load %arg10[%c0_59, %c0_60, %c0_61] : memref<10x16x4xf32, #tpu.memory_space<vmem>>, vector<10x16x4xf32>
    tpu.vector_store %arg10[%c0_59, %c0_60, %c0_61], %67 {strides = array<i32>} : memref<10x16x4xf32, #tpu.memory_space<vmem>>, vector<10x16x4xf32>,
    %c0_62 = arith.constant 0 : index
    %c0_63 = arith.constant 0 : index
    %c0_64 = arith.constant 0 : index
    %69 = vector.load %arg8[%c0_62, %c0_63, %c0_64] : memref<12x18x4xf32, #tpu.memory_space<vmem>>, vector<10x16x4xf32>
    %c0_65 = arith.constant 0 : index
    %c0_66 = arith.constant 0 : index
    %c0_67 = arith.constant 0 : index
    %70 = vector.load %arg10[%c0_65, %c0_66, %c0_67] : memref<10x16x4xf32, #tpu.memory_space<vmem>>, vector<10x16x4xf32>
    %71 = vector.shape_cast %69 : vector<10x16x4xf32> to vector<160x4xf32>
    %c0_68 = arith.constant 0 : index
    %c0_69 = arith.constant 0 : index
    %c0_70 = arith.constant 0 : index
    %c0_71 = arith.constant 0 : index
    %72 = vector.load %arg3[%c0_68, %c0_69, %c0_70, %c0_71] : memref<3x3x4x4xf32, #tpu.memory_space<vmem>>, vector<1x1x4x4xf32>
    %73 = vector.shape_cast %72 : vector<1x1x4x4xf32> to vector<4x4xf32>
    %cst_72 = arith.constant dense<0.000000e+00> : vector<160x4xf32>
    %74 = tpu.matmul %71, %73, %cst_72 {dimension_numbers = #tpu.dot_dimension_numbers<[1], [0], [0], [1], [0, 0, 1, 1], [], []>} : vector<160x4xf32>, vector<4x4xf32>, vector<160x4xf32> -> vector<160x4xf32>
    %75 = vector.shape_cast %74 : vector<160x4xf32> to vector<10x16x4xf32>
    %76 = arith.addf %70, %75 : vector<10x16x4xf32>
    %c0_73 = arith.constant 0 : index
    %c0_74 = arith.constant 0 : index
    %c0_75 = arith.constant 0 : index
    %77 = vector.load %arg10[%c0_73, %c0_74, %c0_75] : memref<10x16x4xf32, #tpu.memory_space<vmem>>, vector<10x16x4xf32>
    tpu.vector_store %arg10[%c0_73, %c0_74, %c0_75], %76 {strides = array<i32>} : memref<10x16x4xf32, #tpu.memory_space<vmem>>, vector<10x16x4xf32>,
    %c0_76 = arith.constant 0 : index
    %c1_77 = arith.constant 1 : index
    %c0_78 = arith.constant 0 : index
    %78 = vector.load %arg8[%c0_76, %c1_77, %c0_78] : memref<12x18x4xf32, #tpu.memory_space<vmem>>, vector<10x16x4xf32>
    %c0_79 = arith.constant 0 : index
    %c0_80 = arith.constant 0 : index
    %c0_81 = arith.constant 0 : index
    %79 = vector.load %arg10[%c0_79, %c0_80, %c0_81] : memref<10x16x4xf32, #tpu.memory_space<vmem>>, vector<10x16x4xf32>
    %80 = vector.shape_cast %78 : vector<10x16x4xf32> to vector<160x4xf32>
    %c0_82 = arith.constant 0 : index
    %c1_83 = arith.constant 1 : index
    %c0_84 = arith.constant 0 : index
    %c0_85 = arith.constant 0 : index
    %81 = vector.load %arg3[%c0_82, %c1_83, %c0_84, %c0_85] : memref<3x3x4x4xf32, #tpu.memory_space<vmem>>, vector<1x1x4x4xf32>
    %82 = vector.shape_cast %81 : vector<1x1x4x4xf32> to vector<4x4xf32>
    %cst_86 = arith.constant dense<0.000000e+00> : vector<160x4xf32>
    %83 = tpu.matmul %80, %82, %cst_86 {dimension_numbers = #tpu.dot_dimension_numbers<[1], [0], [0], [1], [0, 0, 1, 1], [], []>} : vector<160x4xf32>, vector<4x4xf32>, vector<160x4xf32> -> vector<160x4xf32>
    %84 = vector.shape_cast %83 : vector<160x4xf32> to vector<10x16x4xf32>
    %85 = arith.addf %79, %84 : vector<10x16x4xf32>
    %c0_87 = arith.constant 0 : index
    %c0_88 = arith.constant 0 : index
    %c0_89 = arith.constant 0 : index
    %86 = vector.load %arg10[%c0_87, %c0_88, %c0_89] : memref<10x16x4xf32, #tpu.memory_space<vmem>>, vector<10x16x4xf32>
    tpu.vector_store %arg10[%c0_87, %c0_88, %c0_89], %85 {strides = array<i32>} : memref<10x16x4xf32, #tpu.memory_space<vmem>>, vector<10x16x4xf32>,
    %c0_90 = arith.constant 0 : index
    %c2_91 = arith.constant 2 : index
    %c0_92 = arith.constant 0 : index
    %87 = vector.load %arg8[%c0_90, %c2_91, %c0_92] : memref<12x18x4xf32, #tpu.memory_space<vmem>>, vector<10x16x4xf32>
    %c0_93 = arith.constant 0 : index
    %c0_94 = arith.constant 0 : index
    %c0_95 = arith.constant 0 : index
    %88 = vector.load %arg10[%c0_93, %c0_94, %c0_95] : memref<10x16x4xf32, #tpu.memory_space<vmem>>, vector<10x16x4xf32>
    %89 = vector.shape_cast %87 : vector<10x16x4xf32> to vector<160x4xf32>
    %c0_96 = arith.constant 0 : index
    %c2_97 = arith.constant 2 : index
    %c0_98 = arith.constant 0 : index
    %c0_99 = arith.constant 0 : index
    %90 = vector.load %arg3[%c0_96, %c2_97, %c0_98, %c0_99] : memref<3x3x4x4xf32, #tpu.memory_space<vmem>>, vector<1x1x4x4xf32>
    %91 = vector.shape_cast %90 : vector<1x1x4x4xf32> to vector<4x4xf32>
    %cst_100 = arith.constant dense<0.000000e+00> : vector<160x4xf32>
    %92 = tpu.matmul %89, %91, %cst_100 {dimension_numbers = #tpu.dot_dimension_numbers<[1], [0], [0], [1], [0, 0, 1, 1], [], []>} : vector<160x4xf32>, vector<4x4xf32>, vector<160x4xf32> -> vector<160x4xf32>
    %93 = vector.shape_cast %92 : vector<160x4xf32> to vector<10x16x4xf32>
    %94 = arith.addf %88, %93 : vector<10x16x4xf32>
    %c0_101 = arith.constant 0 : index
    %c0_102 = arith.constant 0 : index
    %c0_103 = arith.constant 0 : index
    %95 = vector.load %arg10[%c0_101, %c0_102, %c0_103] : memref<10x16x4xf32, #tpu.memory_space<vmem>>, vector<10x16x4xf32>
    tpu.vector_store %arg10[%c0_101, %c0_102, %c0_103], %94 {strides = array<i32>} : memref<10x16x4xf32, #tpu.memory_space<vmem>>, vector<10x16x4xf32>,
    %c1_104 = arith.constant 1 : index
    %c0_105 = arith.constant 0 : index
    %c0_106 = arith.constant 0 : index
    %96 = vector.load %arg8[%c1_104, %c0_105, %c0_106] : memref<12x18x4xf32, #tpu.memory_space<vmem>>, vector<10x16x4xf32>
    %c0_107 = arith.constant 0 : index
    %c0_108 = arith.constant 0 : index
    %c0_109 = arith.constant 0 : index
    %97 = vector.load %arg10[%c0_107, %c0_108, %c0_109] : memref<10x16x4xf32, #tpu.memory_space<vmem>>, vector<10x16x4xf32>
    %98 = vector.shape_cast %96 : vector<10x16x4xf32> to vector<160x4xf32>
    %c1_110 = arith.constant 1 : index
    %c0_111 = arith.constant 0 : index
    %c0_112 = arith.constant 0 : index
    %c0_113 = arith.constant 0 : index
    %99 = vector.load %arg3[%c1_110, %c0_111, %c0_112, %c0_113] : memref<3x3x4x4xf32, #tpu.memory_space<vmem>>, vector<1x1x4x4xf32>
    %100 = vector.shape_cast %99 : vector<1x1x4x4xf32> to vector<4x4xf32>
    %cst_114 = arith.constant dense<0.000000e+00> : vector<160x4xf32>
    %101 = tpu.matmul %98, %100, %cst_114 {dimension_numbers = #tpu.dot_dimension_numbers<[1], [0], [0], [1], [0, 0, 1, 1], [], []>} : vector<160x4xf32>, vector<4x4xf32>, vector<160x4xf32> -> vector<160x4xf32>
    %102 = vector.shape_cast %101 : vector<160x4xf32> to vector<10x16x4xf32>
    %103 = arith.addf %97, %102 : vector<10x16x4xf32>
    %c0_115 = arith.constant 0 : index
    %c0_116 = arith.constant 0 : index
    %c0_117 = arith.constant 0 : index
    %104 = vector.load %arg10[%c0_115, %c0_116, %c0_117] : memref<10x16x4xf32, #tpu.memory_space<vmem>>, vector<10x16x4xf32>
    tpu.vector_store %arg10[%c0_115, %c0_116, %c0_117], %103 {strides = array<i32>} : memref<10x16x4xf32, #tpu.memory_space<vmem>>, vector<10x16x4xf32>,
    %c1_118 = arith.constant 1 : index
    %c1_119 = arith.constant 1 : index
    %c0_120 = arith.constant 0 : index
    %105 = vector.load %arg8[%c1_118, %c1_119, %c0_120] : memref<12x18x4xf32, #tpu.memory_space<vmem>>, vector<10x16x4xf32>
    %c0_121 = arith.constant 0 : index
    %c0_122 = arith.constant 0 : index
    %c0_123 = arith.constant 0 : index
    %106 = vector.load %arg10[%c0_121, %c0_122, %c0_123] : memref<10x16x4xf32, #tpu.memory_space<vmem>>, vector<10x16x4xf32>
    %107 = vector.shape_cast %105 : vector<10x16x4xf32> to vector<160x4xf32>
    %c1_124 = arith.constant 1 : index
    %c1_125 = arith.constant 1 : index
    %c0_126 = arith.constant 0 : index
    %c0_127 = arith.constant 0 : index
    %108 = vector.load %arg3[%c1_124, %c1_125, %c0_126, %c0_127] : memref<3x3x4x4xf32, #tpu.memory_space<vmem>>, vector<1x1x4x4xf32>
    %109 = vector.shape_cast %108 : vector<1x1x4x4xf32> to vector<4x4xf32>
    %cst_128 = arith.constant dense<0.000000e+00> : vector<160x4xf32>
    %110 = tpu.matmul %107, %109, %cst_128 {dimension_numbers = #tpu.dot_dimension_numbers<[1], [0], [0], [1], [0, 0, 1, 1], [], []>} : vector<160x4xf32>, vector<4x4xf32>, vector<160x4xf32> -> vector<160x4xf32>
    %111 = vector.shape_cast %110 : vector<160x4xf32> to vector<10x16x4xf32>
    %112 = arith.addf %106, %111 : vector<10x16x4xf32>
    %c0_129 = arith.constant 0 : index
    %c0_130 = arith.constant 0 : index
    %c0_131 = arith.constant 0 : index
    %113 = vector.load %arg10[%c0_129, %c0_130, %c0_131] : memref<10x16x4xf32, #tpu.memory_space<vmem>>, vector<10x16x4xf32>
    tpu.vector_store %arg10[%c0_129, %c0_130, %c0_131], %112 {strides = array<i32>} : memref<10x16x4xf32, #tpu.memory_space<vmem>>, vector<10x16x4xf32>,
    %c1_132 = arith.constant 1 : index
    %c2_133 = arith.constant 2 : index
    %c0_134 = arith.constant 0 : index
    %114 = vector.load %arg8[%c1_132, %c2_133, %c0_134] : memref<12x18x4xf32, #tpu.memory_space<vmem>>, vector<10x16x4xf32>
    %c0_135 = arith.constant 0 : index
    %c0_136 = arith.constant 0 : index
    %c0_137 = arith.constant 0 : index
    %115 = vector.load %arg10[%c0_135, %c0_136, %c0_137] : memref<10x16x4xf32, #tpu.memory_space<vmem>>, vector<10x16x4xf32>
    %116 = vector.shape_cast %114 : vector<10x16x4xf32> to vector<160x4xf32>
    %c1_138 = arith.constant 1 : index
    %c2_139 = arith.constant 2 : index
    %c0_140 = arith.constant 0 : index
    %c0_141 = arith.constant 0 : index
    %117 = vector.load %arg3[%c1_138, %c2_139, %c0_140, %c0_141] : memref<3x3x4x4xf32, #tpu.memory_space<vmem>>, vector<1x1x4x4xf32>
    %118 = vector.shape_cast %117 : vector<1x1x4x4xf32> to vector<4x4xf32>
    %cst_142 = arith.constant dense<0.000000e+00> : vector<160x4xf32>
    %119 = tpu.matmul %116, %118, %cst_142 {dimension_numbers = #tpu.dot_dimension_numbers<[1], [0], [0], [1], [0, 0, 1, 1], [], []>} : vector<160x4xf32>, vector<4x4xf32>, vector<160x4xf32> -> vector<160x4xf32>
    %120 = vector.shape_cast %119 : vector<160x4xf32> to vector<10x16x4xf32>
    %121 = arith.addf %115, %120 : vector<10x16x4xf32>
    %c0_143 = arith.constant 0 : index
    %c0_144 = arith.constant 0 : index
    %c0_145 = arith.constant 0 : index
    %122 = vector.load %arg10[%c0_143, %c0_144, %c0_145] : memref<10x16x4xf32, #tpu.memory_space<vmem>>, vector<10x16x4xf32>
    tpu.vector_store %arg10[%c0_143, %c0_144, %c0_145], %121 {strides = array<i32>} : memref<10x16x4xf32, #tpu.memory_space<vmem>>, vector<10x16x4xf32>,
    %c2_146 = arith.constant 2 : index
    %c0_147 = arith.constant 0 : index
    %c0_148 = arith.constant 0 : index
    %123 = vector.load %arg8[%c2_146, %c0_147, %c0_148] : memref<12x18x4xf32, #tpu.memory_space<vmem>>, vector<10x16x4xf32>
    %c0_149 = arith.constant 0 : index
    %c0_150 = arith.constant 0 : index
    %c0_151 = arith.constant 0 : index
    %124 = vector.load %arg10[%c0_149, %c0_150, %c0_151] : memref<10x16x4xf32, #tpu.memory_space<vmem>>, vector<10x16x4xf32>
    %125 = vector.shape_cast %123 : vector<10x16x4xf32> to vector<160x4xf32>
    %c2_152 = arith.constant 2 : index
    %c0_153 = arith.constant 0 : index
    %c0_154 = arith.constant 0 : index
    %c0_155 = arith.constant 0 : index
    %126 = vector.load %arg3[%c2_152, %c0_153, %c0_154, %c0_155] : memref<3x3x4x4xf32, #tpu.memory_space<vmem>>, vector<1x1x4x4xf32>
    %127 = vector.shape_cast %126 : vector<1x1x4x4xf32> to vector<4x4xf32>
    %cst_156 = arith.constant dense<0.000000e+00> : vector<160x4xf32>
    %128 = tpu.matmul %125, %127, %cst_156 {dimension_numbers = #tpu.dot_dimension_numbers<[1], [0], [0], [1], [0, 0, 1, 1], [], []>} : vector<160x4xf32>, vector<4x4xf32>, vector<160x4xf32> -> vector<160x4xf32>
    %129 = vector.shape_cast %128 : vector<160x4xf32> to vector<10x16x4xf32>
    %130 = arith.addf %124, %129 : vector<10x16x4xf32>
    %c0_157 = arith.constant 0 : index
    %c0_158 = arith.constant 0 : index
    %c0_159 = arith.constant 0 : index
    %131 = vector.load %arg10[%c0_157, %c0_158, %c0_159] : memref<10x16x4xf32, #tpu.memory_space<vmem>>, vector<10x16x4xf32>
    tpu.vector_store %arg10[%c0_157, %c0_158, %c0_159], %130 {strides = array<i32>} : memref<10x16x4xf32, #tpu.memory_space<vmem>>, vector<10x16x4xf32>,
    %c2_160 = arith.constant 2 : index
    %c1_161 = arith.constant 1 : index
    %c0_162 = arith.constant 0 : index
    %132 = vector.load %arg8[%c2_160, %c1_161, %c0_162] : memref<12x18x4xf32, #tpu.memory_space<vmem>>, vector<10x16x4xf32>
    %c0_163 = arith.constant 0 : index
    %c0_164 = arith.constant 0 : index
    %c0_165 = arith.constant 0 : index
    %133 = vector.load %arg10[%c0_163, %c0_164, %c0_165] : memref<10x16x4xf32, #tpu.memory_space<vmem>>, vector<10x16x4xf32>
    %134 = vector.shape_cast %132 : vector<10x16x4xf32> to vector<160x4xf32>
    %c2_166 = arith.constant 2 : index
    %c1_167 = arith.constant 1 : index
    %c0_168 = arith.constant 0 : index
    %c0_169 = arith.constant 0 : index
    %135 = vector.load %arg3[%c2_166, %c1_167, %c0_168, %c0_169] : memref<3x3x4x4xf32, #tpu.memory_space<vmem>>, vector<1x1x4x4xf32>
    %136 = vector.shape_cast %135 : vector<1x1x4x4xf32> to vector<4x4xf32>
    %cst_170 = arith.constant dense<0.000000e+00> : vector<160x4xf32>
    %137 = tpu.matmul %134, %136, %cst_170 {dimension_numbers = #tpu.dot_dimension_numbers<[1], [0], [0], [1], [0, 0, 1, 1], [], []>} : vector<160x4xf32>, vector<4x4xf32>, vector<160x4xf32> -> vector<160x4xf32>
    %138 = vector.shape_cast %137 : vector<160x4xf32> to vector<10x16x4xf32>
    %139 = arith.addf %133, %138 : vector<10x16x4xf32>
    %c0_171 = arith.constant 0 : index
    %c0_172 = arith.constant 0 : index
    %c0_173 = arith.constant 0 : index
    %140 = vector.load %arg10[%c0_171, %c0_172, %c0_173] : memref<10x16x4xf32, #tpu.memory_space<vmem>>, vector<10x16x4xf32>
    tpu.vector_store %arg10[%c0_171, %c0_172, %c0_173], %139 {strides = array<i32>} : memref<10x16x4xf32, #tpu.memory_space<vmem>>, vector<10x16x4xf32>,
    %c2_174 = arith.constant 2 : index
    %c2_175 = arith.constant 2 : index
    %c0_176 = arith.constant 0 : index
    %141 = vector.load %arg8[%c2_174, %c2_175, %c0_176] : memref<12x18x4xf32, #tpu.memory_space<vmem>>, vector<10x16x4xf32>
    %c0_177 = arith.constant 0 : index
    %c0_178 = arith.constant 0 : index
    %c0_179 = arith.constant 0 : index
    %142 = vector.load %arg10[%c0_177, %c0_178, %c0_179] : memref<10x16x4xf32, #tpu.memory_space<vmem>>, vector<10x16x4xf32>
    %143 = vector.shape_cast %141 : vector<10x16x4xf32> to vector<160x4xf32>
    %c2_180 = arith.constant 2 : index
    %c2_181 = arith.constant 2 : index
    %c0_182 = arith.constant 0 : index
    %c0_183 = arith.constant 0 : index
    %144 = vector.load %arg3[%c2_180, %c2_181, %c0_182, %c0_183] : memref<3x3x4x4xf32, #tpu.memory_space<vmem>>, vector<1x1x4x4xf32>
    %145 = vector.shape_cast %144 : vector<1x1x4x4xf32> to vector<4x4xf32>
    %cst_184 = arith.constant dense<0.000000e+00> : vector<160x4xf32>
    %146 = tpu.matmul %143, %145, %cst_184 {dimension_numbers = #tpu.dot_dimension_numbers<[1], [0], [0], [1], [0, 0, 1, 1], [], []>} : vector<160x4xf32>, vector<4x4xf32>, vector<160x4xf32> -> vector<160x4xf32>
    %147 = vector.shape_cast %146 : vector<160x4xf32> to vector<10x16x4xf32>
    %148 = arith.addf %142, %147 : vector<10x16x4xf32>
    %c0_185 = arith.constant 0 : index
    %c0_186 = arith.constant 0 : index
    %c0_187 = arith.constant 0 : index
    %149 = vector.load %arg10[%c0_185, %c0_186, %c0_187] : memref<10x16x4xf32, #tpu.memory_space<vmem>>, vector<10x16x4xf32>
    tpu.vector_store %arg10[%c0_185, %c0_186, %c0_187], %148 {strides = array<i32>} : memref<10x16x4xf32, #tpu.memory_space<vmem>>, vector<10x16x4xf32>,
    %c0_188 = arith.constant 0 : index
    %c0_189 = arith.constant 0 : index
    %c0_190 = arith.constant 0 : index
    %150 = vector.load %arg10[%c0_188, %c0_189, %c0_190] : memref<10x16x4xf32, #tpu.memory_space<vmem>>, vector<10x16x4xf32>
    %151 = math.tanh %150 : vector<10x16x4xf32>
    %cst_191 = arith.constant 0.000000e+00 : f32
    %152 = vector.broadcast %cst_191 : f32 to vector<10x1x4xf32>
    %c0_192 = arith.constant 0 : index
    %c0_193 = arith.constant 0 : index
    %c0_194 = arith.constant 0 : index
    %153 = vector.load %arg9[%c0_192, %c0_193, %c0_194] : memref<10x18x4xf32, #tpu.memory_space<vmem>>, vector<10x1x4xf32>
    tpu.vector_store %arg9[%c0_192, %c0_193, %c0_194], %152 {strides = array<i32>} : memref<10x18x4xf32, #tpu.memory_space<vmem>>, vector<10x1x4xf32>,
    %cst_195 = arith.constant 0.000000e+00 : f32
    %154 = vector.broadcast %cst_195 : f32 to vector<10x1x4xf32>
    %c0_196 = arith.constant 0 : index
    %c17_197 = arith.constant 17 : index
    %c0_198 = arith.constant 0 : index
    %155 = vector.load %arg9[%c0_196, %c17_197, %c0_198] : memref<10x18x4xf32, #tpu.memory_space<vmem>>, vector<10x1x4xf32>
    tpu.vector_store %arg9[%c0_196, %c17_197, %c0_198], %154 {strides = array<i32>} : memref<10x18x4xf32, #tpu.memory_space<vmem>>, vector<10x1x4xf32>,
    %c0_199 = arith.constant 0 : index
    %c1_200 = arith.constant 1 : index
    %c0_201 = arith.constant 0 : index
    %156 = vector.load %arg9[%c0_199, %c1_200, %c0_201] : memref<10x18x4xf32, #tpu.memory_space<vmem>>, vector<10x16x4xf32>
    tpu.vector_store %arg9[%c0_199, %c1_200, %c0_201], %151 {strides = array<i32>} : memref<10x18x4xf32, #tpu.memory_space<vmem>>, vector<10x16x4xf32>,
    %c0_i32_202 = arith.constant 0 : i32
    %157 = arith.cmpi eq, %0, %c0_i32_202 : i32
    %158 = arith.extui %157 : i1 to i32
    %c0_i32_203 = arith.constant 0 : i32
    %159 = arith.cmpi ne, %158, %c0_i32_203 : i32
    scf.if %159 {
      %cst_348 = arith.constant 0.000000e+00 : f32
      %258 = vector.broadcast %cst_348 : f32 to vector<1x16x4xf32>
      %c0_349 = arith.constant 0 : index
      %c1_350 = arith.constant 1 : index
      %c0_351 = arith.constant 0 : index
      %259 = vector.load %arg9[%c0_349, %c1_350, %c0_351] : memref<10x18x4xf32, #tpu.memory_space<vmem>>, vector<1x16x4xf32>
      tpu.vector_store %arg9[%c0_349, %c1_350, %c0_351], %258 {strides = array<i32>} : memref<10x18x4xf32, #tpu.memory_space<vmem>>, vector<1x16x4xf32>,
    } else {
    }
    %c8_i32_204 = arith.constant 8 : i32
    %160 = arith.addi %0, %c8_i32_204 : i32
    %c16_i32_205 = arith.constant 16 : i32
    %161 = arith.cmpi eq, %160, %c16_i32_205 : i32
    %162 = arith.extui %161 : i1 to i32
    %c0_i32_206 = arith.constant 0 : i32
    %163 = arith.cmpi ne, %162, %c0_i32_206 : i32
    scf.if %163 {
      %cst_348 = arith.constant 0.000000e+00 : f32
      %258 = vector.broadcast %cst_348 : f32 to vector<1x16x4xf32>
      %c9 = arith.constant 9 : index
      %c1_349 = arith.constant 1 : index
      %c0_350 = arith.constant 0 : index
      %259 = vector.load %arg9[%c9, %c1_349, %c0_350] : memref<10x18x4xf32, #tpu.memory_space<vmem>>, vector<1x16x4xf32>
      tpu.vector_store %arg9[%c9, %c1_349, %c0_350], %258 {strides = array<i32>} : memref<10x18x4xf32, #tpu.memory_space<vmem>>, vector<1x16x4xf32>,
    } else {
    }
    %c0_207 = arith.constant 0 : index
    %c0_208 = arith.constant 0 : index
    %164 = vector.load %arg6[%c0_207, %c0_208] : memref<1x4xf32, #tpu.memory_space<vmem>>, vector<1x4xf32>
    %165 = vector.shape_cast %164 : vector<1x4xf32> to vector<1x1x4xf32>
    %166 = vector.broadcast %165 : vector<1x1x4xf32> to vector<8x16x4xf32>
    %c0_209 = arith.constant 0 : index
    %c0_210 = arith.constant 0 : index
    %c0_211 = arith.constant 0 : index
    %167 = vector.load %arg11[%c0_209, %c0_210, %c0_211] : memref<8x16x4xf32, #tpu.memory_space<vmem>>, vector<8x16x4xf32>
    tpu.vector_store %arg11[%c0_209, %c0_210, %c0_211], %166 {strides = array<i32>} : memref<8x16x4xf32, #tpu.memory_space<vmem>>, vector<8x16x4xf32>,
    %c0_212 = arith.constant 0 : index
    %c0_213 = arith.constant 0 : index
    %c0_214 = arith.constant 0 : index
    %168 = vector.load %arg9[%c0_212, %c0_213, %c0_214] : memref<10x18x4xf32, #tpu.memory_space<vmem>>, vector<8x16x4xf32>
    %c0_215 = arith.constant 0 : index
    %c0_216 = arith.constant 0 : index
    %c0_217 = arith.constant 0 : index
    %169 = vector.load %arg11[%c0_215, %c0_216, %c0_217] : memref<8x16x4xf32, #tpu.memory_space<vmem>>, vector<8x16x4xf32>
    %170 = vector.shape_cast %168 : vector<8x16x4xf32> to vector<128x4xf32>
    %c0_218 = arith.constant 0 : index
    %c0_219 = arith.constant 0 : index
    %c0_220 = arith.constant 0 : index
    %c0_221 = arith.constant 0 : index
    %171 = vector.load %arg5[%c0_218, %c0_219, %c0_220, %c0_221] : memref<3x3x4x4xf32, #tpu.memory_space<vmem>>, vector<1x1x4x4xf32>
    %172 = vector.shape_cast %171 : vector<1x1x4x4xf32> to vector<4x4xf32>
    %cst_222 = arith.constant dense<0.000000e+00> : vector<128x4xf32>
    %173 = tpu.matmul %170, %172, %cst_222 {dimension_numbers = #tpu.dot_dimension_numbers<[1], [0], [0], [1], [0, 0, 1, 1], [], []>} : vector<128x4xf32>, vector<4x4xf32>, vector<128x4xf32> -> vector<128x4xf32>
    %174 = vector.shape_cast %173 : vector<128x4xf32> to vector<8x16x4xf32>
    %175 = arith.addf %169, %174 : vector<8x16x4xf32>
    %c0_223 = arith.constant 0 : index
    %c0_224 = arith.constant 0 : index
    %c0_225 = arith.constant 0 : index
    %176 = vector.load %arg11[%c0_223, %c0_224, %c0_225] : memref<8x16x4xf32, #tpu.memory_space<vmem>>, vector<8x16x4xf32>
    tpu.vector_store %arg11[%c0_223, %c0_224, %c0_225], %175 {strides = array<i32>} : memref<8x16x4xf32, #tpu.memory_space<vmem>>, vector<8x16x4xf32>,
    %c0_226 = arith.constant 0 : index
    %c1_227 = arith.constant 1 : index
    %c0_228 = arith.constant 0 : index
    %177 = vector.load %arg9[%c0_226, %c1_227, %c0_228] : memref<10x18x4xf32, #tpu.memory_space<vmem>>, vector<8x16x4xf32>
    %c0_229 = arith.constant 0 : index
    %c0_230 = arith.constant 0 : index
    %c0_231 = arith.constant 0 : index
    %178 = vector.load %arg11[%c0_229, %c0_230, %c0_231] : memref<8x16x4xf32, #tpu.memory_space<vmem>>, vector<8x16x4xf32>
    %179 = vector.shape_cast %177 : vector<8x16x4xf32> to vector<128x4xf32>
    %c0_232 = arith.constant 0 : index
    %c1_233 = arith.constant 1 : index
    %c0_234 = arith.constant 0 : index
    %c0_235 = arith.constant 0 : index
    %180 = vector.load %arg5[%c0_232, %c1_233, %c0_234, %c0_235] : memref<3x3x4x4xf32, #tpu.memory_space<vmem>>, vector<1x1x4x4xf32>
    %181 = vector.shape_cast %180 : vector<1x1x4x4xf32> to vector<4x4xf32>
    %cst_236 = arith.constant dense<0.000000e+00> : vector<128x4xf32>
    %182 = tpu.matmul %179, %181, %cst_236 {dimension_numbers = #tpu.dot_dimension_numbers<[1], [0], [0], [1], [0, 0, 1, 1], [], []>} : vector<128x4xf32>, vector<4x4xf32>, vector<128x4xf32> -> vector<128x4xf32>
    %183 = vector.shape_cast %182 : vector<128x4xf32> to vector<8x16x4xf32>
    %184 = arith.addf %178, %183 : vector<8x16x4xf32>
    %c0_237 = arith.constant 0 : index
    %c0_238 = arith.constant 0 : index
    %c0_239 = arith.constant 0 : index
    %185 = vector.load %arg11[%c0_237, %c0_238, %c0_239] : memref<8x16x4xf32, #tpu.memory_space<vmem>>, vector<8x16x4xf32>
    tpu.vector_store %arg11[%c0_237, %c0_238, %c0_239], %184 {strides = array<i32>} : memref<8x16x4xf32, #tpu.memory_space<vmem>>, vector<8x16x4xf32>,
    %c0_240 = arith.constant 0 : index
    %c2_241 = arith.constant 2 : index
    %c0_242 = arith.constant 0 : index
    %186 = vector.load %arg9[%c0_240, %c2_241, %c0_242] : memref<10x18x4xf32, #tpu.memory_space<vmem>>, vector<8x16x4xf32>
    %c0_243 = arith.constant 0 : index
    %c0_244 = arith.constant 0 : index
    %c0_245 = arith.constant 0 : index
    %187 = vector.load %arg11[%c0_243, %c0_244, %c0_245] : memref<8x16x4xf32, #tpu.memory_space<vmem>>, vector<8x16x4xf32>
    %188 = vector.shape_cast %186 : vector<8x16x4xf32> to vector<128x4xf32>
    %c0_246 = arith.constant 0 : index
    %c2_247 = arith.constant 2 : index
    %c0_248 = arith.constant 0 : index
    %c0_249 = arith.constant 0 : index
    %189 = vector.load %arg5[%c0_246, %c2_247, %c0_248, %c0_249] : memref<3x3x4x4xf32, #tpu.memory_space<vmem>>, vector<1x1x4x4xf32>
    %190 = vector.shape_cast %189 : vector<1x1x4x4xf32> to vector<4x4xf32>
    %cst_250 = arith.constant dense<0.000000e+00> : vector<128x4xf32>
    %191 = tpu.matmul %188, %190, %cst_250 {dimension_numbers = #tpu.dot_dimension_numbers<[1], [0], [0], [1], [0, 0, 1, 1], [], []>} : vector<128x4xf32>, vector<4x4xf32>, vector<128x4xf32> -> vector<128x4xf32>
    %192 = vector.shape_cast %191 : vector<128x4xf32> to vector<8x16x4xf32>
    %193 = arith.addf %187, %192 : vector<8x16x4xf32>
    %c0_251 = arith.constant 0 : index
    %c0_252 = arith.constant 0 : index
    %c0_253 = arith.constant 0 : index
    %194 = vector.load %arg11[%c0_251, %c0_252, %c0_253] : memref<8x16x4xf32, #tpu.memory_space<vmem>>, vector<8x16x4xf32>
    tpu.vector_store %arg11[%c0_251, %c0_252, %c0_253], %193 {strides = array<i32>} : memref<8x16x4xf32, #tpu.memory_space<vmem>>, vector<8x16x4xf32>,
    %c1_254 = arith.constant 1 : index
    %c0_255 = arith.constant 0 : index
    %c0_256 = arith.constant 0 : index
    %195 = vector.load %arg9[%c1_254, %c0_255, %c0_256] : memref<10x18x4xf32, #tpu.memory_space<vmem>>, vector<8x16x4xf32>
    %c0_257 = arith.constant 0 : index
    %c0_258 = arith.constant 0 : index
    %c0_259 = arith.constant 0 : index
    %196 = vector.load %arg11[%c0_257, %c0_258, %c0_259] : memref<8x16x4xf32, #tpu.memory_space<vmem>>, vector<8x16x4xf32>
    %197 = vector.shape_cast %195 : vector<8x16x4xf32> to vector<128x4xf32>
    %c1_260 = arith.constant 1 : index
    %c0_261 = arith.constant 0 : index
    %c0_262 = arith.constant 0 : index
    %c0_263 = arith.constant 0 : index
    %198 = vector.load %arg5[%c1_260, %c0_261, %c0_262, %c0_263] : memref<3x3x4x4xf32, #tpu.memory_space<vmem>>, vector<1x1x4x4xf32>
    %199 = vector.shape_cast %198 : vector<1x1x4x4xf32> to vector<4x4xf32>
    %cst_264 = arith.constant dense<0.000000e+00> : vector<128x4xf32>
    %200 = tpu.matmul %197, %199, %cst_264 {dimension_numbers = #tpu.dot_dimension_numbers<[1], [0], [0], [1], [0, 0, 1, 1], [], []>} : vector<128x4xf32>, vector<4x4xf32>, vector<128x4xf32> -> vector<128x4xf32>
    %201 = vector.shape_cast %200 : vector<128x4xf32> to vector<8x16x4xf32>
    %202 = arith.addf %196, %201 : vector<8x16x4xf32>
    %c0_265 = arith.constant 0 : index
    %c0_266 = arith.constant 0 : index
    %c0_267 = arith.constant 0 : index
    %203 = vector.load %arg11[%c0_265, %c0_266, %c0_267] : memref<8x16x4xf32, #tpu.memory_space<vmem>>, vector<8x16x4xf32>
    tpu.vector_store %arg11[%c0_265, %c0_266, %c0_267], %202 {strides = array<i32>} : memref<8x16x4xf32, #tpu.memory_space<vmem>>, vector<8x16x4xf32>,
    %c1_268 = arith.constant 1 : index
    %c1_269 = arith.constant 1 : index
    %c0_270 = arith.constant 0 : index
    %204 = vector.load %arg9[%c1_268, %c1_269, %c0_270] : memref<10x18x4xf32, #tpu.memory_space<vmem>>, vector<8x16x4xf32>
    %c0_271 = arith.constant 0 : index
    %c0_272 = arith.constant 0 : index
    %c0_273 = arith.constant 0 : index
    %205 = vector.load %arg11[%c0_271, %c0_272, %c0_273] : memref<8x16x4xf32, #tpu.memory_space<vmem>>, vector<8x16x4xf32>
    %206 = vector.shape_cast %204 : vector<8x16x4xf32> to vector<128x4xf32>
    %c1_274 = arith.constant 1 : index
    %c1_275 = arith.constant 1 : index
    %c0_276 = arith.constant 0 : index
    %c0_277 = arith.constant 0 : index
    %207 = vector.load %arg5[%c1_274, %c1_275, %c0_276, %c0_277] : memref<3x3x4x4xf32, #tpu.memory_space<vmem>>, vector<1x1x4x4xf32>
    %208 = vector.shape_cast %207 : vector<1x1x4x4xf32> to vector<4x4xf32>
    %cst_278 = arith.constant dense<0.000000e+00> : vector<128x4xf32>
    %209 = tpu.matmul %206, %208, %cst_278 {dimension_numbers = #tpu.dot_dimension_numbers<[1], [0], [0], [1], [0, 0, 1, 1], [], []>} : vector<128x4xf32>, vector<4x4xf32>, vector<128x4xf32> -> vector<128x4xf32>
    %210 = vector.shape_cast %209 : vector<128x4xf32> to vector<8x16x4xf32>
    %211 = arith.addf %205, %210 : vector<8x16x4xf32>
    %c0_279 = arith.constant 0 : index
    %c0_280 = arith.constant 0 : index
    %c0_281 = arith.constant 0 : index
    %212 = vector.load %arg11[%c0_279, %c0_280, %c0_281] : memref<8x16x4xf32, #tpu.memory_space<vmem>>, vector<8x16x4xf32>
    tpu.vector_store %arg11[%c0_279, %c0_280, %c0_281], %211 {strides = array<i32>} : memref<8x16x4xf32, #tpu.memory_space<vmem>>, vector<8x16x4xf32>,
    %c1_282 = arith.constant 1 : index
    %c2_283 = arith.constant 2 : index
    %c0_284 = arith.constant 0 : index
    %213 = vector.load %arg9[%c1_282, %c2_283, %c0_284] : memref<10x18x4xf32, #tpu.memory_space<vmem>>, vector<8x16x4xf32>
    %c0_285 = arith.constant 0 : index
    %c0_286 = arith.constant 0 : index
    %c0_287 = arith.constant 0 : index
    %214 = vector.load %arg11[%c0_285, %c0_286, %c0_287] : memref<8x16x4xf32, #tpu.memory_space<vmem>>, vector<8x16x4xf32>
    %215 = vector.shape_cast %213 : vector<8x16x4xf32> to vector<128x4xf32>
    %c1_288 = arith.constant 1 : index
    %c2_289 = arith.constant 2 : index
    %c0_290 = arith.constant 0 : index
    %c0_291 = arith.constant 0 : index
    %216 = vector.load %arg5[%c1_288, %c2_289, %c0_290, %c0_291] : memref<3x3x4x4xf32, #tpu.memory_space<vmem>>, vector<1x1x4x4xf32>
    %217 = vector.shape_cast %216 : vector<1x1x4x4xf32> to vector<4x4xf32>
    %cst_292 = arith.constant dense<0.000000e+00> : vector<128x4xf32>
    %218 = tpu.matmul %215, %217, %cst_292 {dimension_numbers = #tpu.dot_dimension_numbers<[1], [0], [0], [1], [0, 0, 1, 1], [], []>} : vector<128x4xf32>, vector<4x4xf32>, vector<128x4xf32> -> vector<128x4xf32>
    %219 = vector.shape_cast %218 : vector<128x4xf32> to vector<8x16x4xf32>
    %220 = arith.addf %214, %219 : vector<8x16x4xf32>
    %c0_293 = arith.constant 0 : index
    %c0_294 = arith.constant 0 : index
    %c0_295 = arith.constant 0 : index
    %221 = vector.load %arg11[%c0_293, %c0_294, %c0_295] : memref<8x16x4xf32, #tpu.memory_space<vmem>>, vector<8x16x4xf32>
    tpu.vector_store %arg11[%c0_293, %c0_294, %c0_295], %220 {strides = array<i32>} : memref<8x16x4xf32, #tpu.memory_space<vmem>>, vector<8x16x4xf32>,
    %c2_296 = arith.constant 2 : index
    %c0_297 = arith.constant 0 : index
    %c0_298 = arith.constant 0 : index
    %222 = vector.load %arg9[%c2_296, %c0_297, %c0_298] : memref<10x18x4xf32, #tpu.memory_space<vmem>>, vector<8x16x4xf32>
    %c0_299 = arith.constant 0 : index
    %c0_300 = arith.constant 0 : index
    %c0_301 = arith.constant 0 : index
    %223 = vector.load %arg11[%c0_299, %c0_300, %c0_301] : memref<8x16x4xf32, #tpu.memory_space<vmem>>, vector<8x16x4xf32>
    %224 = vector.shape_cast %222 : vector<8x16x4xf32> to vector<128x4xf32>
    %c2_302 = arith.constant 2 : index
    %c0_303 = arith.constant 0 : index
    %c0_304 = arith.constant 0 : index
    %c0_305 = arith.constant 0 : index
    %225 = vector.load %arg5[%c2_302, %c0_303, %c0_304, %c0_305] : memref<3x3x4x4xf32, #tpu.memory_space<vmem>>, vector<1x1x4x4xf32>
    %226 = vector.shape_cast %225 : vector<1x1x4x4xf32> to vector<4x4xf32>
    %cst_306 = arith.constant dense<0.000000e+00> : vector<128x4xf32>
    %227 = tpu.matmul %224, %226, %cst_306 {dimension_numbers = #tpu.dot_dimension_numbers<[1], [0], [0], [1], [0, 0, 1, 1], [], []>} : vector<128x4xf32>, vector<4x4xf32>, vector<128x4xf32> -> vector<128x4xf32>
    %228 = vector.shape_cast %227 : vector<128x4xf32> to vector<8x16x4xf32>
    %229 = arith.addf %223, %228 : vector<8x16x4xf32>
    %c0_307 = arith.constant 0 : index
    %c0_308 = arith.constant 0 : index
    %c0_309 = arith.constant 0 : index
    %230 = vector.load %arg11[%c0_307, %c0_308, %c0_309] : memref<8x16x4xf32, #tpu.memory_space<vmem>>, vector<8x16x4xf32>
    tpu.vector_store %arg11[%c0_307, %c0_308, %c0_309], %229 {strides = array<i32>} : memref<8x16x4xf32, #tpu.memory_space<vmem>>, vector<8x16x4xf32>,
    %c2_310 = arith.constant 2 : index
    %c1_311 = arith.constant 1 : index
    %c0_312 = arith.constant 0 : index
    %231 = vector.load %arg9[%c2_310, %c1_311, %c0_312] : memref<10x18x4xf32, #tpu.memory_space<vmem>>, vector<8x16x4xf32>
    %c0_313 = arith.constant 0 : index
    %c0_314 = arith.constant 0 : index
    %c0_315 = arith.constant 0 : index
    %232 = vector.load %arg11[%c0_313, %c0_314, %c0_315] : memref<8x16x4xf32, #tpu.memory_space<vmem>>, vector<8x16x4xf32>
    %233 = vector.shape_cast %231 : vector<8x16x4xf32> to vector<128x4xf32>
    %c2_316 = arith.constant 2 : index
    %c1_317 = arith.constant 1 : index
    %c0_318 = arith.constant 0 : index
    %c0_319 = arith.constant 0 : index
    %234 = vector.load %arg5[%c2_316, %c1_317, %c0_318, %c0_319] : memref<3x3x4x4xf32, #tpu.memory_space<vmem>>, vector<1x1x4x4xf32>
    %235 = vector.shape_cast %234 : vector<1x1x4x4xf32> to vector<4x4xf32>
    %cst_320 = arith.constant dense<0.000000e+00> : vector<128x4xf32>
    %236 = tpu.matmul %233, %235, %cst_320 {dimension_numbers = #tpu.dot_dimension_numbers<[1], [0], [0], [1], [0, 0, 1, 1], [], []>} : vector<128x4xf32>, vector<4x4xf32>, vector<128x4xf32> -> vector<128x4xf32>
    %237 = vector.shape_cast %236 : vector<128x4xf32> to vector<8x16x4xf32>
    %238 = arith.addf %232, %237 : vector<8x16x4xf32>
    %c0_321 = arith.constant 0 : index
    %c0_322 = arith.constant 0 : index
    %c0_323 = arith.constant 0 : index
    %239 = vector.load %arg11[%c0_321, %c0_322, %c0_323] : memref<8x16x4xf32, #tpu.memory_space<vmem>>, vector<8x16x4xf32>
    tpu.vector_store %arg11[%c0_321, %c0_322, %c0_323], %238 {strides = array<i32>} : memref<8x16x4xf32, #tpu.memory_space<vmem>>, vector<8x16x4xf32>,
    %c2_324 = arith.constant 2 : index
    %c2_325 = arith.constant 2 : index
    %c0_326 = arith.constant 0 : index
    %240 = vector.load %arg9[%c2_324, %c2_325, %c0_326] : memref<10x18x4xf32, #tpu.memory_space<vmem>>, vector<8x16x4xf32>
    %c0_327 = arith.constant 0 : index
    %c0_328 = arith.constant 0 : index
    %c0_329 = arith.constant 0 : index
    %241 = vector.load %arg11[%c0_327, %c0_328, %c0_329] : memref<8x16x4xf32, #tpu.memory_space<vmem>>, vector<8x16x4xf32>
    %242 = vector.shape_cast %240 : vector<8x16x4xf32> to vector<128x4xf32>
    %c2_330 = arith.constant 2 : index
    %c2_331 = arith.constant 2 : index
    %c0_332 = arith.constant 0 : index
    %c0_333 = arith.constant 0 : index
    %243 = vector.load %arg5[%c2_330, %c2_331, %c0_332, %c0_333] : memref<3x3x4x4xf32, #tpu.memory_space<vmem>>, vector<1x1x4x4xf32>
    %244 = vector.shape_cast %243 : vector<1x1x4x4xf32> to vector<4x4xf32>
    %cst_334 = arith.constant dense<0.000000e+00> : vector<128x4xf32>
    %245 = tpu.matmul %242, %244, %cst_334 {dimension_numbers = #tpu.dot_dimension_numbers<[1], [0], [0], [1], [0, 0, 1, 1], [], []>} : vector<128x4xf32>, vector<4x4xf32>, vector<128x4xf32> -> vector<128x4xf32>
    %246 = vector.shape_cast %245 : vector<128x4xf32> to vector<8x16x4xf32>
    %247 = arith.addf %241, %246 : vector<8x16x4xf32>
    %c0_335 = arith.constant 0 : index
    %c0_336 = arith.constant 0 : index
    %c0_337 = arith.constant 0 : index
    %248 = vector.load %arg11[%c0_335, %c0_336, %c0_337] : memref<8x16x4xf32, #tpu.memory_space<vmem>>, vector<8x16x4xf32>
    tpu.vector_store %arg11[%c0_335, %c0_336, %c0_337], %247 {strides = array<i32>} : memref<8x16x4xf32, #tpu.memory_space<vmem>>, vector<8x16x4xf32>,
    %c0_338 = arith.constant 0 : index
    %249 = arith.index_cast %0 : i32 to index
    %c0_339 = arith.constant 0 : index
    %c0_340 = arith.constant 0 : index
    %250 = vector.load %arg2[%c0_338, %249, %c0_339, %c0_340] : memref<1x16x16x4xf32, #tpu.memory_space<vmem>>, vector<1x8x16x4xf32>
    %251 = vector.shape_cast %250 : vector<1x8x16x4xf32> to vector<8x16x4xf32>
    %c0_341 = arith.constant 0 : index
    %c0_342 = arith.constant 0 : index
    %c0_343 = arith.constant 0 : index
    %252 = vector.load %arg11[%c0_341, %c0_342, %c0_343] : memref<8x16x4xf32, #tpu.memory_space<vmem>>, vector<8x16x4xf32>
    %253 = arith.addf %251, %252 : vector<8x16x4xf32>
    %254 = math.tanh %253 : vector<8x16x4xf32>
    %c0_344 = arith.constant 0 : index
    %c0_345 = arith.constant 0 : index
    %c0_346 = arith.constant 0 : index
    %c0_347 = arith.constant 0 : index
    %255 = vector.load %arg7[%c0_344, %c0_345, %c0_346, %c0_347] : memref<1x8x16x4xf32, #tpu.memory_space<vmem>>, vector<1x8x16x4xf32>
    %256 = vector.shape_cast %255 : vector<1x8x16x4xf32> to vector<8x16x4xf32>
    %257 = vector.shape_cast %254 : vector<8x16x4xf32> to vector<1x8x16x4xf32>
    tpu.vector_store %arg7[%c0_344, %c0_345, %c0_346, %c0_347], %257 {strides = array<i32>} : memref<1x8x16x4xf32, #tpu.memory_space<vmem>>, vector<1x8x16x4xf32>,
    return
  }
  func.func @transform_0(%arg0: i32, %arg1: i32) -> (i32, i32, i32, i32) {
    %c0_i32 = arith.constant 0 : i32
    %c0_i32_0 = arith.constant 0 : i32
    %c0_i32_1 = arith.constant 0 : i32
    %c0_i32_2 = arith.constant 0 : i32
    return %arg0, %c0_i32, %c0_i32_0, %c0_i32_1 : i32, i32, i32, i32
  }
  func.func @transform_1(%arg0: i32, %arg1: i32) -> (i32, i32, i32, i32) {
    %c0_i32 = arith.constant 0 : i32
    %c0_i32_0 = arith.constant 0 : i32
    %c0_i32_1 = arith.constant 0 : i32
    %c0_i32_2 = arith.constant 0 : i32
    %c0_i32_3 = arith.constant 0 : i32
    return %c0_i32, %c0_i32_0, %c0_i32_1, %c0_i32_2 : i32, i32, i32, i32
  }
  func.func @transform_2(%arg0: i32, %arg1: i32) -> (i32, i32) {
    %c0_i32 = arith.constant 0 : i32
    %c0_i32_0 = arith.constant 0 : i32
    %c0_i32_1 = arith.constant 0 : i32
    return %c0_i32, %c0_i32_0 : i32, i32
  }
  func.func @transform_3(%arg0: i32, %arg1: i32) -> (i32, i32, i32, i32) {
    %c0_i32 = arith.constant 0 : i32
    %c0_i32_0 = arith.constant 0 : i32
    %c0_i32_1 = arith.constant 0 : i32
    %c0_i32_2 = arith.constant 0 : i32
    %c0_i32_3 = arith.constant 0 : i32
    return %c0_i32, %c0_i32_0, %c0_i32_1, %c0_i32_2 : i32, i32, i32, i32
  }
  func.func @transform_4(%arg0: i32, %arg1: i32) -> (i32, i32) {
    %c0_i32 = arith.constant 0 : i32
    %c0_i32_0 = arith.constant 0 : i32
    %c0_i32_1 = arith.constant 0 : i32
    return %c0_i32, %c0_i32_0 : i32, i32
  }
  func.func @transform_5(%arg0: i32, %arg1: i32) -> (i32, i32, i32, i32) {
    %c0_i32 = arith.constant 0 : i32
    %c0_i32_0 = arith.constant 0 : i32
    %c0_i32_1 = arith.constant 0 : i32
    return %arg0, %arg1, %c0_i32, %c0_i32_0 : i32, i32, i32, i32
  }
}

</mosaic_0001>

<llo_original>
// kernel: tpu_custom_call.1
$region0: #{tpu_custom_call.1}
  #allocation0 [shape = 'u32[]', space=smem, size = 0x4, offset = 0x4, fixed_abs, tag = 'smem constant byte address 0x4 - core index']
  #allocation1 [shape = 'u32[72,128]{1,0:T(1,128)}', space=vmem, size = 0x9000, scoped, tag = 'internal scratch']
  #allocation2 [shape = 'f32[12,18,4]{2,1,0:T(8,128)}', space=vmem, size = 0x24000, scoped, tag = 'scratch operand']
  #allocation3 [shape = 'f32[10,18,4]{2,1,0:T(8,128)}', space=vmem, size = 0x1e000, scoped, tag = 'scratch operand']
  #allocation4 [shape = 'f32[10,16,4]{2,1,0:T(8,128)}', space=vmem, size = 0x14000, scoped, tag = 'scratch operand']
  #allocation5 [shape = 'f32[8,16,4]{2,1,0:T(8,128)}', space=vmem, size = 0x10000, scoped, tag = 'scratch operand']
  %s0 = inlined_call_operand.vmem [shape: f32[2,16,16,4], index: 0, kind: input, shape index: {}]
  %s1 = inlined_call_operand.vmem [shape: f32[3,3,4,4], index: 1, kind: input, shape index: {}]
  %s2 = inlined_call_operand.vmem [shape: f32[1,4], index: 2, kind: input, shape index: {}]
  %s3 = inlined_call_operand.vmem [shape: f32[3,3,4,4], index: 3, kind: input, shape index: {}]
  %s4 = inlined_call_operand.vmem [shape: f32[1,4], index: 4, kind: input, shape index: {}]
  %s5 = inlined_call_operand.vmem [shape: f32[2,16,16,4], index: 5, kind: output, shape index: {}]
  %s6 = sld [smem:[#allocation0]]
  $region61: #{tpu_custom_call.1} parent=0
    _
  %s8 = ssub.s32 1, %s6
  %s9 = scalar_select 0, %s8, %s6
  loop: start=0, step=1, limit=6
  $region2: #{tpu_custom_call.1} parent=0 // loop_pre_header
    _
  $region3: #{tpu_custom_call.1} parent=0 // loop_header
    %s11 = sphi 0, %s15
    %p12 = scmp.ge.s32.totalorder %s11, 6
    %s18 = sphi 0, %s30
    %s19 = sphi 0, %s26
    %s20 = sphi 0, %s18
    %s21 = sphi 0, %s19
    %s22 = sphi 0, %s20
    %s23 = sphi 0, %s21
    %s33 = sphi 0, %s35
    %s36 = sphi 0, %s33
    %s37 = sphi 0, %s36
    %s53 = sphi 0, %s37
    %s57 = sphi 0, %s57
    %s59 = sphi 0, %s57
    %s60 = sphi 0, %s59
    %s74 = sphi 0, %s60
    %s78 = sphi 0, %s78
    %s80 = sphi 0, %s78
    %s81 = sphi 0, %s80
    %s95 = sphi 0, %s81
    %s99 = sphi 0, %s99
    %s101 = sphi 0, %s99
    %s102 = sphi 0, %s101
    %s116 = sphi 0, %s102
    %s120 = sphi 0, %s120
    %s122 = sphi 0, %s120
    %s123 = sphi 0, %s122
    %s137 = sphi 0, %s123
    %s145 = sphi 0, %s147
    %s148 = sphi 0, %s145
    %s149 = sphi 0, %s148
    %s165 = sphi 0, %s149
  $region4: #{tpu_custom_call.1} parent=0 // loop_header_branch
    %14 = sbr.rel (%p12) target = $region8
  $region5: #{tpu_custom_call.1} parent=0 // loop_body
    %s16 = ssub.s32 %s11, 1
    %s17 = ssub.s32 %s11, 2
    %s24 = sadd.s32 1, %s19
    %p25 = scmp.ge.s32.totalorder %s24, 2
    %s26 = scalar_select %p25, 0, %s24
    %s27 = sadd.s32 1, %s18
    %s28 = scalar_select %p25, %s27, %s18
    %p29 = scmp.ge.s32.totalorder %s28, 2
    %s30 = scalar_select %p29, 0, %s28
    %s31 = ssub.s32 %s18, %s30
    %p32 = scmp.eq.s32.totalorder %s31, 0
    %s34 = sadd.s32 %s33, 1
    %s35 = scalar_select %p32, %s33, %s34
    %p38 = pneg %p32
    %p39 = scmp.eq.s32.totalorder %s11, 3
    %p40 = por %p38, %p39
    %p41 = scmp.ne.s32.totalorder %s33, %s36
    %p42 = scmp.eq.s32.totalorder %s11, 0
    %p43 = por %p41, %p42
    %p44 = scmp.ne.s32.totalorder %s33, %s36
    %p45 = scmp.eq.s32.totalorder %s16, 3
    %p46 = por %p44, %p45
    %p47 = scmp.ne.s32.totalorder %s36, %s37
    %p48 = scmp.eq.s32.totalorder %s16, 0
    %p49 = por %p47, %p48
    %p50 = scmp.ne.s32.totalorder %s36, %s37
    %p51 = scmp.eq.s32.totalorder %s17, 3
    %p52 = por %p50, %p51
    %p54 = scmp.ne.s32.totalorder %s37, %s53
    %p55 = scmp.eq.s32.totalorder %s17, 0
    %p56 = por %p54, %p55
    %s58 = sadd.s32 %s57, 1
    %p61 = scmp.eq.s32.totalorder %s11, 3
    %p62 = scmp.ne.s32.totalorder %s57, %s59
    %p63 = scmp.eq.s32.totalorder %s11, 0
    %p64 = por %p62, %p63
    %p65 = scmp.ne.s32.totalorder %s57, %s59
    %p66 = scmp.eq.s32.totalorder %s16, 3
    %p67 = por %p65, %p66
    %p68 = scmp.ne.s32.totalorder %s59, %s60
    %p69 = scmp.eq.s32.totalorder %s16, 0
    %p70 = por %p68, %p69
    %p71 = scmp.ne.s32.totalorder %s59, %s60
    %p72 = scmp.eq.s32.totalorder %s17, 3
    %p73 = por %p71, %p72
    %p75 = scmp.ne.s32.totalorder %s60, %s74
    %p76 = scmp.eq.s32.totalorder %s17, 0
    %p77 = por %p75, %p76
    %s79 = sadd.s32 %s78, 1
    %p82 = scmp.eq.s32.totalorder %s11, 3
    %p83 = scmp.ne.s32.totalorder %s78, %s80
    %p84 = scmp.eq.s32.totalorder %s11, 0
    %p85 = por %p83, %p84
    %p86 = scmp.ne.s32.totalorder %s78, %s80
    %p87 = scmp.eq.s32.totalorder %s16, 3
    %p88 = por %p86, %p87
    %p89 = scmp.ne.s32.totalorder %s80, %s81
    %p90 = scmp.eq.s32.totalorder %s16, 0
    %p91 = por %p89, %p90
    %p92 = scmp.ne.s32.totalorder %s80, %s81
    %p93 = scmp.eq.s32.totalorder %s17, 3
    %p94 = por %p92, %p93
    %p96 = scmp.ne.s32.totalorder %s81, %s95
    %p97 = scmp.eq.s32.totalorder %s17, 0
    %p98 = por %p96, %p97
    %s100 = sadd.s32 %s99, 1
    %p103 = scmp.eq.s32.totalorder %s11, 3
    %p104 = scmp.ne.s32.totalorder %s99, %s101
    %p105 = scmp.eq.s32.totalorder %s11, 0
    %p106 = por %p104, %p105
    %p107 = scmp.ne.s32.totalorder %s99, %s101
    %p108 = scmp.eq.s32.totalorder %s16, 3
    %p109 = por %p107, %p108
    %p110 = scmp.ne.s32.totalorder %s101, %s102
    %p111 = scmp.eq.s32.totalorder %s16, 0
    %p112 = por %p110, %p111
    %p113 = scmp.ne.s32.totalorder %s101, %s102
    %p114 = scmp.eq.s32.totalorder %s17, 3
    %p115 = por %p113, %p114
    %p117 = scmp.ne.s32.totalorder %s102, %s116
    %p118 = scmp.eq.s32.totalorder %s17, 0
    %p119 = por %p117, %p118
    %s121 = sadd.s32 %s120, 1
    %p124 = scmp.eq.s32.totalorder %s11, 3
    %p125 = scmp.ne.s32.totalorder %s120, %s122
    %p126 = scmp.eq.s32.totalorder %s11, 0
    %p127 = por %p125, %p126
    %p128 = scmp.ne.s32.totalorder %s120, %s122
    %p129 = scmp.eq.s32.totalorder %s16, 3
    %p130 = por %p128, %p129
    %p131 = scmp.ne.s32.totalorder %s122, %s123
    %p132 = scmp.eq.s32.totalorder %s16, 0
    %p133 = por %p131, %p132
    %p134 = scmp.ne.s32.totalorder %s122, %s123
    %p135 = scmp.eq.s32.totalorder %s17, 3
    %p136 = por %p134, %p135
    %p138 = scmp.ne.s32.totalorder %s123, %s137
    %p139 = scmp.eq.s32.totalorder %s17, 0
    %p140 = por %p138, %p139
    %s141 = ssub.s32 %s18, %s30
    %s142 = ssub.s32 %s19, %s26
    %s143 = sor.u32 %s141, %s142
    %p144 = scmp.eq.s32.totalorder %s143, 0
    %s146 = sadd.s32 %s145, 1
    %s147 = scalar_select %p144, %s145, %s146
    %p150 = pneg %p144
    %p151 = scmp.eq.s32.totalorder %s11, 3
    %p152 = por %p150, %p151
    %p153 = scmp.ne.s32.totalorder %s145, %s148
    %p154 = scmp.eq.s32.totalorder %s11, 0
    %p155 = por %p153, %p154
    %p156 = scmp.ne.s32.totalorder %s145, %s148
    %p157 = scmp.eq.s32.totalorder %s16, 3
    %p158 = por %p156, %p157
    %p159 = scmp.ne.s32.totalorder %s148, %s149
    %p160 = scmp.eq.s32.totalorder %s16, 0
    %p161 = por %p159, %p160
    %p162 = scmp.ne.s32.totalorder %s148, %s149
    %p163 = scmp.eq.s32.totalorder %s17, 3
    %p164 = por %p162, %p163
    %p166 = scmp.ne.s32.totalorder %s149, %s165
    %p167 = scmp.eq.s32.totalorder %s17, 0
    %p168 = por %p166, %p167
    %p169 = scmp.le.s32.totalorder 1, %s11
    %p170 = scmp.lt.s32.totalorder %s11, 5
    %p171 = pnand %p169, %p170
    %p172 = pneg %p171
    // Predicated region
    $region9: #{tpu_custom_call.1} parent=5 // pred_check
      _
    $region10: #{tpu_custom_call.1} parent=5 // pred_check_branch
      %174 = sbr.rel (%p171) target = $region12
    $region11: #{tpu_custom_call.1} parent=5 // pred_region
      %s175 = ssub.s32 %s11, 1
      // Predicated region
      $region13: #{tpu_custom_call.1} parent=11 // pred_check
        %p176 = pneg %p70
      $region14: #{tpu_custom_call.1} parent=11 // pred_check_branch
        %178 = sbr.rel (%p176) target = $region16
      $region15: #{tpu_custom_call.1} parent=11 // pred_region
        _
      $region16: #{tpu_custom_call.1} parent=11 // pred_fallthru
        _
      // Predicated region
      $region17: #{tpu_custom_call.1} parent=11 // pred_check
        %p179 = pneg %p91
      $region18: #{tpu_custom_call.1} parent=11 // pred_check_branch
        %181 = sbr.rel (%p179) target = $region20
      $region19: #{tpu_custom_call.1} parent=11 // pred_region
        _
      $region20: #{tpu_custom_call.1} parent=11 // pred_fallthru
        _
      // Predicated region
      $region21: #{tpu_custom_call.1} parent=11 // pred_check
        %p182 = pneg %p112
      $region22: #{tpu_custom_call.1} parent=11 // pred_check_branch
        %184 = sbr.rel (%p182) target = $region24
      $region23: #{tpu_custom_call.1} parent=11 // pred_region
        _
      $region24: #{tpu_custom_call.1} parent=11 // pred_fallthru
        _
      // Predicated region
      $region25: #{tpu_custom_call.1} parent=11 // pred_check
        %p185 = pneg %p133
      $region26: #{tpu_custom_call.1} parent=11 // pred_check_branch
        %187 = sbr.rel (%p185) target = $region28
      $region27: #{tpu_custom_call.1} parent=11 // pred_region
        _
      $region28: #{tpu_custom_call.1} parent=11 // pred_fallthru
        _
    $region12: #{tpu_custom_call.1} parent=5 // pred_fallthru
      _
    %p188 = scmp.lt.s32.totalorder %s11, 4
    // Predicated region
    $region29: #{tpu_custom_call.1} parent=5 // pred_check
      %p189 = pneg %p188
    $region30: #{tpu_custom_call.1} parent=5 // pred_check_branch
      %191 = sbr.rel (%p189) target = $region32
    $region31: #{tpu_custom_call.1} parent=5 // pred_region
      // Predicated region
      $region33: #{tpu_custom_call.1} parent=31 // pred_check
        %p192 = pneg %p43
      $region34: #{tpu_custom_call.1} parent=31 // pred_check_branch
        %194 = sbr.rel (%p192) target = $region36
      $region35: #{tpu_custom_call.1} parent=31 // pred_region
        %p195 = scmp.lt.s32.totalorder %s18, 1
        %s196 = scalar_select %p195, %s18, 1
        %s197 = smul.addr %s196, 32
        %s198 = smul.addr %s197, 8
        %s199 = scalar_lea.vmem %s0, %s198
      $region36: #{tpu_custom_call.1} parent=31 // pred_fallthru
        _
    $region32: #{tpu_custom_call.1} parent=5 // pred_fallthru
      _
    %p200 = scmp.le.s32.totalorder 1, %s11
    %p201 = scmp.lt.s32.totalorder %s11, 5
    %p202 = pnand %p200, %p201
    %p203 = pneg %p202
    // Predicated region
    $region37: #{tpu_custom_call.1} parent=5 // pred_check
      _
    $region38: #{tpu_custom_call.1} parent=5 // pred_check_branch
      %205 = sbr.rel (%p202) target = $region40
    $region39: #{tpu_custom_call.1} parent=5 // pred_region
      %s206 = ssub.s32 %s11, 1
      %p207 = scmp.lt.s32.totalorder %s20, 1
      %s208 = scalar_select %p207, %s20, 1
      %s209 = smul.addr %s208, 32
      %s210 = smul.addr %s209, 8
      %s211 = scalar_lea.vmem %s0, %s210
      %p212 = pneg %p49
      %p213 = pneg %p46
      %p214 = pneg %p70
      %p215 = pneg %p67
      %p216 = pneg %p91
      %p217 = pneg %p88
      %p218 = pneg %p112
      %p219 = pneg %p109
      %p220 = pneg %p133
      %p221 = pneg %p130
      %p222 = pneg %p161
      %p223 = pneg %p158
      %s224 = smul.u32 8, %s21
      %p225 = scmp.lt.s32.totalorder %s20, 1
      %s226 = scalar_select %p225, %s20, 1
      %p227 = scmp.lt.s32.totalorder %s224, 15
      %s228 = scalar_select %p227, %s224, 15
      %s229 = smul.addr %s228, 2
      %s230 = smul.addr %s226, 32
      %s231 = sadd.s32 %s229, %s230
      %s232 = smul.addr %s231, 8
      %s233 = scalar_lea.vmem %s5, %s232
      %p234 = scmp.lt.s32.totalorder %s20, 1
      %s235 = scalar_select %p234, %s20, 1
      %s236 = smul.addr %s235, 32
      %s237 = smul.addr %s236, 8
      %s238 = scalar_lea.vmem %s0, %s237
      %s239 = smul.u32 8, %s21
      %p240 = scmp.lt.s32.totalorder %s20, 1
      %s241 = scalar_select %p240, %s20, 1
      %p242 = scmp.lt.s32.totalorder %s239, 15
      %s243 = scalar_select %p242, %s239, 15
      %s244 = smul.addr %s243, 2
      %s245 = smul.addr %s241, 32
      %s246 = sadd.s32 %s244, %s245
      %s247 = smul.addr %s246, 8
      %s248 = scalar_lea.vmem %s5, %s247
      %s249 = smul.u32 8, %s21
      %s250 = smul.u32 %s21, 8
      %vm251 = vcmask 24576
      %252 = vst.msk [vmem:[#allocation2] sm:$0x1] %vm251, 0.0
      %253 = vst.msk [vmem:[#allocation2 + $0x18] sm:$0x1] %vm251, 0.0
      %254 = vst.msk [vmem:[#allocation2 + $0x30] sm:$0x1] %vm251, 0.0
      %255 = vst.msk [vmem:[#allocation2 + $0x48] sm:$0x1] %vm251, 0.0
      %256 = vst.msk [vmem:[#allocation2 + $0x60] sm:$0x1] %vm251, 0.0
      %257 = vst.msk [vmem:[#allocation2 + $0x78] sm:$0x1] %vm251, 0.0
      %258 = vst.msk [vmem:[#allocation2 + $0x90] sm:$0x1] %vm251, 0.0
      %259 = vst.msk [vmem:[#allocation2 + $0xa8] sm:$0x1] %vm251, 0.0
      %260 = vst.msk [vmem:[#allocation2 + $0xc0] sm:$0x1] %vm251, 0.0
      %261 = vst.msk [vmem:[#allocation2 + $0xd8] sm:$0x1] %vm251, 0.0
      %262 = vst.msk [vmem:[#allocation2 + $0xf0] sm:$0x1] %vm251, 0.0
      %263 = vst.msk [vmem:[#allocation2 + $0x108] sm:$0x1] %vm251, 0.0
      %264 = vst.msk [vmem:[#allocation2 + $0x11] sm:$0x1] %vm251, 0.0
      %265 = vst.msk [vmem:[#allocation2 + $0x29] sm:$0x1] %vm251, 0.0
      %266 = vst.msk [vmem:[#allocation2 + $0x41] sm:$0x1] %vm251, 0.0
      %267 = vst.msk [vmem:[#allocation2 + $0x59] sm:$0x1] %vm251, 0.0
      %268 = vst.msk [vmem:[#allocation2 + $0x71] sm:$0x1] %vm251, 0.0
      %269 = vst.msk [vmem:[#allocation2 + $0x89] sm:$0x1] %vm251, 0.0
      %270 = vst.msk [vmem:[#allocation2 + $0xa1] sm:$0x1] %vm251, 0.0
      %271 = vst.msk [vmem:[#allocation2 + $0xb9] sm:$0x1] %vm251, 0.0
      %272 = vst.msk [vmem:[#allocation2 + $0xd1] sm:$0x1] %vm251, 0.0
      %273 = vst.msk [vmem:[#allocation2 + $0xe9] sm:$0x1] %vm251, 0.0
      %274 = vst.msk [vmem:[#allocation2 + $0x101] sm:$0x1] %vm251, 0.0
      %275 = vst.msk [vmem:[#allocation2 + $0x119] sm:$0x1] %vm251, 0.0
      %s276 = smul.u32 %s250, 16
      %s277 = scalar_lea.vmem %s238, %s276
      %v278 = vld [vmem:[%s277] sm:$0xff]
      %v279 = vld [vmem:[%s277 + $0x8] sm:$0xff]
      %v280 = vld [vmem:[%s277 + $0x10] sm:$0xff]
      %v281 = vld [vmem:[%s277 + $0x18] sm:$0xff]
      %v282 = vld [vmem:[%s277 + $0x20] sm:$0xff]
      %v283 = vld [vmem:[%s277 + $0x28] sm:$0xff]
      %v284 = vld [vmem:[%s277 + $0x30] sm:$0xff]
      %v285 = vld [vmem:[%s277 + $0x38] sm:$0xff]
      %v286 = vld [vmem:[%s277 + $0x40] sm:$0xff]
      %v287 = vld [vmem:[%s277 + $0x48] sm:$0xff]
      %v288 = vld [vmem:[%s277 + $0x50] sm:$0xff]
      %v289 = vld [vmem:[%s277 + $0x58] sm:$0xff]
      %v290 = vld [vmem:[%s277 + $0x60] sm:$0xff]
      %v291 = vld [vmem:[%s277 + $0x68] sm:$0xff]
      %v292 = vld [vmem:[%s277 + $0x70] sm:$0xff]
      %v293 = vld [vmem:[%s277 + $0x78] sm:$0xff]
      %s294 = scalar_lea.vmem [#allocation2], 48
      %vm295 = vcmask 31744
      %296 = vst.msk [vmem:[%s294 + $0x1] sm:$0xff] %vm295, %v278
      %297 = vst.msk [vmem:[%s294 + $0x9] sm:$0xff] %vm295, %v279
      %298 = vst.msk [vmem:[%s294 + $0x19] sm:$0xff] %vm295, %v280
      %299 = vst.msk [vmem:[%s294 + $0x21] sm:$0xff] %vm295, %v281
      %300 = vst.msk [vmem:[%s294 + $0x31] sm:$0xff] %vm295, %v282
      %301 = vst.msk [vmem:[%s294 + $0x39] sm:$0xff] %vm295, %v283
      %302 = vst.msk [vmem:[%s294 + $0x49] sm:$0xff] %vm295, %v284
      %303 = vst.msk [vmem:[%s294 + $0x51] sm:$0xff] %vm295, %v285
      %304 = vst.msk [vmem:[%s294 + $0x61] sm:$0xff] %vm295, %v286
      %305 = vst.msk [vmem:[%s294 + $0x69] sm:$0xff] %vm295, %v287
      %306 = vst.msk [vmem:[%s294 + $0x79] sm:$0xff] %vm295, %v288
      %307 = vst.msk [vmem:[%s294 + $0x81] sm:$0xff] %vm295, %v289
      %308 = vst.msk [vmem:[%s294 + $0x91] sm:$0xff] %vm295, %v290
      %309 = vst.msk [vmem:[%s294 + $0x99] sm:$0xff] %vm295, %v291
      %310 = vst.msk [vmem:[%s294 + $0xa9] sm:$0xff] %vm295, %v292
      %311 = vst.msk [vmem:[%s294 + $0xb1] sm:$0xff] %vm295, %v293
      %s312 = ssub.s32 %s250, 2
      %p313 = scmp.ge.s32.totalorder %s312, 0
      %p314 = scmp.lt.s32.totalorder %s312, 16
      %p315 = pnand %p313, %p314
      %p316 = pneg %p315
      %p317 = scmp.gt.s32.totalorder %s312, 0
      %s318 = scalar_select %p317, %s312, 0
      %p319 = scmp.lt.s32.totalorder %s318, 15
      %s320 = scalar_select %p319, %s318, 15
      %s321 = smul.u32 %s320, 16
      %s322 = scalar_lea.vmem %s238, %s321
      %v323 = vld [vmem:[%s322] sm:$0xff]
      %v324 = vld [vmem:[%s322 + $0x8] sm:$0xff]
      %s325 = scalar_select %p316, 1, 0
      %v326 = vstv %s325
      %vm327 = vcmp.eq.s32.totalorder %v326, 1
      %v328 = vsel %vm327, %v323, 0.0
      %v329 = vsel %vm327, %v324, 0.0
      %330 = vst.msk [vmem:[#allocation2 + $0x1] sm:$0xff] %vm295, %v328
      %331 = vst.msk [vmem:[#allocation2 + $0x9] sm:$0xff] %vm295, %v329
      %s332 = ssub.s32 %s250, 1
      %p333 = scmp.ge.s32.totalorder %s332, 0
      %p334 = scmp.lt.s32.totalorder %s332, 16
      %p335 = pnand %p333, %p334
      %p336 = pneg %p335
      %p337 = scmp.gt.s32.totalorder %s332, 0
      %s338 = scalar_select %p337, %s332, 0
      %p339 = scmp.lt.s32.totalorder %s338, 15
      %s340 = scalar_select %p339, %s338, 15
      %s341 = smul.u32 %s340, 16
      %s342 = scalar_lea.vmem %s238, %s341
      %v343 = vld [vmem:[%s342] sm:$0xff]
      %v344 = vld [vmem:[%s342 + $0x8] sm:$0xff]
      %s345 = scalar_select %p336, 1, 0
      %v346 = vstv %s345
      %vm347 = vcmp.eq.s32.totalorder %v346, 1
      %v348 = vsel %vm347, %v343, 0.0
      %v349 = vsel %vm347, %v344, 0.0
      %s350 = scalar_lea.vmem [#allocation2], 24
      %351 = vst.msk [vmem:[%s350 + $0x1] sm:$0xff] %vm295, %v348
      %352 = vst.msk [vmem:[%s350 + $0x9] sm:$0xff] %vm295, %v349
      %s353 = sadd.s32 %s250, 8
      %p354 = scmp.ge.s32.totalorder %s353, 0
      %p355 = scmp.lt.s32.totalorder %s353, 16
      %p356 = pnand %p354, %p355
      %p357 = pneg %p356
      %p358 = scmp.gt.s32.totalorder %s353, 0
      %s359 = scalar_select %p358, %s353, 0
      %p360 = scmp.lt.s32.totalorder %s359, 15
      %s361 = scalar_select %p360, %s359, 15
      %s362 = smul.u32 %s361, 16
      %s363 = scalar_lea.vmem %s238, %s362
      %v364 = vld [vmem:[%s363] sm:$0xff]
      %v365 = vld [vmem:[%s363 + $0x8] sm:$0xff]
      %s366 = scalar_select %p357, 1, 0
      %v367 = vstv %s366
      %vm368 = vcmp.eq.s32.totalorder %v367, 1
      %v369 = vsel %vm368, %v364, 0.0
      %v370 = vsel %vm368, %v365, 0.0
      %s371 = scalar_lea.vmem [#allocation2], 240
      %372 = vst.msk [vmem:[%s371 + $0x1] sm:$0xff] %vm295, %v369
      %373 = vst.msk [vmem:[%s371 + $0x9] sm:$0xff] %vm295, %v370
      %s374 = sadd.s32 %s250, 9
      %p375 = scmp.ge.s32.totalorder %s374, 0
      %p376 = scmp.lt.s32.totalorder %s374, 16
      %p377 = pnand %p375, %p376
      %p378 = pneg %p377
      %p379 = scmp.gt.s32.totalorder %s374, 0
      %s380 = scalar_select %p379, %s374, 0
      %p381 = scmp.lt.s32.totalorder %s380, 15
      %s382 = scalar_select %p381, %s380, 15
      %s383 = smul.u32 %s382, 16
      %s384 = scalar_lea.vmem %s238, %s383
      %v385 = vld [vmem:[%s384] sm:$0xff]
      %v386 = vld [vmem:[%s384 + $0x8] sm:$0xff]
      %s387 = scalar_select %p378, 1, 0
      %v388 = vstv %s387
      %vm389 = vcmp.eq.s32.totalorder %v388, 1
      %v390 = vsel %vm389, %v385, 0.0
      %v391 = vsel %vm389, %v386, 0.0
      %s392 = scalar_lea.vmem [#allocation2], 264
      %393 = vst.msk [vmem:[%s392 + $0x1] sm:$0xff] %vm295, %v390
      %394 = vst.msk [vmem:[%s392 + $0x9] sm:$0xff] %vm295, %v391
      %v395 = vld [vmem:[%s2] sm:$0x1]
      %v397 = vperm.slane %v395, 0
      %399 = vst.msk [vmem:[#allocation4] sm:$0xff] %vm295, %v397
      %400 = vst.msk [vmem:[#allocation4 + $0x8] sm:$0xff] %vm295, %v397
      %401 = vst.msk [vmem:[#allocation4 + $0x10] sm:$0xff] %vm295, %v397
      %402 = vst.msk [vmem:[#allocation4 + $0x18] sm:$0xff] %vm295, %v397
      %403 = vst.msk [vmem:[#allocation4 + $0x20] sm:$0xff] %vm295, %v397
      %404 = vst.msk [vmem:[#allocation4 + $0x28] sm:$0xff] %vm295, %v397
      %405 = vst.msk [vmem:[#allocation4 + $0x30] sm:$0xff] %vm295, %v397
      %406 = vst.msk [vmem:[#allocation4 + $0x38] sm:$0xff] %vm295, %v397
      %407 = vst.msk [vmem:[#allocation4 + $0x40] sm:$0xff] %vm295, %v397
      %408 = vst.msk [vmem:[#allocation4 + $0x48] sm:$0xff] %vm295, %v397
      %409 = vst.msk [vmem:[#allocation4 + $0x50] sm:$0xff] %vm295, %v397
      %410 = vst.msk [vmem:[#allocation4 + $0x58] sm:$0xff] %vm295, %v397
      %411 = vst.msk [vmem:[#allocation4 + $0x60] sm:$0xff] %vm295, %v397
      %412 = vst.msk [vmem:[#allocation4 + $0x68] sm:$0xff] %vm295, %v397
      %413 = vst.msk [vmem:[#allocation4 + $0x70] sm:$0xff] %vm295, %v397
      %414 = vst.msk [vmem:[#allocation4 + $0x78] sm:$0xff] %vm295, %v397
      %415 = vst.msk [vmem:[#allocation4 + $0x80] sm:$0xff] %vm295, %v397
      %416 = vst.msk [vmem:[#allocation4 + $0x88] sm:$0xff] %vm295, %v397
      %417 = vst.msk [vmem:[#allocation4 + $0x90] sm:$0xff] %vm295, %v397
      %418 = vst.msk [vmem:[#allocation4 + $0x98] sm:$0xff] %vm295, %v397
      %v419 = vld [vmem:[#allocation2] sm:$0xff]
      %v420 = vld [vmem:[#allocation2 + $0x8] sm:$0xff]
      %v421 = vld [vmem:[#allocation2 + $0x18] sm:$0xff]
      %v422 = vld [vmem:[#allocation2 + $0x20] sm:$0xff]
      %v423 = vld [vmem:[#allocation2 + $0x30] sm:$0xff]
      %v424 = vld [vmem:[#allocation2 + $0x38] sm:$0xff]
      %v425 = vld [vmem:[#allocation2 + $0x48] sm:$0xff]
      %v426 = vld [vmem:[#allocation2 + $0x50] sm:$0xff]
      %v427 = vld [vmem:[#allocation2 + $0x60] sm:$0xff]
      %v428 = vld [vmem:[#allocation2 + $0x68] sm:$0xff]
      %v429 = vld [vmem:[#allocation2 + $0x78] sm:$0xff]
      %v430 = vld [vmem:[#allocation2 + $0x80] sm:$0xff]
      %v431 = vld [vmem:[#allocation2 + $0x90] sm:$0xff]
      %v432 = vld [vmem:[#allocation2 + $0x98] sm:$0xff]
      %v433 = vld [vmem:[#allocation2 + $0xa8] sm:$0xff]
      %v434 = vld [vmem:[#allocation2 + $0xb0] sm:$0xff]
      %v435 = vld [vmem:[#allocation2 + $0xc0] sm:$0xff]
      %v436 = vld [vmem:[#allocation2 + $0xc8] sm:$0xff]
      %v437 = vld [vmem:[#allocation2 + $0xd8] sm:$0xff]
      %v438 = vld [vmem:[#allocation2 + $0xe0] sm:$0xff]
      %v439 = vld [vmem:[#allocation4] sm:$0xff]
      %v440 = vld [vmem:[#allocation4 + $0x8] sm:$0xff]
      %v441 = vld [vmem:[#allocation4 + $0x10] sm:$0xff]
      %v442 = vld [vmem:[#allocation4 + $0x18] sm:$0xff]
      %v443 = vld [vmem:[#allocation4 + $0x20] sm:$0xff]
      %v444 = vld [vmem:[#allocation4 + $0x28] sm:$0xff]
      %v445 = vld [vmem:[#allocation4 + $0x30] sm:$0xff]
      %v446 = vld [vmem:[#allocation4 + $0x38] sm:$0xff]
      %v447 = vld [vmem:[#allocation4 + $0x40] sm:$0xff]
      %v448 = vld [vmem:[#allocation4 + $0x48] sm:$0xff]
      %v449 = vld [vmem:[#allocation4 + $0x50] sm:$0xff]
      %v450 = vld [vmem:[#allocation4 + $0x58] sm:$0xff]
      %v451 = vld [vmem:[#allocation4 + $0x60] sm:$0xff]
      %v452 = vld [vmem:[#allocation4 + $0x68] sm:$0xff]
      %v453 = vld [vmem:[#allocation4 + $0x70] sm:$0xff]
      %v454 = vld [vmem:[#allocation4 + $0x78] sm:$0xff]
      %v455 = vld [vmem:[#allocation4 + $0x80] sm:$0xff]
      %v456 = vld [vmem:[#allocation4 + $0x88] sm:$0xff]
      %v457 = vld [vmem:[#allocation4 + $0x90] sm:$0xff]
      %v458 = vld [vmem:[#allocation4 + $0x98] sm:$0xff]
      %v459 = vld [vmem:[%s1] sm:$0xf]
      %v461 = vsel %vm295, %v419, 0
      %v464 = vsel %vm295, %v420, 0
      %v467 = vsel %vm295, %v421, 0
      %v470 = vsel %vm295, %v422, 0
      %v473 = vsel %vm295, %v423, 0
      %v476 = vsel %vm295, %v424, 0
      %v479 = vsel %vm295, %v425, 0
      %v482 = vsel %vm295, %v426, 0
      %v485 = vsel %vm295, %v427, 0
      %v488 = vsel %vm295, %v428, 0
      %v491 = vsel %vm295, %v429, 0
      %v494 = vsel %vm295, %v430, 0
      %v497 = vsel %vm295, %v431, 0
      %v500 = vsel %vm295, %v432, 0
      %v503 = vsel %vm295, %v433, 0
      %v506 = vsel %vm295, %v434, 0
      %v509 = vsel %vm295, %v435, 0
      %v512 = vsel %vm295, %v436, 0
      %v515 = vsel %vm295, %v437, 0
      %v518 = vsel %vm295, %v438, 0
      %vm520 = vcmask 1043456
      %v522 = vsel %vm520, %v459, 0
      %524 = vmatpush.msra.mxu0 0.0
      %525 = vmatpush.msra.mxu0 0.0
      %526 = vmatpush.msra.mxu0 0.0
      %527 = vmatpush.msra.mxu0 0.0
      %528 = vmatpush.msra.mxu0 0.0
      %529 = vmatpush.msra.mxu0 0.0
      %530 = vmatpush.msra.mxu0 0.0
      %531 = vmatpush.msra.mxu0 0.0
      %532 = vmatpush.msra.mxu0 0.0
      %533 = vmatpush.msra.mxu0 0.0
      %534 = vmatpush.msra.mxu0 0.0
      %535 = vmatpush.msra.mxu0 0.0
      %536 = vmatpush.msra.mxu0 0.0
      %537 = vmatpush.msra.mxu0 0.0
      %538 = vmatpush.msra.mxu0 0.0
      %539 = vmatpush.msra.mxu0 %v522
      %540 = vmatmul.f32.gmra.mxu0 %v461
      %v541 = vpop.f32.mrf.mxu0
      %v542 = vadd.f32 0.0, %v541
      %543 = vmatmul.f32.gmra.mxu0 %v464
      %v544 = vpop.f32.mrf.mxu0
      %v545 = vadd.f32 0.0, %v544
      %546 = vmatmul.f32.gmra.mxu0 %v467
      %v547 = vpop.f32.mrf.mxu0
      %v548 = vadd.f32 0.0, %v547
      %549 = vmatmul.f32.gmra.mxu0 %v470
      %v550 = vpop.f32.mrf.mxu0
      %v551 = vadd.f32 0.0, %v550
      %552 = vmatmul.f32.gmra.mxu0 %v473
      %v553 = vpop.f32.mrf.mxu0
      %v554 = vadd.f32 0.0, %v553
      %555 = vmatmul.f32.gmra.mxu0 %v476
      %v556 = vpop.f32.mrf.mxu0
      %v557 = vadd.f32 0.0, %v556
      %558 = vmatmul.f32.gmra.mxu0 %v479
      %v559 = vpop.f32.mrf.mxu0
      %v560 = vadd.f32 0.0, %v559
      %561 = vmatmul.f32.gmra.mxu0 %v482
      %v562 = vpop.f32.mrf.mxu0
      %v563 = vadd.f32 0.0, %v562
      %564 = vmatmul.f32.gmra.mxu0 %v485
      %v565 = vpop.f32.mrf.mxu0
      %v566 = vadd.f32 0.0, %v565
      %567 = vmatmul.f32.gmra.mxu0 %v488
      %v568 = vpop.f32.mrf.mxu0
      %v569 = vadd.f32 0.0, %v568
      %570 = vmatmul.f32.gmra.mxu0 %v491
      %v571 = vpop.f32.mrf.mxu0
      %v572 = vadd.f32 0.0, %v571
      %573 = vmatmul.f32.gmra.mxu0 %v494
      %v574 = vpop.f32.mrf.mxu0
      %v575 = vadd.f32 0.0, %v574
      %576 = vmatmul.f32.gmra.mxu0 %v497
      %v577 = vpop.f32.mrf.mxu0
      %v578 = vadd.f32 0.0, %v577
      %579 = vmatmul.f32.gmra.mxu0 %v500
      %v580 = vpop.f32.mrf.mxu0
      %v581 = vadd.f32 0.0, %v580
      %582 = vmatmul.f32.gmra.mxu0 %v503
      %v583 = vpop.f32.mrf.mxu0
      %v584 = vadd.f32 0.0, %v583
      %585 = vmatmul.f32.gmra.mxu0 %v506
      %v586 = vpop.f32.mrf.mxu0
      %v587 = vadd.f32 0.0, %v586
      %588 = vmatmul.f32.gmra.mxu0 %v509
      %v589 = vpop.f32.mrf.mxu0
      %v590 = vadd.f32 0.0, %v589
      %591 = vmatmul.f32.gmra.mxu0 %v512
      %v592 = vpop.f32.mrf.mxu0
      %v593 = vadd.f32 0.0, %v592
      %594 = vmatmul.f32.gmra.mxu0 %v515
      %v595 = vpop.f32.mrf.mxu0
      %v596 = vadd.f32 0.0, %v595
      %597 = vmatmul.f32.gmra.mxu0 %v518
      %v598 = vpop.f32.mrf.mxu0
      %v599 = vadd.f32 0.0, %v598
      %600 = vdwg.mxu0
      %v601 = vadd.f32 %v439, %v542
      %v602 = vadd.f32 %v440, %v545
      %v603 = vadd.f32 %v441, %v548
      %v604 = vadd.f32 %v442, %v551
      %v605 = vadd.f32 %v443, %v554
      %v606 = vadd.f32 %v444, %v557
      %v607 = vadd.f32 %v445, %v560
      %v608 = vadd.f32 %v446, %v563
      %v609 = vadd.f32 %v447, %v566
      %v610 = vadd.f32 %v448, %v569
      %v611 = vadd.f32 %v449, %v572
      %v612 = vadd.f32 %v450, %v575
      %v613 = vadd.f32 %v451, %v578
      %v614 = vadd.f32 %v452, %v581
      %v615 = vadd.f32 %v453, %v584
      %v616 = vadd.f32 %v454, %v587
      %v617 = vadd.f32 %v455, %v590
      %v618 = vadd.f32 %v456, %v593
      %v619 = vadd.f32 %v457, %v596
      %v620 = vadd.f32 %v458, %v599
      %621 = vst.msk [vmem:[#allocation4] sm:$0xff] %vm295, %v601
      %622 = vst.msk [vmem:[#allocation4 + $0x8] sm:$0xff] %vm295, %v602
      %623 = vst.msk [vmem:[#allocation4 + $0x10] sm:$0xff] %vm295, %v603
      %624 = vst.msk [vmem:[#allocation4 + $0x18] sm:$0xff] %vm295, %v604
      %625 = vst.msk [vmem:[#allocation4 + $0x20] sm:$0xff] %vm295, %v605
      %626 = vst.msk [vmem:[#allocation4 + $0x28] sm:$0xff] %vm295, %v606
      %627 = vst.msk [vmem:[#allocation4 + $0x30] sm:$0xff] %vm295, %v607
      %628 = vst.msk [vmem:[#allocation4 + $0x38] sm:$0xff] %vm295, %v608
      %629 = vst.msk [vmem:[#allocation4 + $0x40] sm:$0xff] %vm295, %v609
      %630 = vst.msk [vmem:[#allocation4 + $0x48] sm:$0xff] %vm295, %v610
      %631 = vst.msk [vmem:[#allocation4 + $0x50] sm:$0xff] %vm295, %v611
      %632 = vst.msk [vmem:[#allocation4 + $0x58] sm:$0xff] %vm295, %v612
      %633 = vst.msk [vmem:[#allocation4 + $0x60] sm:$0xff] %vm295, %v613
      %634 = vst.msk [vmem:[#allocation4 + $0x68] sm:$0xff] %vm295, %v614
      %635 = vst.msk [vmem:[#allocation4 + $0x70] sm:$0xff] %vm295, %v615
      %636 = vst.msk [vmem:[#allocation4 + $0x78] sm:$0xff] %vm295, %v616
      %637 = vst.msk [vmem:[#allocation4 + $0x80] sm:$0xff] %vm295, %v617
      %638 = vst.msk [vmem:[#allocation4 + $0x88] sm:$0xff] %vm295, %v618
      %639 = vst.msk [vmem:[#allocation4 + $0x90] sm:$0xff] %vm295, %v619
      %640 = vst.msk [vmem:[#allocation4 + $0x98] sm:$0xff] %vm295, %v620
      %v641 = vld [vmem:[#allocation2 + $0x1] sm:$0xff]
      %v642 = vld [vmem:[#allocation2 + $0x9] sm:$0xff]
      %v643 = vld [vmem:[#allocation2 + $0x19] sm:$0xff]
      %v644 = vld [vmem:[#allocation2 + $0x21] sm:$0xff]
      %v645 = vld [vmem:[#allocation2 + $0x31] sm:$0xff]
      %v646 = vld [vmem:[#allocation2 + $0x39] sm:$0xff]
      %v647 = vld [vmem:[#allocation2 + $0x49] sm:$0xff]
      %v648 = vld [vmem:[#allocation2 + $0x51] sm:$0xff]
      %v649 = vld [vmem:[#allocation2 + $0x61] sm:$0xff]
      %v650 = vld [vmem:[#allocation2 + $0x69] sm:$0xff]
      %v651 = vld [vmem:[#allocation2 + $0x79] sm:$0xff]
      %v652 = vld [vmem:[#allocation2 + $0x81] sm:$0xff]
      %v653 = vld [vmem:[#allocation2 + $0x91] sm:$0xff]
      %v654 = vld [vmem:[#allocation2 + $0x99] sm:$0xff]
      %v655 = vld [vmem:[#allocation2 + $0xa9] sm:$0xff]
      %v656 = vld [vmem:[#allocation2 + $0xb1] sm:$0xff]
      %v657 = vld [vmem:[#allocation2 + $0xc1] sm:$0xff]
      %v658 = vld [vmem:[#allocation2 + $0xc9] sm:$0xff]
      %v659 = vld [vmem:[#allocation2 + $0xd9] sm:$0xff]
      %v660 = vld [vmem:[#allocation2 + $0xe1] sm:$0xff]
      %v661 = vld [vmem:[#allocation4] sm:$0xff]
      %v662 = vld [vmem:[#allocation4 + $0x8] sm:$0xff]
      %v663 = vld [vmem:[#allocation4 + $0x10] sm:$0xff]
      %v664 = vld [vmem:[#allocation4 + $0x18] sm:$0xff]
      %v665 = vld [vmem:[#allocation4 + $0x20] sm:$0xff]
      %v666 = vld [vmem:[#allocation4 + $0x28] sm:$0xff]
      %v667 = vld [vmem:[#allocation4 + $0x30] sm:$0xff]
      %v668 = vld [vmem:[#allocation4 + $0x38] sm:$0xff]
      %v669 = vld [vmem:[#allocation4 + $0x40] sm:$0xff]
      %v670 = vld [vmem:[#allocation4 + $0x48] sm:$0xff]
      %v671 = vld [vmem:[#allocation4 + $0x50] sm:$0xff]
      %v672 = vld [vmem:[#allocation4 + $0x58] sm:$0xff]
      %v673 = vld [vmem:[#allocation4 + $0x60] sm:$0xff]
      %v674 = vld [vmem:[#allocation4 + $0x68] sm:$0xff]
      %v675 = vld [vmem:[#allocation4 + $0x70] sm:$0xff]
      %v676 = vld [vmem:[#allocation4 + $0x78] sm:$0xff]
      %v677 = vld [vmem:[#allocation4 + $0x80] sm:$0xff]
      %v678 = vld [vmem:[#allocation4 + $0x88] sm:$0xff]
      %v679 = vld [vmem:[#allocation4 + $0x90] sm:$0xff]
      %v680 = vld [vmem:[#allocation4 + $0x98] sm:$0xff]
      %s681 = scalar_lea.vmem %s1, 4
      %v682 = vld [vmem:[%s681] sm:$0xf]
      %v684 = vsel %vm295, %v641, 0
      %v687 = vsel %vm295, %v642, 0
      %v690 = vsel %vm295, %v643, 0
      %v693 = vsel %vm295, %v644, 0
      %v696 = vsel %vm295, %v645, 0
      %v699 = vsel %vm295, %v646, 0
      %v702 = vsel %vm295, %v647, 0
      %v705 = vsel %vm295, %v648, 0
      %v708 = vsel %vm295, %v649, 0
      %v711 = vsel %vm295, %v650, 0
      %v714 = vsel %vm295, %v651, 0
      %v717 = vsel %vm295, %v652, 0
      %v720 = vsel %vm295, %v653, 0
      %v723 = vsel %vm295, %v654, 0
      %v726 = vsel %vm295, %v655, 0
      %v729 = vsel %vm295, %v656, 0
      %v732 = vsel %vm295, %v657, 0
      %v735 = vsel %vm295, %v658, 0
      %v738 = vsel %vm295, %v659, 0
      %v741 = vsel %vm295, %v660, 0
      %v744 = vsel %vm520, %v682, 0
      %746 = vmatpush.msra.mxu0 0.0
      %747 = vmatpush.msra.mxu0 0.0
      %748 = vmatpush.msra.mxu0 0.0
      %749 = vmatpush.msra.mxu0 0.0
      %750 = vmatpush.msra.mxu0 0.0
      %751 = vmatpush.msra.mxu0 0.0
      %752 = vmatpush.msra.mxu0 0.0
      %753 = vmatpush.msra.mxu0 0.0
      %754 = vmatpush.msra.mxu0 0.0
      %755 = vmatpush.msra.mxu0 0.0
      %756 = vmatpush.msra.mxu0 0.0
      %757 = vmatpush.msra.mxu0 0.0
      %758 = vmatpush.msra.mxu0 0.0
      %759 = vmatpush.msra.mxu0 0.0
      %760 = vmatpush.msra.mxu0 0.0
      %761 = vmatpush.msra.mxu0 %v744
      %762 = vmatmul.f32.gmra.mxu0 %v684
      %v763 = vpop.f32.mrf.mxu0
      %v764 = vadd.f32 0.0, %v763
      %765 = vmatmul.f32.gmra.mxu0 %v687
      %v766 = vpop.f32.mrf.mxu0
      %v767 = vadd.f32 0.0, %v766
      %768 = vmatmul.f32.gmra.mxu0 %v690
      %v769 = vpop.f32.mrf.mxu0
      %v770 = vadd.f32 0.0, %v769
      %771 = vmatmul.f32.gmra.mxu0 %v693
      %v772 = vpop.f32.mrf.mxu0
      %v773 = vadd.f32 0.0, %v772
      %774 = vmatmul.f32.gmra.mxu0 %v696
      %v775 = vpop.f32.mrf.mxu0
      %v776 = vadd.f32 0.0, %v775
      %777 = vmatmul.f32.gmra.mxu0 %v699
      %v778 = vpop.f32.mrf.mxu0
      %v779 = vadd.f32 0.0, %v778
      %780 = vmatmul.f32.gmra.mxu0 %v702
      %v781 = vpop.f32.mrf.mxu0
      %v782 = vadd.f32 0.0, %v781
      %783 = vmatmul.f32.gmra.mxu0 %v705
      %v784 = vpop.f32.mrf.mxu0
      %v785 = vadd.f32 0.0, %v784
      %786 = vmatmul.f32.gmra.mxu0 %v708
      %v787 = vpop.f32.mrf.mxu0
      %v788 = vadd.f32 0.0, %v787
      %789 = vmatmul.f32.gmra.mxu0 %v711
      %v790 = vpop.f32.mrf.mxu0
      %v791 = vadd.f32 0.0, %v790
      %792 = vmatmul.f32.gmra.mxu0 %v714
      %v793 = vpop.f32.mrf.mxu0
      %v794 = vadd.f32 0.0, %v793
      %795 = vmatmul.f32.gmra.mxu0 %v717
      %v796 = vpop.f32.mrf.mxu0
      %v797 = vadd.f32 0.0, %v796
      %798 = vmatmul.f32.gmra.mxu0 %v720
      %v799 = vpop.f32.mrf.mxu0
      %v800 = vadd.f32 0.0, %v799
      %801 = vmatmul.f32.gmra.mxu0 %v723
      %v802 = vpop.f32.mrf.mxu0
      %v803 = vadd.f32 0.0, %v802
      %804 = vmatmul.f32.gmra.mxu0 %v726
      %v805 = vpop.f32.mrf.mxu0
      %v806 = vadd.f32 0.0, %v805
      %807 = vmatmul.f32.gmra.mxu0 %v729
      %v808 = vpop.f32.mrf.mxu0
      %v809 = vadd.f32 0.0, %v808
      %810 = vmatmul.f32.gmra.mxu0 %v732
      %v811 = vpop.f32.mrf.mxu0
      %v812 = vadd.f32 0.0, %v811
      %813 = vmatmul.f32.gmra.mxu0 %v735
      %v814 = vpop.f32.mrf.mxu0
      %v815 = vadd.f32 0.0, %v814
      %816 = vmatmul.f32.gmra.mxu0 %v738
      %v817 = vpop.f32.mrf.mxu0
      %v818 = vadd.f32 0.0, %v817
      %819 = vmatmul.f32.gmra.mxu0 %v741
      %v820 = vpop.f32.mrf.mxu0
      %v821 = vadd.f32 0.0, %v820
      %822 = vdwg.mxu0
      %v823 = vadd.f32 %v661, %v764
      %v824 = vadd.f32 %v662, %v767
      %v825 = vadd.f32 %v663, %v770
      %v826 = vadd.f32 %v664, %v773
      %v827 = vadd.f32 %v665, %v776
      %v828 = vadd.f32 %v666, %v779
      %v829 = vadd.f32 %v667, %v782
      %v830 = vadd.f32 %v668, %v785
      %v831 = vadd.f32 %v669, %v788
      %v832 = vadd.f32 %v670, %v791
      %v833 = vadd.f32 %v671, %v794
      %v834 = vadd.f32 %v672, %v797
      %v835 = vadd.f32 %v673, %v800
      %v836 = vadd.f32 %v674, %v803
      %v837 = vadd.f32 %v675, %v806
      %v838 = vadd.f32 %v676, %v809
      %v839 = vadd.f32 %v677, %v812
      %v840 = vadd.f32 %v678, %v815
      %v841 = vadd.f32 %v679, %v818
      %v842 = vadd.f32 %v680, %v821
      %843 = vst.msk [vmem:[#allocation4] sm:$0xff] %vm295, %v823
      %844 = vst.msk [vmem:[#allocation4 + $0x8] sm:$0xff] %vm295, %v824
      %845 = vst.msk [vmem:[#allocation4 + $0x10] sm:$0xff] %vm295, %v825
      %846 = vst.msk [vmem:[#allocation4 + $0x18] sm:$0xff] %vm295, %v826
      %847 = vst.msk [vmem:[#allocation4 + $0x20] sm:$0xff] %vm295, %v827
      %848 = vst.msk [vmem:[#allocation4 + $0x28] sm:$0xff] %vm295, %v828
      %849 = vst.msk [vmem:[#allocation4 + $0x30] sm:$0xff] %vm295, %v829
      %850 = vst.msk [vmem:[#allocation4 + $0x38] sm:$0xff] %vm295, %v830
      %851 = vst.msk [vmem:[#allocation4 + $0x40] sm:$0xff] %vm295, %v831
      %852 = vst.msk [vmem:[#allocation4 + $0x48] sm:$0xff] %vm295, %v832
      %853 = vst.msk [vmem:[#allocation4 + $0x50] sm:$0xff] %vm295, %v833
      %854 = vst.msk [vmem:[#allocation4 + $0x58] sm:$0xff] %vm295, %v834
      %855 = vst.msk [vmem:[#allocation4 + $0x60] sm:$0xff] %vm295, %v835
      %856 = vst.msk [vmem:[#allocation4 + $0x68] sm:$0xff] %vm295, %v836
      %857 = vst.msk [vmem:[#allocation4 + $0x70] sm:$0xff] %vm295, %v837
      %858 = vst.msk [vmem:[#allocation4 + $0x78] sm:$0xff] %vm295, %v838
      %859 = vst.msk [vmem:[#allocation4 + $0x80] sm:$0xff] %vm295, %v839
      %860 = vst.msk [vmem:[#allocation4 + $0x88] sm:$0xff] %vm295, %v840
      %861 = vst.msk [vmem:[#allocation4 + $0x90] sm:$0xff] %vm295, %v841
      %862 = vst.msk [vmem:[#allocation4 + $0x98] sm:$0xff] %vm295, %v842
      %v863 = vld [vmem:[#allocation2 + $0x2] sm:$0xff]
      %v864 = vld [vmem:[#allocation2 + $0xa] sm:$0xff]
      %v865 = vld [vmem:[#allocation2 + $0x1a] sm:$0xff]
      %v866 = vld [vmem:[#allocation2 + $0x22] sm:$0xff]
      %v867 = vld [vmem:[#allocation2 + $0x32] sm:$0xff]
      %v868 = vld [vmem:[#allocation2 + $0x3a] sm:$0xff]
      %v869 = vld [vmem:[#allocation2 + $0x4a] sm:$0xff]
      %v870 = vld [vmem:[#allocation2 + $0x52] sm:$0xff]
      %v871 = vld [vmem:[#allocation2 + $0x62] sm:$0xff]
      %v872 = vld [vmem:[#allocation2 + $0x6a] sm:$0xff]
      %v873 = vld [vmem:[#allocation2 + $0x7a] sm:$0xff]
      %v874 = vld [vmem:[#allocation2 + $0x82] sm:$0xff]
      %v875 = vld [vmem:[#allocation2 + $0x92] sm:$0xff]
      %v876 = vld [vmem:[#allocation2 + $0x9a] sm:$0xff]
      %v877 = vld [vmem:[#allocation2 + $0xaa] sm:$0xff]
      %v878 = vld [vmem:[#allocation2 + $0xb2] sm:$0xff]
      %v879 = vld [vmem:[#allocation2 + $0xc2] sm:$0xff]
      %v880 = vld [vmem:[#allocation2 + $0xca] sm:$0xff]
      %v881 = vld [vmem:[#allocation2 + $0xda] sm:$0xff]
      %v882 = vld [vmem:[#allocation2 + $0xe2] sm:$0xff]
      %v883 = vld [vmem:[#allocation4] sm:$0xff]
      %v884 = vld [vmem:[#allocation4 + $0x8] sm:$0xff]
      %v885 = vld [vmem:[#allocation4 + $0x10] sm:$0xff]
      %v886 = vld [vmem:[#allocation4 + $0x18] sm:$0xff]
      %v887 = vld [vmem:[#allocation4 + $0x20] sm:$0xff]
      %v888 = vld [vmem:[#allocation4 + $0x28] sm:$0xff]
      %v889 = vld [vmem:[#allocation4 + $0x30] sm:$0xff]
      %v890 = vld [vmem:[#allocation4 + $0x38] sm:$0xff]
      %v891 = vld [vmem:[#allocation4 + $0x40] sm:$0xff]
      %v892 = vld [vmem:[#allocation4 + $0x48] sm:$0xff]
      %v893 = vld [vmem:[#allocation4 + $0x50] sm:$0xff]
      %v894 = vld [vmem:[#allocation4 + $0x58] sm:$0xff]
      %v895 = vld [vmem:[#allocation4 + $0x60] sm:$0xff]
      %v896 = vld [vmem:[#allocation4 + $0x68] sm:$0xff]
      %v897 = vld [vmem:[#allocation4 + $0x70] sm:$0xff]
      %v898 = vld [vmem:[#allocation4 + $0x78] sm:$0xff]
      %v899 = vld [vmem:[#allocation4 + $0x80] sm:$0xff]
      %v900 = vld [vmem:[#allocation4 + $0x88] sm:$0xff]
      %v901 = vld [vmem:[#allocation4 + $0x90] sm:$0xff]
      %v902 = vld [vmem:[#allocation4 + $0x98] sm:$0xff]
      %s903 = scalar_lea.vmem %s1, 8
      %v904 = vld [vmem:[%s903] sm:$0xf]
      %v906 = vsel %vm295, %v863, 0
      %v909 = vsel %vm295, %v864, 0
      %v912 = vsel %vm295, %v865, 0
      %v915 = vsel %vm295, %v866, 0
      %v918 = vsel %vm295, %v867, 0
      %v921 = vsel %vm295, %v868, 0
      %v924 = vsel %vm295, %v869, 0
      %v927 = vsel %vm295, %v870, 0
      %v930 = vsel %vm295, %v871, 0
      %v933 = vsel %vm295, %v872, 0
      %v936 = vsel %vm295, %v873, 0
      %v939 = vsel %vm295, %v874, 0
      %v942 = vsel %vm295, %v875, 0
      %v945 = vsel %vm295, %v876, 0
      %v948 = vsel %vm295, %v877, 0
      %v951 = vsel %vm295, %v878, 0
      %v954 = vsel %vm295, %v879, 0
      %v957 = vsel %vm295, %v880, 0
      %v960 = vsel %vm295, %v881, 0
      %v963 = vsel %vm295, %v882, 0
      %v966 = vsel %vm520, %v904, 0
      %968 = vmatpush.msra.mxu0 0.0
      %969 = vmatpush.msra.mxu0 0.0
      %970 = vmatpush.msra.mxu0 0.0
      %971 = vmatpush.msra.mxu0 0.0
      %972 = vmatpush.msra.mxu0 0.0
      %973 = vmatpush.msra.mxu0 0.0
      %974 = vmatpush.msra.mxu0 0.0
      %975 = vmatpush.msra.mxu0 0.0
      %976 = vmatpush.msra.mxu0 0.0
      %977 = vmatpush.msra.mxu0 0.0
      %978 = vmatpush.msra.mxu0 0.0
      %979 = vmatpush.msra.mxu0 0.0
      %980 = vmatpush.msra.mxu0 0.0
      %981 = vmatpush.msra.mxu0 0.0
      %982 = vmatpush.msra.mxu0 0.0
      %983 = vmatpush.msra.mxu0 %v966
      %984 = vmatmul.f32.gmra.mxu0 %v906
      %v985 = vpop.f32.mrf.mxu0
      %v986 = vadd.f32 0.0, %v985
      %987 = vmatmul.f32.gmra.mxu0 %v909
      %v988 = vpop.f32.mrf.mxu0
      %v989 = vadd.f32 0.0, %v988
      %990 = vmatmul.f32.gmra.mxu0 %v912
      %v991 = vpop.f32.mrf.mxu0
      %v992 = vadd.f32 0.0, %v991
      %993 = vmatmul.f32.gmra.mxu0 %v915
      %v994 = vpop.f32.mrf.mxu0
      %v995 = vadd.f32 0.0, %v994
      %996 = vmatmul.f32.gmra.mxu0 %v918
      %v997 = vpop.f32.mrf.mxu0
      %v998 = vadd.f32 0.0, %v997
      %999 = vmatmul.f32.gmra.mxu0 %v921
      %v1000 = vpop.f32.mrf.mxu0
      %v1001 = vadd.f32 0.0, %v1000
      %1002 = vmatmul.f32.gmra.mxu0 %v924
      %v1003 = vpop.f32.mrf.mxu0
      %v1004 = vadd.f32 0.0, %v1003
      %1005 = vmatmul.f32.gmra.mxu0 %v927
      %v1006 = vpop.f32.mrf.mxu0
      %v1007 = vadd.f32 0.0, %v1006
      %1008 = vmatmul.f32.gmra.mxu0 %v930
      %v1009 = vpop.f32.mrf.mxu0
      %v1010 = vadd.f32 0.0, %v1009
      %1011 = vmatmul.f32.gmra.mxu0 %v933
      %v1012 = vpop.f32.mrf.mxu0
      %v1013 = vadd.f32 0.0, %v1012
      %1014 = vmatmul.f32.gmra.mxu0 %v936
      %v1015 = vpop.f32.mrf.mxu0
      %v1016 = vadd.f32 0.0, %v1015
      %1017 = vmatmul.f32.gmra.mxu0 %v939
      %v1018 = vpop.f32.mrf.mxu0
      %v1019 = vadd.f32 0.0, %v1018
      %1020 = vmatmul.f32.gmra.mxu0 %v942
      %v1021 = vpop.f32.mrf.mxu0
      %v1022 = vadd.f32 0.0, %v1021
      %1023 = vmatmul.f32.gmra.mxu0 %v945
      %v1024 = vpop.f32.mrf.mxu0
      %v1025 = vadd.f32 0.0, %v1024
      %1026 = vmatmul.f32.gmra.mxu0 %v948
      %v1027 = vpop.f32.mrf.mxu0
      %v1028 = vadd.f32 0.0, %v1027
      %1029 = vmatmul.f32.gmra.mxu0 %v951
      %v1030 = vpop.f32.mrf.mxu0
      %v1031 = vadd.f32 0.0, %v1030
      %1032 = vmatmul.f32.gmra.mxu0 %v954
      %v1033 = vpop.f32.mrf.mxu0
      %v1034 = vadd.f32 0.0, %v1033
      %1035 = vmatmul.f32.gmra.mxu0 %v957
      %v1036 = vpop.f32.mrf.mxu0
      %v1037 = vadd.f32 0.0, %v1036
      %1038 = vmatmul.f32.gmra.mxu0 %v960
      %v1039 = vpop.f32.mrf.mxu0
      %v1040 = vadd.f32 0.0, %v1039
      %1041 = vmatmul.f32.gmra.mxu0 %v963
      %v1042 = vpop.f32.mrf.mxu0
      %v1043 = vadd.f32 0.0, %v1042
      %1044 = vdwg.mxu0
      %v1045 = vadd.f32 %v883, %v986
      %v1046 = vadd.f32 %v884, %v989
      %v1047 = vadd.f32 %v885, %v992
      %v1048 = vadd.f32 %v886, %v995
      %v1049 = vadd.f32 %v887, %v998
      %v1050 = vadd.f32 %v888, %v1001
      %v1051 = vadd.f32 %v889, %v1004
      %v1052 = vadd.f32 %v890, %v1007
      %v1053 = vadd.f32 %v891, %v1010
      %v1054 = vadd.f32 %v892, %v1013
      %v1055 = vadd.f32 %v893, %v1016
      %v1056 = vadd.f32 %v894, %v1019
      %v1057 = vadd.f32 %v895, %v1022
      %v1058 = vadd.f32 %v896, %v1025
      %v1059 = vadd.f32 %v897, %v1028
      %v1060 = vadd.f32 %v898, %v1031
      %v1061 = vadd.f32 %v899, %v1034
      %v1062 = vadd.f32 %v900, %v1037
      %v1063 = vadd.f32 %v901, %v1040
      %v1064 = vadd.f32 %v902, %v1043
      %1065 = vst.msk [vmem:[#allocation4] sm:$0xff] %vm295, %v1045
      %1066 = vst.msk [vmem:[#allocation4 + $0x8] sm:$0xff] %vm295, %v1046
      %1067 = vst.msk [vmem:[#allocation4 + $0x10] sm:$0xff] %vm295, %v1047
      %1068 = vst.msk [vmem:[#allocation4 + $0x18] sm:$0xff] %vm295, %v1048
      %1069 = vst.msk [vmem:[#allocation4 + $0x20] sm:$0xff] %vm295, %v1049
      %1070 = vst.msk [vmem:[#allocation4 + $0x28] sm:$0xff] %vm295, %v1050
      %1071 = vst.msk [vmem:[#allocation4 + $0x30] sm:$0xff] %vm295, %v1051
      %1072 = vst.msk [vmem:[#allocation4 + $0x38] sm:$0xff] %vm295, %v1052
      %1073 = vst.msk [vmem:[#allocation4 + $0x40] sm:$0xff] %vm295, %v1053
      %1074 = vst.msk [vmem:[#allocation4 + $0x48] sm:$0xff] %vm295, %v1054
      %1075 = vst.msk [vmem:[#allocation4 + $0x50] sm:$0xff] %vm295, %v1055
      %1076 = vst.msk [vmem:[#allocation4 + $0x58] sm:$0xff] %vm295, %v1056
      %1077 = vst.msk [vmem:[#allocation4 + $0x60] sm:$0xff] %vm295, %v1057
      %1078 = vst.msk [vmem:[#allocation4 + $0x68] sm:$0xff] %vm295, %v1058
      %1079 = vst.msk [vmem:[#allocation4 + $0x70] sm:$0xff] %vm295, %v1059
      %1080 = vst.msk [vmem:[#allocation4 + $0x78] sm:$0xff] %vm295, %v1060
      %1081 = vst.msk [vmem:[#allocation4 + $0x80] sm:$0xff] %vm295, %v1061
      %1082 = vst.msk [vmem:[#allocation4 + $0x88] sm:$0xff] %vm295, %v1062
      %1083 = vst.msk [vmem:[#allocation4 + $0x90] sm:$0xff] %vm295, %v1063
      %1084 = vst.msk [vmem:[#allocation4 + $0x98] sm:$0xff] %vm295, %v1064
      %v1085 = vld [vmem:[%s350] sm:$0xff]
      %v1086 = vld [vmem:[%s350 + $0x8] sm:$0xff]
      %v1087 = vld [vmem:[%s350 + $0x18] sm:$0xff]
      %v1088 = vld [vmem:[%s350 + $0x20] sm:$0xff]
      %v1089 = vld [vmem:[%s350 + $0x30] sm:$0xff]
      %v1090 = vld [vmem:[%s350 + $0x38] sm:$0xff]
      %v1091 = vld [vmem:[%s350 + $0x48] sm:$0xff]
      %v1092 = vld [vmem:[%s350 + $0x50] sm:$0xff]
      %v1093 = vld [vmem:[%s350 + $0x60] sm:$0xff]
      %v1094 = vld [vmem:[%s350 + $0x68] sm:$0xff]
      %v1095 = vld [vmem:[%s350 + $0x78] sm:$0xff]
      %v1096 = vld [vmem:[%s350 + $0x80] sm:$0xff]
      %v1097 = vld [vmem:[%s350 + $0x90] sm:$0xff]
      %v1098 = vld [vmem:[%s350 + $0x98] sm:$0xff]
      %v1099 = vld [vmem:[%s350 + $0xa8] sm:$0xff]
      %v1100 = vld [vmem:[%s350 + $0xb0] sm:$0xff]
      %v1101 = vld [vmem:[%s350 + $0xc0] sm:$0xff]
      %v1102 = vld [vmem:[%s350 + $0xc8] sm:$0xff]
      %v1103 = vld [vmem:[%s350 + $0xd8] sm:$0xff]
      %v1104 = vld [vmem:[%s350 + $0xe0] sm:$0xff]
      %v1105 = vld [vmem:[#allocation4] sm:$0xff]
      %v1106 = vld [vmem:[#allocation4 + $0x8] sm:$0xff]
      %v1107 = vld [vmem:[#allocation4 + $0x10] sm:$0xff]
      %v1108 = vld [vmem:[#allocation4 + $0x18] sm:$0xff]
      %v1109 = vld [vmem:[#allocation4 + $0x20] sm:$0xff]
      %v1110 = vld [vmem:[#allocation4 + $0x28] sm:$0xff]
      %v1111 = vld [vmem:[#allocation4 + $0x30] sm:$0xff]
      %v1112 = vld [vmem:[#allocation4 + $0x38] sm:$0xff]
      %v1113 = vld [vmem:[#allocation4 + $0x40] sm:$0xff]
      %v1114 = vld [vmem:[#allocation4 + $0x48] sm:$0xff]
      %v1115 = vld [vmem:[#allocation4 + $0x50] sm:$0xff]
      %v1116 = vld [vmem:[#allocation4 + $0x58] sm:$0xff]
      %v1117 = vld [vmem:[#allocation4 + $0x60] sm:$0xff]
      %v1118 = vld [vmem:[#allocation4 + $0x68] sm:$0xff]
      %v1119 = vld [vmem:[#allocation4 + $0x70] sm:$0xff]
      %v1120 = vld [vmem:[#allocation4 + $0x78] sm:$0xff]
      %v1121 = vld [vmem:[#allocation4 + $0x80] sm:$0xff]
      %v1122 = vld [vmem:[#allocation4 + $0x88] sm:$0xff]
      %v1123 = vld [vmem:[#allocation4 + $0x90] sm:$0xff]
      %v1124 = vld [vmem:[#allocation4 + $0x98] sm:$0xff]
      %s1125 = scalar_lea.vmem %s1, 12
      %v1126 = vld [vmem:[%s1125] sm:$0xf]
      %v1128 = vsel %vm295, %v1085, 0
      %v1131 = vsel %vm295, %v1086, 0
      %v1134 = vsel %vm295, %v1087, 0
      %v1137 = vsel %vm295, %v1088, 0
      %v1140 = vsel %vm295, %v1089, 0
      %v1143 = vsel %vm295, %v1090, 0
      %v1146 = vsel %vm295, %v1091, 0
      %v1149 = vsel %vm295, %v1092, 0
      %v1152 = vsel %vm295, %v1093, 0
      %v1155 = vsel %vm295, %v1094, 0
      %v1158 = vsel %vm295, %v1095, 0
      %v1161 = vsel %vm295, %v1096, 0
      %v1164 = vsel %vm295, %v1097, 0
      %v1167 = vsel %vm295, %v1098, 0
      %v1170 = vsel %vm295, %v1099, 0
      %v1173 = vsel %vm295, %v1100, 0
      %v1176 = vsel %vm295, %v1101, 0
      %v1179 = vsel %vm295, %v1102, 0
      %v1182 = vsel %vm295, %v1103, 0
      %v1185 = vsel %vm295, %v1104, 0
      %v1188 = vsel %vm520, %v1126, 0
      %1190 = vmatpush.msra.mxu0 0.0
      %1191 = vmatpush.msra.mxu0 0.0
      %1192 = vmatpush.msra.mxu0 0.0
      %1193 = vmatpush.msra.mxu0 0.0
      %1194 = vmatpush.msra.mxu0 0.0
      %1195 = vmatpush.msra.mxu0 0.0
      %1196 = vmatpush.msra.mxu0 0.0
      %1197 = vmatpush.msra.mxu0 0.0
      %1198 = vmatpush.msra.mxu0 0.0
      %1199 = vmatpush.msra.mxu0 0.0
      %1200 = vmatpush.msra.mxu0 0.0
      %1201 = vmatpush.msra.mxu0 0.0
      %1202 = vmatpush.msra.mxu0 0.0
      %1203 = vmatpush.msra.mxu0 0.0
      %1204 = vmatpush.msra.mxu0 0.0
      %1205 = vmatpush.msra.mxu0 %v1188
      %1206 = vmatmul.f32.gmra.mxu0 %v1128
      %v1207 = vpop.f32.mrf.mxu0
      %v1208 = vadd.f32 0.0, %v1207
      %1209 = vmatmul.f32.gmra.mxu0 %v1131
      %v1210 = vpop.f32.mrf.mxu0
      %v1211 = vadd.f32 0.0, %v1210
      %1212 = vmatmul.f32.gmra.mxu0 %v1134
      %v1213 = vpop.f32.mrf.mxu0
      %v1214 = vadd.f32 0.0, %v1213
      %1215 = vmatmul.f32.gmra.mxu0 %v1137
      %v1216 = vpop.f32.mrf.mxu0
      %v1217 = vadd.f32 0.0, %v1216
      %1218 = vmatmul.f32.gmra.mxu0 %v1140
      %v1219 = vpop.f32.mrf.mxu0
      %v1220 = vadd.f32 0.0, %v1219
      %1221 = vmatmul.f32.gmra.mxu0 %v1143
      %v1222 = vpop.f32.mrf.mxu0
      %v1223 = vadd.f32 0.0, %v1222
      %1224 = vmatmul.f32.gmra.mxu0 %v1146
      %v1225 = vpop.f32.mrf.mxu0
      %v1226 = vadd.f32 0.0, %v1225
      %1227 = vmatmul.f32.gmra.mxu0 %v1149
      %v1228 = vpop.f32.mrf.mxu0
      %v1229 = vadd.f32 0.0, %v1228
      %1230 = vmatmul.f32.gmra.mxu0 %v1152
      %v1231 = vpop.f32.mrf.mxu0
      %v1232 = vadd.f32 0.0, %v1231
      %1233 = vmatmul.f32.gmra.mxu0 %v1155
      %v1234 = vpop.f32.mrf.mxu0
      %v1235 = vadd.f32 0.0, %v1234
      %1236 = vmatmul.f32.gmra.mxu0 %v1158
      %v1237 = vpop.f32.mrf.mxu0
      %v1238 = vadd.f32 0.0, %v1237
      %1239 = vmatmul.f32.gmra.mxu0 %v1161
      %v1240 = vpop.f32.mrf.mxu0
      %v1241 = vadd.f32 0.0, %v1240
      %1242 = vmatmul.f32.gmra.mxu0 %v1164
      %v1243 = vpop.f32.mrf.mxu0
      %v1244 = vadd.f32 0.0, %v1243
      %1245 = vmatmul.f32.gmra.mxu0 %v1167
      %v1246 = vpop.f32.mrf.mxu0
      %v1247 = vadd.f32 0.0, %v1246
      %1248 = vmatmul.f32.gmra.mxu0 %v1170
      %v1249 = vpop.f32.mrf.mxu0
      %v1250 = vadd.f32 0.0, %v1249
      %1251 = vmatmul.f32.gmra.mxu0 %v1173
      %v1252 = vpop.f32.mrf.mxu0
      %v1253 = vadd.f32 0.0, %v1252
      %1254 = vmatmul.f32.gmra.mxu0 %v1176
      %v1255 = vpop.f32.mrf.mxu0
      %v1256 = vadd.f32 0.0, %v1255
      %1257 = vmatmul.f32.gmra.mxu0 %v1179
      %v1258 = vpop.f32.mrf.mxu0
      %v1259 = vadd.f32 0.0, %v1258
      %1260 = vmatmul.f32.gmra.mxu0 %v1182
      %v1261 = vpop.f32.mrf.mxu0
      %v1262 = vadd.f32 0.0, %v1261
      %1263 = vmatmul.f32.gmra.mxu0 %v1185
      %v1264 = vpop.f32.mrf.mxu0
      %v1265 = vadd.f32 0.0, %v1264
      %1266 = vdwg.mxu0
      %v1267 = vadd.f32 %v1105, %v1208
      %v1268 = vadd.f32 %v1106, %v1211
      %v1269 = vadd.f32 %v1107, %v1214
      %v1270 = vadd.f32 %v1108, %v1217
      %v1271 = vadd.f32 %v1109, %v1220
      %v1272 = vadd.f32 %v1110, %v1223
      %v1273 = vadd.f32 %v1111, %v1226
      %v1274 = vadd.f32 %v1112, %v1229
      %v1275 = vadd.f32 %v1113, %v1232
      %v1276 = vadd.f32 %v1114, %v1235
      %v1277 = vadd.f32 %v1115, %v1238
      %v1278 = vadd.f32 %v1116, %v1241
      %v1279 = vadd.f32 %v1117, %v1244
      %v1280 = vadd.f32 %v1118, %v1247
      %v1281 = vadd.f32 %v1119, %v1250
      %v1282 = vadd.f32 %v1120, %v1253
      %v1283 = vadd.f32 %v1121, %v1256
      %v1284 = vadd.f32 %v1122, %v1259
      %v1285 = vadd.f32 %v1123, %v1262
      %v1286 = vadd.f32 %v1124, %v1265
      %1287 = vst.msk [vmem:[#allocation4] sm:$0xff] %vm295, %v1267
      %1288 = vst.msk [vmem:[#allocation4 + $0x8] sm:$0xff] %vm295, %v1268
      %1289 = vst.msk [vmem:[#allocation4 + $0x10] sm:$0xff] %vm295, %v1269
      %1290 = vst.msk [vmem:[#allocation4 + $0x18] sm:$0xff] %vm295, %v1270
      %1291 = vst.msk [vmem:[#allocation4 + $0x20] sm:$0xff] %vm295, %v1271
      %1292 = vst.msk [vmem:[#allocation4 + $0x28] sm:$0xff] %vm295, %v1272
      %1293 = vst.msk [vmem:[#allocation4 + $0x30] sm:$0xff] %vm295, %v1273
      %1294 = vst.msk [vmem:[#allocation4 + $0x38] sm:$0xff] %vm295, %v1274
      %1295 = vst.msk [vmem:[#allocation4 + $0x40] sm:$0xff] %vm295, %v1275
      %1296 = vst.msk [vmem:[#allocation4 + $0x48] sm:$0xff] %vm295, %v1276
      %1297 = vst.msk [vmem:[#allocation4 + $0x50] sm:$0xff] %vm295, %v1277
      %1298 = vst.msk [vmem:[#allocation4 + $0x58] sm:$0xff] %vm295, %v1278
      %1299 = vst.msk [vmem:[#allocation4 + $0x60] sm:$0xff] %vm295, %v1279
      %1300 = vst.msk [vmem:[#allocation4 + $0x68] sm:$0xff] %vm295, %v1280
      %1301 = vst.msk [vmem:[#allocation4 + $0x70] sm:$0xff] %vm295, %v1281
      %1302 = vst.msk [vmem:[#allocation4 + $0x78] sm:$0xff] %vm295, %v1282
      %1303 = vst.msk [vmem:[#allocation4 + $0x80] sm:$0xff] %vm295, %v1283
      %1304 = vst.msk [vmem:[#allocation4 + $0x88] sm:$0xff] %vm295, %v1284
      %1305 = vst.msk [vmem:[#allocation4 + $0x90] sm:$0xff] %vm295, %v1285
      %1306 = vst.msk [vmem:[#allocation4 + $0x98] sm:$0xff] %vm295, %v1286
      %v1307 = vld [vmem:[%s350 + $0x1] sm:$0xff]
      %v1308 = vld [vmem:[%s350 + $0x9] sm:$0xff]
      %v1309 = vld [vmem:[%s350 + $0x19] sm:$0xff]
      %v1310 = vld [vmem:[%s350 + $0x21] sm:$0xff]
      %v1311 = vld [vmem:[%s350 + $0x31] sm:$0xff]
      %v1312 = vld [vmem:[%s350 + $0x39] sm:$0xff]
      %v1313 = vld [vmem:[%s350 + $0x49] sm:$0xff]
      %v1314 = vld [vmem:[%s350 + $0x51] sm:$0xff]
      %v1315 = vld [vmem:[%s350 + $0x61] sm:$0xff]
      %v1316 = vld [vmem:[%s350 + $0x69] sm:$0xff]
      %v1317 = vld [vmem:[%s350 + $0x79] sm:$0xff]
      %v1318 = vld [vmem:[%s350 + $0x81] sm:$0xff]
      %v1319 = vld [vmem:[%s350 + $0x91] sm:$0xff]
      %v1320 = vld [vmem:[%s350 + $0x99] sm:$0xff]
      %v1321 = vld [vmem:[%s350 + $0xa9] sm:$0xff]
      %v1322 = vld [vmem:[%s350 + $0xb1] sm:$0xff]
      %v1323 = vld [vmem:[%s350 + $0xc1] sm:$0xff]
      %v1324 = vld [vmem:[%s350 + $0xc9] sm:$0xff]
      %v1325 = vld [vmem:[%s350 + $0xd9] sm:$0xff]
      %v1326 = vld [vmem:[%s350 + $0xe1] sm:$0xff]
      %v1327 = vld [vmem:[#allocation4] sm:$0xff]
      %v1328 = vld [vmem:[#allocation4 + $0x8] sm:$0xff]
      %v1329 = vld [vmem:[#allocation4 + $0x10] sm:$0xff]
      %v1330 = vld [vmem:[#allocation4 + $0x18] sm:$0xff]
      %v1331 = vld [vmem:[#allocation4 + $0x20] sm:$0xff]
      %v1332 = vld [vmem:[#allocation4 + $0x28] sm:$0xff]
      %v1333 = vld [vmem:[#allocation4 + $0x30] sm:$0xff]
      %v1334 = vld [vmem:[#allocation4 + $0x38] sm:$0xff]
      %v1335 = vld [vmem:[#allocation4 + $0x40] sm:$0xff]
      %v1336 = vld [vmem:[#allocation4 + $0x48] sm:$0xff]
      %v1337 = vld [vmem:[#allocation4 + $0x50] sm:$0xff]
      %v1338 = vld [vmem:[#allocation4 + $0x58] sm:$0xff]
      %v1339 = vld [vmem:[#allocation4 + $0x60] sm:$0xff]
      %v1340 = vld [vmem:[#allocation4 + $0x68] sm:$0xff]
      %v1341 = vld [vmem:[#allocation4 + $0x70] sm:$0xff]
      %v1342 = vld [vmem:[#allocation4 + $0x78] sm:$0xff]
      %v1343 = vld [vmem:[#allocation4 + $0x80] sm:$0xff]
      %v1344 = vld [vmem:[#allocation4 + $0x88] sm:$0xff]
      %v1345 = vld [vmem:[#allocation4 + $0x90] sm:$0xff]
      %v1346 = vld [vmem:[#allocation4 + $0x98] sm:$0xff]
      %s1347 = scalar_lea.vmem %s1, 16
      %v1348 = vld [vmem:[%s1347] sm:$0xf]
      %v1350 = vsel %vm295, %v1307, 0
      %v1353 = vsel %vm295, %v1308, 0
      %v1356 = vsel %vm295, %v1309, 0
      %v1359 = vsel %vm295, %v1310, 0
      %v1362 = vsel %vm295, %v1311, 0
      %v1365 = vsel %vm295, %v1312, 0
      %v1368 = vsel %vm295, %v1313, 0
      %v1371 = vsel %vm295, %v1314, 0
      %v1374 = vsel %vm295, %v1315, 0
      %v1377 = vsel %vm295, %v1316, 0
      %v1380 = vsel %vm295, %v1317, 0
      %v1383 = vsel %vm295, %v1318, 0
      %v1386 = vsel %vm295, %v1319, 0
      %v1389 = vsel %vm295, %v1320, 0
      %v1392 = vsel %vm295, %v1321, 0
      %v1395 = vsel %vm295, %v1322, 0
      %v1398 = vsel %vm295, %v1323, 0
      %v1401 = vsel %vm295, %v1324, 0
      %v1404 = vsel %vm295, %v1325, 0
      %v1407 = vsel %vm295, %v1326, 0
      %v1410 = vsel %vm520, %v1348, 0
      %1412 = vmatpush.msra.mxu0 0.0
      %1413 = vmatpush.msra.mxu0 0.0
      %1414 = vmatpush.msra.mxu0 0.0
      %1415 = vmatpush.msra.mxu0 0.0
      %1416 = vmatpush.msra.mxu0 0.0
      %1417 = vmatpush.msra.mxu0 0.0
      %1418 = vmatpush.msra.mxu0 0.0
      %1419 = vmatpush.msra.mxu0 0.0
      %1420 = vmatpush.msra.mxu0 0.0
      %1421 = vmatpush.msra.mxu0 0.0
      %1422 = vmatpush.msra.mxu0 0.0
      %1423 = vmatpush.msra.mxu0 0.0
      %1424 = vmatpush.msra.mxu0 0.0
      %1425 = vmatpush.msra.mxu0 0.0
      %1426 = vmatpush.msra.mxu0 0.0
      %1427 = vmatpush.msra.mxu0 %v1410
      %1428 = vmatmul.f32.gmra.mxu0 %v1350
      %v1429 = vpop.f32.mrf.mxu0
      %v1430 = vadd.f32 0.0, %v1429
      %1431 = vmatmul.f32.gmra.mxu0 %v1353
      %v1432 = vpop.f32.mrf.mxu0
      %v1433 = vadd.f32 0.0, %v1432
      %1434 = vmatmul.f32.gmra.mxu0 %v1356
      %v1435 = vpop.f32.mrf.mxu0
      %v1436 = vadd.f32 0.0, %v1435
      %1437 = vmatmul.f32.gmra.mxu0 %v1359
      %v1438 = vpop.f32.mrf.mxu0
      %v1439 = vadd.f32 0.0, %v1438
      %1440 = vmatmul.f32.gmra.mxu0 %v1362
      %v1441 = vpop.f32.mrf.mxu0
      %v1442 = vadd.f32 0.0, %v1441
      %1443 = vmatmul.f32.gmra.mxu0 %v1365
      %v1444 = vpop.f32.mrf.mxu0
      %v1445 = vadd.f32 0.0, %v1444
      %1446 = vmatmul.f32.gmra.mxu0 %v1368
      %v1447 = vpop.f32.mrf.mxu0
      %v1448 = vadd.f32 0.0, %v1447
      %1449 = vmatmul.f32.gmra.mxu0 %v1371
      %v1450 = vpop.f32.mrf.mxu0
      %v1451 = vadd.f32 0.0, %v1450
      %1452 = vmatmul.f32.gmra.mxu0 %v1374
      %v1453 = vpop.f32.mrf.mxu0
      %v1454 = vadd.f32 0.0, %v1453
      %1455 = vmatmul.f32.gmra.mxu0 %v1377
      %v1456 = vpop.f32.mrf.mxu0
      %v1457 = vadd.f32 0.0, %v1456
      %1458 = vmatmul.f32.gmra.mxu0 %v1380
      %v1459 = vpop.f32.mrf.mxu0
      %v1460 = vadd.f32 0.0, %v1459
      %1461 = vmatmul.f32.gmra.mxu0 %v1383
      %v1462 = vpop.f32.mrf.mxu0
      %v1463 = vadd.f32 0.0, %v1462
      %1464 = vmatmul.f32.gmra.mxu0 %v1386
      %v1465 = vpop.f32.mrf.mxu0
      %v1466 = vadd.f32 0.0, %v1465
      %1467 = vmatmul.f32.gmra.mxu0 %v1389
      %v1468 = vpop.f32.mrf.mxu0
      %v1469 = vadd.f32 0.0, %v1468
      %1470 = vmatmul.f32.gmra.mxu0 %v1392
      %v1471 = vpop.f32.mrf.mxu0
      %v1472 = vadd.f32 0.0, %v1471
      %1473 = vmatmul.f32.gmra.mxu0 %v1395
      %v1474 = vpop.f32.mrf.mxu0
      %v1475 = vadd.f32 0.0, %v1474
      %1476 = vmatmul.f32.gmra.mxu0 %v1398
      %v1477 = vpop.f32.mrf.mxu0
      %v1478 = vadd.f32 0.0, %v1477
      %1479 = vmatmul.f32.gmra.mxu0 %v1401
      %v1480 = vpop.f32.mrf.mxu0
      %v1481 = vadd.f32 0.0, %v1480
      %1482 = vmatmul.f32.gmra.mxu0 %v1404
      %v1483 = vpop.f32.mrf.mxu0
      %v1484 = vadd.f32 0.0, %v1483
      %1485 = vmatmul.f32.gmra.mxu0 %v1407
      %v1486 = vpop.f32.mrf.mxu0
      %v1487 = vadd.f32 0.0, %v1486
      %1488 = vdwg.mxu0
      %v1489 = vadd.f32 %v1327, %v1430
      %v1490 = vadd.f32 %v1328, %v1433
      %v1491 = vadd.f32 %v1329, %v1436
      %v1492 = vadd.f32 %v1330, %v1439
      %v1493 = vadd.f32 %v1331, %v1442
      %v1494 = vadd.f32 %v1332, %v1445
      %v1495 = vadd.f32 %v1333, %v1448
      %v1496 = vadd.f32 %v1334, %v1451
      %v1497 = vadd.f32 %v1335, %v1454
      %v1498 = vadd.f32 %v1336, %v1457
      %v1499 = vadd.f32 %v1337, %v1460
      %v1500 = vadd.f32 %v1338, %v1463
      %v1501 = vadd.f32 %v1339, %v1466
      %v1502 = vadd.f32 %v1340, %v1469
      %v1503 = vadd.f32 %v1341, %v1472
      %v1504 = vadd.f32 %v1342, %v1475
      %v1505 = vadd.f32 %v1343, %v1478
      %v1506 = vadd.f32 %v1344, %v1481
      %v1507 = vadd.f32 %v1345, %v1484
      %v1508 = vadd.f32 %v1346, %v1487
      %1509 = vst.msk [vmem:[#allocation4] sm:$0xff] %vm295, %v1489
      %1510 = vst.msk [vmem:[#allocation4 + $0x8] sm:$0xff] %vm295, %v1490
      %1511 = vst.msk [vmem:[#allocation4 + $0x10] sm:$0xff] %vm295, %v1491
      %1512 = vst.msk [vmem:[#allocation4 + $0x18] sm:$0xff] %vm295, %v1492
      %1513 = vst.msk [vmem:[#allocation4 + $0x20] sm:$0xff] %vm295, %v1493
      %1514 = vst.msk [vmem:[#allocation4 + $0x28] sm:$0xff] %vm295, %v1494
      %1515 = vst.msk [vmem:[#allocation4 + $0x30] sm:$0xff] %vm295, %v1495
      %1516 = vst.msk [vmem:[#allocation4 + $0x38] sm:$0xff] %vm295, %v1496
      %1517 = vst.msk [vmem:[#allocation4 + $0x40] sm:$0xff] %vm295, %v1497
      %1518 = vst.msk [vmem:[#allocation4 + $0x48] sm:$0xff] %vm295, %v1498
      %1519 = vst.msk [vmem:[#allocation4 + $0x50] sm:$0xff] %vm295, %v1499
      %1520 = vst.msk [vmem:[#allocation4 + $0x58] sm:$0xff] %vm295, %v1500
      %1521 = vst.msk [vmem:[#allocation4 + $0x60] sm:$0xff] %vm295, %v1501
      %1522 = vst.msk [vmem:[#allocation4 + $0x68] sm:$0xff] %vm295, %v1502
      %1523 = vst.msk [vmem:[#allocation4 + $0x70] sm:$0xff] %vm295, %v1503
      %1524 = vst.msk [vmem:[#allocation4 + $0x78] sm:$0xff] %vm295, %v1504
      %1525 = vst.msk [vmem:[#allocation4 + $0x80] sm:$0xff] %vm295, %v1505
      %1526 = vst.msk [vmem:[#allocation4 + $0x88] sm:$0xff] %vm295, %v1506
      %1527 = vst.msk [vmem:[#allocation4 + $0x90] sm:$0xff] %vm295, %v1507
      %1528 = vst.msk [vmem:[#allocation4 + $0x98] sm:$0xff] %vm295, %v1508
      %v1529 = vld [vmem:[%s350 + $0x2] sm:$0xff]
      %v1530 = vld [vmem:[%s350 + $0xa] sm:$0xff]
      %v1531 = vld [vmem:[%s350 + $0x1a] sm:$0xff]
      %v1532 = vld [vmem:[%s350 + $0x22] sm:$0xff]
      %v1533 = vld [vmem:[%s350 + $0x32] sm:$0xff]
      %v1534 = vld [vmem:[%s350 + $0x3a] sm:$0xff]
      %v1535 = vld [vmem:[%s350 + $0x4a] sm:$0xff]
      %v1536 = vld [vmem:[%s350 + $0x52] sm:$0xff]
      %v1537 = vld [vmem:[%s350 + $0x62] sm:$0xff]
      %v1538 = vld [vmem:[%s350 + $0x6a] sm:$0xff]
      %v1539 = vld [vmem:[%s350 + $0x7a] sm:$0xff]
      %v1540 = vld [vmem:[%s350 + $0x82] sm:$0xff]
      %v1541 = vld [vmem:[%s350 + $0x92] sm:$0xff]
      %v1542 = vld [vmem:[%s350 + $0x9a] sm:$0xff]
      %v1543 = vld [vmem:[%s350 + $0xaa] sm:$0xff]
      %v1544 = vld [vmem:[%s350 + $0xb2] sm:$0xff]
      %v1545 = vld [vmem:[%s350 + $0xc2] sm:$0xff]
      %v1546 = vld [vmem:[%s350 + $0xca] sm:$0xff]
      %v1547 = vld [vmem:[%s350 + $0xda] sm:$0xff]
      %v1548 = vld [vmem:[%s350 + $0xe2] sm:$0xff]
      %v1549 = vld [vmem:[#allocation4] sm:$0xff]
      %v1550 = vld [vmem:[#allocation4 + $0x8] sm:$0xff]
      %v1551 = vld [vmem:[#allocation4 + $0x10] sm:$0xff]
      %v1552 = vld [vmem:[#allocation4 + $0x18] sm:$0xff]
      %v1553 = vld [vmem:[#allocation4 + $0x20] sm:$0xff]
      %v1554 = vld [vmem:[#allocation4 + $0x28] sm:$0xff]
      %v1555 = vld [vmem:[#allocation4 + $0x30] sm:$0xff]
      %v1556 = vld [vmem:[#allocation4 + $0x38] sm:$0xff]
      %v1557 = vld [vmem:[#allocation4 + $0x40] sm:$0xff]
      %v1558 = vld [vmem:[#allocation4 + $0x48] sm:$0xff]
      %v1559 = vld [vmem:[#allocation4 + $0x50] sm:$0xff]
      %v1560 = vld [vmem:[#allocation4 + $0x58] sm:$0xff]
      %v1561 = vld [vmem:[#allocation4 + $0x60] sm:$0xff]
      %v1562 = vld [vmem:[#allocation4 + $0x68] sm:$0xff]
      %v1563 = vld [vmem:[#allocation4 + $0x70] sm:$0xff]
      %v1564 = vld [vmem:[#allocation4 + $0x78] sm:$0xff]
      %v1565 = vld [vmem:[#allocation4 + $0x80] sm:$0xff]
      %v1566 = vld [vmem:[#allocation4 + $0x88] sm:$0xff]
      %v1567 = vld [vmem:[#allocation4 + $0x90] sm:$0xff]
      %v1568 = vld [vmem:[#allocation4 + $0x98] sm:$0xff]
      %s1569 = scalar_lea.vmem %s1, 20
      %v1570 = vld [vmem:[%s1569] sm:$0xf]
      %v1572 = vsel %vm295, %v1529, 0
      %v1575 = vsel %vm295, %v1530, 0
      %v1578 = vsel %vm295, %v1531, 0
      %v1581 = vsel %vm295, %v1532, 0
      %v1584 = vsel %vm295, %v1533, 0
      %v1587 = vsel %vm295, %v1534, 0
      %v1590 = vsel %vm295, %v1535, 0
      %v1593 = vsel %vm295, %v1536, 0
      %v1596 = vsel %vm295, %v1537, 0
      %v1599 = vsel %vm295, %v1538, 0
      %v1602 = vsel %vm295, %v1539, 0
      %v1605 = vsel %vm295, %v1540, 0
      %v1608 = vsel %vm295, %v1541, 0
      %v1611 = vsel %vm295, %v1542, 0
      %v1614 = vsel %vm295, %v1543, 0
      %v1617 = vsel %vm295, %v1544, 0
      %v1620 = vsel %vm295, %v1545, 0
      %v1623 = vsel %vm295, %v1546, 0
      %v1626 = vsel %vm295, %v1547, 0
      %v1629 = vsel %vm295, %v1548, 0
      %v1632 = vsel %vm520, %v1570, 0
      %1634 = vmatpush.msra.mxu0 0.0
      %1635 = vmatpush.msra.mxu0 0.0
      %1636 = vmatpush.msra.mxu0 0.0
      %1637 = vmatpush.msra.mxu0 0.0
      %1638 = vmatpush.msra.mxu0 0.0
      %1639 = vmatpush.msra.mxu0 0.0
      %1640 = vmatpush.msra.mxu0 0.0
      %1641 = vmatpush.msra.mxu0 0.0
      %1642 = vmatpush.msra.mxu0 0.0
      %1643 = vmatpush.msra.mxu0 0.0
      %1644 = vmatpush.msra.mxu0 0.0
      %1645 = vmatpush.msra.mxu0 0.0
      %1646 = vmatpush.msra.mxu0 0.0
      %1647 = vmatpush.msra.mxu0 0.0
      %1648 = vmatpush.msra.mxu0 0.0
      %1649 = vmatpush.msra.mxu0 %v1632
      %1650 = vmatmul.f32.gmra.mxu0 %v1572
      %v1651 = vpop.f32.mrf.mxu0
      %v1652 = vadd.f32 0.0, %v1651
      %1653 = vmatmul.f32.gmra.mxu0 %v1575
      %v1654 = vpop.f32.mrf.mxu0
      %v1655 = vadd.f32 0.0, %v1654
      %1656 = vmatmul.f32.gmra.mxu0 %v1578
      %v1657 = vpop.f32.mrf.mxu0
      %v1658 = vadd.f32 0.0, %v1657
      %1659 = vmatmul.f32.gmra.mxu0 %v1581
      %v1660 = vpop.f32.mrf.mxu0
      %v1661 = vadd.f32 0.0, %v1660
      %1662 = vmatmul.f32.gmra.mxu0 %v1584
      %v1663 = vpop.f32.mrf.mxu0
      %v1664 = vadd.f32 0.0, %v1663
      %1665 = vmatmul.f32.gmra.mxu0 %v1587
      %v1666 = vpop.f32.mrf.mxu0
      %v1667 = vadd.f32 0.0, %v1666
      %1668 = vmatmul.f32.gmra.mxu0 %v1590
      %v1669 = vpop.f32.mrf.mxu0
      %v1670 = vadd.f32 0.0, %v1669
      %1671 = vmatmul.f32.gmra.mxu0 %v1593
      %v1672 = vpop.f32.mrf.mxu0
      %v1673 = vadd.f32 0.0, %v1672
      %1674 = vmatmul.f32.gmra.mxu0 %v1596
      %v1675 = vpop.f32.mrf.mxu0
      %v1676 = vadd.f32 0.0, %v1675
      %1677 = vmatmul.f32.gmra.mxu0 %v1599
      %v1678 = vpop.f32.mrf.mxu0
      %v1679 = vadd.f32 0.0, %v1678
      %1680 = vmatmul.f32.gmra.mxu0 %v1602
      %v1681 = vpop.f32.mrf.mxu0
      %v1682 = vadd.f32 0.0, %v1681
      %1683 = vmatmul.f32.gmra.mxu0 %v1605
      %v1684 = vpop.f32.mrf.mxu0
      %v1685 = vadd.f32 0.0, %v1684
      %1686 = vmatmul.f32.gmra.mxu0 %v1608
      %v1687 = vpop.f32.mrf.mxu0
      %v1688 = vadd.f32 0.0, %v1687
      %1689 = vmatmul.f32.gmra.mxu0 %v1611
      %v1690 = vpop.f32.mrf.mxu0
      %v1691 = vadd.f32 0.0, %v1690
      %1692 = vmatmul.f32.gmra.mxu0 %v1614
      %v1693 = vpop.f32.mrf.mxu0
      %v1694 = vadd.f32 0.0, %v1693
      %1695 = vmatmul.f32.gmra.mxu0 %v1617
      %v1696 = vpop.f32.mrf.mxu0
      %v1697 = vadd.f32 0.0, %v1696
      %1698 = vmatmul.f32.gmra.mxu0 %v1620
      %v1699 = vpop.f32.mrf.mxu0
      %v1700 = vadd.f32 0.0, %v1699
      %1701 = vmatmul.f32.gmra.mxu0 %v1623
      %v1702 = vpop.f32.mrf.mxu0
      %v1703 = vadd.f32 0.0, %v1702
      %1704 = vmatmul.f32.gmra.mxu0 %v1626
      %v1705 = vpop.f32.mrf.mxu0
      %v1706 = vadd.f32 0.0, %v1705
      %1707 = vmatmul.f32.gmra.mxu0 %v1629
      %v1708 = vpop.f32.mrf.mxu0
      %v1709 = vadd.f32 0.0, %v1708
      %1710 = vdwg.mxu0
      %v1711 = vadd.f32 %v1549, %v1652
      %v1712 = vadd.f32 %v1550, %v1655
      %v1713 = vadd.f32 %v1551, %v1658
      %v1714 = vadd.f32 %v1552, %v1661
      %v1715 = vadd.f32 %v1553, %v1664
      %v1716 = vadd.f32 %v1554, %v1667
      %v1717 = vadd.f32 %v1555, %v1670
      %v1718 = vadd.f32 %v1556, %v1673
      %v1719 = vadd.f32 %v1557, %v1676
      %v1720 = vadd.f32 %v1558, %v1679
      %v1721 = vadd.f32 %v1559, %v1682
      %v1722 = vadd.f32 %v1560, %v1685
      %v1723 = vadd.f32 %v1561, %v1688
      %v1724 = vadd.f32 %v1562, %v1691
      %v1725 = vadd.f32 %v1563, %v1694
      %v1726 = vadd.f32 %v1564, %v1697
      %v1727 = vadd.f32 %v1565, %v1700
      %v1728 = vadd.f32 %v1566, %v1703
      %v1729 = vadd.f32 %v1567, %v1706
      %v1730 = vadd.f32 %v1568, %v1709
      %1731 = vst.msk [vmem:[#allocation4] sm:$0xff] %vm295, %v1711
      %1732 = vst.msk [vmem:[#allocation4 + $0x8] sm:$0xff] %vm295, %v1712
      %1733 = vst.msk [vmem:[#allocation4 + $0x10] sm:$0xff] %vm295, %v1713
      %1734 = vst.msk [vmem:[#allocation4 + $0x18] sm:$0xff] %vm295, %v1714
      %1735 = vst.msk [vmem:[#allocation4 + $0x20] sm:$0xff] %vm295, %v1715
      %1736 = vst.msk [vmem:[#allocation4 + $0x28] sm:$0xff] %vm295, %v1716
      %1737 = vst.msk [vmem:[#allocation4 + $0x30] sm:$0xff] %vm295, %v1717
      %1738 = vst.msk [vmem:[#allocation4 + $0x38] sm:$0xff] %vm295, %v1718
      %1739 = vst.msk [vmem:[#allocation4 + $0x40] sm:$0xff] %vm295, %v1719
      %1740 = vst.msk [vmem:[#allocation4 + $0x48] sm:$0xff] %vm295, %v1720
      %1741 = vst.msk [vmem:[#allocation4 + $0x50] sm:$0xff] %vm295, %v1721
      %1742 = vst.msk [vmem:[#allocation4 + $0x58] sm:$0xff] %vm295, %v1722
      %1743 = vst.msk [vmem:[#allocation4 + $0x60] sm:$0xff] %vm295, %v1723
      %1744 = vst.msk [vmem:[#allocation4 + $0x68] sm:$0xff] %vm295, %v1724
      %1745 = vst.msk [vmem:[#allocation4 + $0x70] sm:$0xff] %vm295, %v1725
      %1746 = vst.msk [vmem:[#allocation4 + $0x78] sm:$0xff] %vm295, %v1726
      %1747 = vst.msk [vmem:[#allocation4 + $0x80] sm:$0xff] %vm295, %v1727
      %1748 = vst.msk [vmem:[#allocation4 + $0x88] sm:$0xff] %vm295, %v1728
      %1749 = vst.msk [vmem:[#allocation4 + $0x90] sm:$0xff] %vm295, %v1729
      %1750 = vst.msk [vmem:[#allocation4 + $0x98] sm:$0xff] %vm295, %v1730
      %v1751 = vld [vmem:[%s294] sm:$0xff]
      %v1752 = vld [vmem:[%s294 + $0x8] sm:$0xff]
      %v1753 = vld [vmem:[%s294 + $0x18] sm:$0xff]
      %v1754 = vld [vmem:[%s294 + $0x20] sm:$0xff]
      %v1755 = vld [vmem:[%s294 + $0x30] sm:$0xff]
      %v1756 = vld [vmem:[%s294 + $0x38] sm:$0xff]
      %v1757 = vld [vmem:[%s294 + $0x48] sm:$0xff]
      %v1758 = vld [vmem:[%s294 + $0x50] sm:$0xff]
      %v1759 = vld [vmem:[%s294 + $0x60] sm:$0xff]
      %v1760 = vld [vmem:[%s294 + $0x68] sm:$0xff]
      %v1761 = vld [vmem:[%s294 + $0x78] sm:$0xff]
      %v1762 = vld [vmem:[%s294 + $0x80] sm:$0xff]
      %v1763 = vld [vmem:[%s294 + $0x90] sm:$0xff]
      %v1764 = vld [vmem:[%s294 + $0x98] sm:$0xff]
      %v1765 = vld [vmem:[%s294 + $0xa8] sm:$0xff]
      %v1766 = vld [vmem:[%s294 + $0xb0] sm:$0xff]
      %v1767 = vld [vmem:[%s294 + $0xc0] sm:$0xff]
      %v1768 = vld [vmem:[%s294 + $0xc8] sm:$0xff]
      %v1769 = vld [vmem:[%s294 + $0xd8] sm:$0xff]
      %v1770 = vld [vmem:[%s294 + $0xe0] sm:$0xff]
      %v1771 = vld [vmem:[#allocation4] sm:$0xff]
      %v1772 = vld [vmem:[#allocation4 + $0x8] sm:$0xff]
      %v1773 = vld [vmem:[#allocation4 + $0x10] sm:$0xff]
      %v1774 = vld [vmem:[#allocation4 + $0x18] sm:$0xff]
      %v1775 = vld [vmem:[#allocation4 + $0x20] sm:$0xff]
      %v1776 = vld [vmem:[#allocation4 + $0x28] sm:$0xff]
      %v1777 = vld [vmem:[#allocation4 + $0x30] sm:$0xff]
      %v1778 = vld [vmem:[#allocation4 + $0x38] sm:$0xff]
      %v1779 = vld [vmem:[#allocation4 + $0x40] sm:$0xff]
      %v1780 = vld [vmem:[#allocation4 + $0x48] sm:$0xff]
      %v1781 = vld [vmem:[#allocation4 + $0x50] sm:$0xff]
      %v1782 = vld [vmem:[#allocation4 + $0x58] sm:$0xff]
      %v1783 = vld [vmem:[#allocation4 + $0x60] sm:$0xff]
      %v1784 = vld [vmem:[#allocation4 + $0x68] sm:$0xff]
      %v1785 = vld [vmem:[#allocation4 + $0x70] sm:$0xff]
      %v1786 = vld [vmem:[#allocation4 + $0x78] sm:$0xff]
      %v1787 = vld [vmem:[#allocation4 + $0x80] sm:$0xff]
      %v1788 = vld [vmem:[#allocation4 + $0x88] sm:$0xff]
      %v1789 = vld [vmem:[#allocation4 + $0x90] sm:$0xff]
      %v1790 = vld [vmem:[#allocation4 + $0x98] sm:$0xff]
      %s1791 = scalar_lea.vmem %s1, 24
      %v1792 = vld [vmem:[%s1791] sm:$0xf]
      %v1794 = vsel %vm295, %v1751, 0
      %v1797 = vsel %vm295, %v1752, 0
      %v1800 = vsel %vm295, %v1753, 0
      %v1803 = vsel %vm295, %v1754, 0
      %v1806 = vsel %vm295, %v1755, 0
      %v1809 = vsel %vm295, %v1756, 0
      %v1812 = vsel %vm295, %v1757, 0
      %v1815 = vsel %vm295, %v1758, 0
      %v1818 = vsel %vm295, %v1759, 0
      %v1821 = vsel %vm295, %v1760, 0
      %v1824 = vsel %vm295, %v1761, 0
      %v1827 = vsel %vm295, %v1762, 0
      %v1830 = vsel %vm295, %v1763, 0
      %v1833 = vsel %vm295, %v1764, 0
      %v1836 = vsel %vm295, %v1765, 0
      %v1839 = vsel %vm295, %v1766, 0
      %v1842 = vsel %vm295, %v1767, 0
      %v1845 = vsel %vm295, %v1768, 0
      %v1848 = vsel %vm295, %v1769, 0
      %v1851 = vsel %vm295, %v1770, 0
      %v1854 = vsel %vm520, %v1792, 0
      %1856 = vmatpush.msra.mxu0 0.0
      %1857 = vmatpush.msra.mxu0 0.0
      %1858 = vmatpush.msra.mxu0 0.0
      %1859 = vmatpush.msra.mxu0 0.0
      %1860 = vmatpush.msra.mxu0 0.0
      %1861 = vmatpush.msra.mxu0 0.0
      %1862 = vmatpush.msra.mxu0 0.0
      %1863 = vmatpush.msra.mxu0 0.0
      %1864 = vmatpush.msra.mxu0 0.0
      %1865 = vmatpush.msra.mxu0 0.0
      %1866 = vmatpush.msra.mxu0 0.0
      %1867 = vmatpush.msra.mxu0 0.0
      %1868 = vmatpush.msra.mxu0 0.0
      %1869 = vmatpush.msra.mxu0 0.0
      %1870 = vmatpush.msra.mxu0 0.0
      %1871 = vmatpush.msra.mxu0 %v1854
      %1872 = vmatmul.f32.gmra.mxu0 %v1794
      %v1873 = vpop.f32.mrf.mxu0
      %v1874 = vadd.f32 0.0, %v1873
      %1875 = vmatmul.f32.gmra.mxu0 %v1797
      %v1876 = vpop.f32.mrf.mxu0
      %v1877 = vadd.f32 0.0, %v1876
      %1878 = vmatmul.f32.gmra.mxu0 %v1800
      %v1879 = vpop.f32.mrf.mxu0
      %v1880 = vadd.f32 0.0, %v1879
      %1881 = vmatmul.f32.gmra.mxu0 %v1803
      %v1882 = vpop.f32.mrf.mxu0
      %v1883 = vadd.f32 0.0, %v1882
      %1884 = vmatmul.f32.gmra.mxu0 %v1806
      %v1885 = vpop.f32.mrf.mxu0
      %v1886 = vadd.f32 0.0, %v1885
      %1887 = vmatmul.f32.gmra.mxu0 %v1809
      %v1888 = vpop.f32.mrf.mxu0
      %v1889 = vadd.f32 0.0, %v1888
      %1890 = vmatmul.f32.gmra.mxu0 %v1812
      %v1891 = vpop.f32.mrf.mxu0
      %v1892 = vadd.f32 0.0, %v1891
      %1893 = vmatmul.f32.gmra.mxu0 %v1815
      %v1894 = vpop.f32.mrf.mxu0
      %v1895 = vadd.f32 0.0, %v1894
      %1896 = vmatmul.f32.gmra.mxu0 %v1818
      %v1897 = vpop.f32.mrf.mxu0
      %v1898 = vadd.f32 0.0, %v1897
      %1899 = vmatmul.f32.gmra.mxu0 %v1821
      %v1900 = vpop.f32.mrf.mxu0
      %v1901 = vadd.f32 0.0, %v1900
      %1902 = vmatmul.f32.gmra.mxu0 %v1824
      %v1903 = vpop.f32.mrf.mxu0
      %v1904 = vadd.f32 0.0, %v1903
      %1905 = vmatmul.f32.gmra.mxu0 %v1827
      %v1906 = vpop.f32.mrf.mxu0
      %v1907 = vadd.f32 0.0, %v1906
      %1908 = vmatmul.f32.gmra.mxu0 %v1830
      %v1909 = vpop.f32.mrf.mxu0
      %v1910 = vadd.f32 0.0, %v1909
      %1911 = vmatmul.f32.gmra.mxu0 %v1833
      %v1912 = vpop.f32.mrf.mxu0
      %v1913 = vadd.f32 0.0, %v1912
      %1914 = vmatmul.f32.gmra.mxu0 %v1836
      %v1915 = vpop.f32.mrf.mxu0
      %v1916 = vadd.f32 0.0, %v1915
      %1917 = vmatmul.f32.gmra.mxu0 %v1839
      %v1918 = vpop.f32.mrf.mxu0
      %v1919 = vadd.f32 0.0, %v1918
      %1920 = vmatmul.f32.gmra.mxu0 %v1842
      %v1921 = vpop.f32.mrf.mxu0
      %v1922 = vadd.f32 0.0, %v1921
      %1923 = vmatmul.f32.gmra.mxu0 %v1845
      %v1924 = vpop.f32.mrf.mxu0
      %v1925 = vadd.f32 0.0, %v1924
      %1926 = vmatmul.f32.gmra.mxu0 %v1848
      %v1927 = vpop.f32.mrf.mxu0
      %v1928 = vadd.f32 0.0, %v1927
      %1929 = vmatmul.f32.gmra.mxu0 %v1851
      %v1930 = vpop.f32.mrf.mxu0
      %v1931 = vadd.f32 0.0, %v1930
      %1932 = vdwg.mxu0
      %v1933 = vadd.f32 %v1771, %v1874
      %v1934 = vadd.f32 %v1772, %v1877
      %v1935 = vadd.f32 %v1773, %v1880
      %v1936 = vadd.f32 %v1774, %v1883
      %v1937 = vadd.f32 %v1775, %v1886
      %v1938 = vadd.f32 %v1776, %v1889
      %v1939 = vadd.f32 %v1777, %v1892
      %v1940 = vadd.f32 %v1778, %v1895
      %v1941 = vadd.f32 %v1779, %v1898
      %v1942 = vadd.f32 %v1780, %v1901
      %v1943 = vadd.f32 %v1781, %v1904
      %v1944 = vadd.f32 %v1782, %v1907
      %v1945 = vadd.f32 %v1783, %v1910
      %v1946 = vadd.f32 %v1784, %v1913
      %v1947 = vadd.f32 %v1785, %v1916
      %v1948 = vadd.f32 %v1786, %v1919
      %v1949 = vadd.f32 %v1787, %v1922
      %v1950 = vadd.f32 %v1788, %v1925
      %v1951 = vadd.f32 %v1789, %v1928
      %v1952 = vadd.f32 %v1790, %v1931
      %1953 = vst.msk [vmem:[#allocation4] sm:$0xff] %vm295, %v1933
      %1954 = vst.msk [vmem:[#allocation4 + $0x8] sm:$0xff] %vm295, %v1934
      %1955 = vst.msk [vmem:[#allocation4 + $0x10] sm:$0xff] %vm295, %v1935
      %1956 = vst.msk [vmem:[#allocation4 + $0x18] sm:$0xff] %vm295, %v1936
      %1957 = vst.msk [vmem:[#allocation4 + $0x20] sm:$0xff] %vm295, %v1937
      %1958 = vst.msk [vmem:[#allocation4 + $0x28] sm:$0xff] %vm295, %v1938
      %1959 = vst.msk [vmem:[#allocation4 + $0x30] sm:$0xff] %vm295, %v1939
      %1960 = vst.msk [vmem:[#allocation4 + $0x38] sm:$0xff] %vm295, %v1940
      %1961 = vst.msk [vmem:[#allocation4 + $0x40] sm:$0xff] %vm295, %v1941
      %1962 = vst.msk [vmem:[#allocation4 + $0x48] sm:$0xff] %vm295, %v1942
      %1963 = vst.msk [vmem:[#allocation4 + $0x50] sm:$0xff] %vm295, %v1943
      %1964 = vst.msk [vmem:[#allocation4 + $0x58] sm:$0xff] %vm295, %v1944
      %1965 = vst.msk [vmem:[#allocation4 + $0x60] sm:$0xff] %vm295, %v1945
      %1966 = vst.msk [vmem:[#allocation4 + $0x68] sm:$0xff] %vm295, %v1946
      %1967 = vst.msk [vmem:[#allocation4 + $0x70] sm:$0xff] %vm295, %v1947
      %1968 = vst.msk [vmem:[#allocation4 + $0x78] sm:$0xff] %vm295, %v1948
      %1969 = vst.msk [vmem:[#allocation4 + $0x80] sm:$0xff] %vm295, %v1949
      %1970 = vst.msk [vmem:[#allocation4 + $0x88] sm:$0xff] %vm295, %v1950
      %1971 = vst.msk [vmem:[#allocation4 + $0x90] sm:$0xff] %vm295, %v1951
      %1972 = vst.msk [vmem:[#allocation4 + $0x98] sm:$0xff] %vm295, %v1952
      %v1973 = vld [vmem:[%s294 + $0x1] sm:$0xff]
      %v1974 = vld [vmem:[%s294 + $0x9] sm:$0xff]
      %v1975 = vld [vmem:[%s294 + $0x19] sm:$0xff]
      %v1976 = vld [vmem:[%s294 + $0x21] sm:$0xff]
      %v1977 = vld [vmem:[%s294 + $0x31] sm:$0xff]
      %v1978 = vld [vmem:[%s294 + $0x39] sm:$0xff]
      %v1979 = vld [vmem:[%s294 + $0x49] sm:$0xff]
      %v1980 = vld [vmem:[%s294 + $0x51] sm:$0xff]
      %v1981 = vld [vmem:[%s294 + $0x61] sm:$0xff]
      %v1982 = vld [vmem:[%s294 + $0x69] sm:$0xff]
      %v1983 = vld [vmem:[%s294 + $0x79] sm:$0xff]
      %v1984 = vld [vmem:[%s294 + $0x81] sm:$0xff]
      %v1985 = vld [vmem:[%s294 + $0x91] sm:$0xff]
      %v1986 = vld [vmem:[%s294 + $0x99] sm:$0xff]
      %v1987 = vld [vmem:[%s294 + $0xa9] sm:$0xff]
      %v1988 = vld [vmem:[%s294 + $0xb1] sm:$0xff]
      %v1989 = vld [vmem:[%s294 + $0xc1] sm:$0xff]
      %v1990 = vld [vmem:[%s294 + $0xc9] sm:$0xff]
      %v1991 = vld [vmem:[%s294 + $0xd9] sm:$0xff]
      %v1992 = vld [vmem:[%s294 + $0xe1] sm:$0xff]
      %v1993 = vld [vmem:[#allocation4] sm:$0xff]
      %v1994 = vld [vmem:[#allocation4 + $0x8] sm:$0xff]
      %v1995 = vld [vmem:[#allocation4 + $0x10] sm:$0xff]
      %v1996 = vld [vmem:[#allocation4 + $0x18] sm:$0xff]
      %v1997 = vld [vmem:[#allocation4 + $0x20] sm:$0xff]
      %v1998 = vld [vmem:[#allocation4 + $0x28] sm:$0xff]
      %v1999 = vld [vmem:[#allocation4 + $0x30] sm:$0xff]
      %v2000 = vld [vmem:[#allocation4 + $0x38] sm:$0xff]
      %v2001 = vld [vmem:[#allocation4 + $0x40] sm:$0xff]
      %v2002 = vld [vmem:[#allocation4 + $0x48] sm:$0xff]
      %v2003 = vld [vmem:[#allocation4 + $0x50] sm:$0xff]
      %v2004 = vld [vmem:[#allocation4 + $0x58] sm:$0xff]
      %v2005 = vld [vmem:[#allocation4 + $0x60] sm:$0xff]
      %v2006 = vld [vmem:[#allocation4 + $0x68] sm:$0xff]
      %v2007 = vld [vmem:[#allocation4 + $0x70] sm:$0xff]
      %v2008 = vld [vmem:[#allocation4 + $0x78] sm:$0xff]
      %v2009 = vld [vmem:[#allocation4 + $0x80] sm:$0xff]
      %v2010 = vld [vmem:[#allocation4 + $0x88] sm:$0xff]
      %v2011 = vld [vmem:[#allocation4 + $0x90] sm:$0xff]
      %v2012 = vld [vmem:[#allocation4 + $0x98] sm:$0xff]
      %s2013 = scalar_lea.vmem %s1, 28
      %v2014 = vld [vmem:[%s2013] sm:$0xf]
      %v2016 = vsel %vm295, %v1973, 0
      %v2019 = vsel %vm295, %v1974, 0
      %v2022 = vsel %vm295, %v1975, 0
      %v2025 = vsel %vm295, %v1976, 0
      %v2028 = vsel %vm295, %v1977, 0
      %v2031 = vsel %vm295, %v1978, 0
      %v2034 = vsel %vm295, %v1979, 0
      %v2037 = vsel %vm295, %v1980, 0
      %v2040 = vsel %vm295, %v1981, 0
      %v2043 = vsel %vm295, %v1982, 0
      %v2046 = vsel %vm295, %v1983, 0
      %v2049 = vsel %vm295, %v1984, 0
      %v2052 = vsel %vm295, %v1985, 0
      %v2055 = vsel %vm295, %v1986, 0
      %v2058 = vsel %vm295, %v1987, 0
      %v2061 = vsel %vm295, %v1988, 0
      %v2064 = vsel %vm295, %v1989, 0
      %v2067 = vsel %vm295, %v1990, 0
      %v2070 = vsel %vm295, %v1991, 0
      %v2073 = vsel %vm295, %v1992, 0
      %v2076 = vsel %vm520, %v2014, 0
      %2078 = vmatpush.msra.mxu0 0.0
      %2079 = vmatpush.msra.mxu0 0.0
      %2080 = vmatpush.msra.mxu0 0.0
      %2081 = vmatpush.msra.mxu0 0.0
      %2082 = vmatpush.msra.mxu0 0.0
      %2083 = vmatpush.msra.mxu0 0.0
      %2084 = vmatpush.msra.mxu0 0.0
      %2085 = vmatpush.msra.mxu0 0.0
      %2086 = vmatpush.msra.mxu0 0.0
      %2087 = vmatpush.msra.mxu0 0.0
      %2088 = vmatpush.msra.mxu0 0.0
      %2089 = vmatpush.msra.mxu0 0.0
      %2090 = vmatpush.msra.mxu0 0.0
      %2091 = vmatpush.msra.mxu0 0.0
      %2092 = vmatpush.msra.mxu0 0.0
      %2093 = vmatpush.msra.mxu0 %v2076
      %2094 = vmatmul.f32.gmra.mxu0 %v2016
      %v2095 = vpop.f32.mrf.mxu0
      %v2096 = vadd.f32 0.0, %v2095
      %2097 = vmatmul.f32.gmra.mxu0 %v2019
      %v2098 = vpop.f32.mrf.mxu0
      %v2099 = vadd.f32 0.0, %v2098
      %2100 = vmatmul.f32.gmra.mxu0 %v2022
      %v2101 = vpop.f32.mrf.mxu0
      %v2102 = vadd.f32 0.0, %v2101
      %2103 = vmatmul.f32.gmra.mxu0 %v2025
      %v2104 = vpop.f32.mrf.mxu0
      %v2105 = vadd.f32 0.0, %v2104
      %2106 = vmatmul.f32.gmra.mxu0 %v2028
      %v2107 = vpop.f32.mrf.mxu0
      %v2108 = vadd.f32 0.0, %v2107
      %2109 = vmatmul.f32.gmra.mxu0 %v2031
      %v2110 = vpop.f32.mrf.mxu0
      %v2111 = vadd.f32 0.0, %v2110
      %2112 = vmatmul.f32.gmra.mxu0 %v2034
      %v2113 = vpop.f32.mrf.mxu0
      %v2114 = vadd.f32 0.0, %v2113
      %2115 = vmatmul.f32.gmra.mxu0 %v2037
      %v2116 = vpop.f32.mrf.mxu0
      %v2117 = vadd.f32 0.0, %v2116
      %2118 = vmatmul.f32.gmra.mxu0 %v2040
      %v2119 = vpop.f32.mrf.mxu0
      %v2120 = vadd.f32 0.0, %v2119
      %2121 = vmatmul.f32.gmra.mxu0 %v2043
      %v2122 = vpop.f32.mrf.mxu0
      %v2123 = vadd.f32 0.0, %v2122
      %2124 = vmatmul.f32.gmra.mxu0 %v2046
      %v2125 = vpop.f32.mrf.mxu0
      %v2126 = vadd.f32 0.0, %v2125
      %2127 = vmatmul.f32.gmra.mxu0 %v2049
      %v2128 = vpop.f32.mrf.mxu0
      %v2129 = vadd.f32 0.0, %v2128
      %2130 = vmatmul.f32.gmra.mxu0 %v2052
      %v2131 = vpop.f32.mrf.mxu0
      %v2132 = vadd.f32 0.0, %v2131
      %2133 = vmatmul.f32.gmra.mxu0 %v2055
      %v2134 = vpop.f32.mrf.mxu0
      %v2135 = vadd.f32 0.0, %v2134
      %2136 = vmatmul.f32.gmra.mxu0 %v2058
      %v2137 = vpop.f32.mrf.mxu0
      %v2138 = vadd.f32 0.0, %v2137
      %2139 = vmatmul.f32.gmra.mxu0 %v2061
      %v2140 = vpop.f32.mrf.mxu0
      %v2141 = vadd.f32 0.0, %v2140
      %2142 = vmatmul.f32.gmra.mxu0 %v2064
      %v2143 = vpop.f32.mrf.mxu0
      %v2144 = vadd.f32 0.0, %v2143
      %2145 = vmatmul.f32.gmra.mxu0 %v2067
      %v2146 = vpop.f32.mrf.mxu0
      %v2147 = vadd.f32 0.0, %v2146
      %2148 = vmatmul.f32.gmra.mxu0 %v2070
      %v2149 = vpop.f32.mrf.mxu0
      %v2150 = vadd.f32 0.0, %v2149
      %2151 = vmatmul.f32.gmra.mxu0 %v2073
      %v2152 = vpop.f32.mrf.mxu0
      %v2153 = vadd.f32 0.0, %v2152
      %2154 = vdwg.mxu0
      %v2155 = vadd.f32 %v1993, %v2096
      %v2156 = vadd.f32 %v1994, %v2099
      %v2157 = vadd.f32 %v1995, %v2102
      %v2158 = vadd.f32 %v1996, %v2105
      %v2159 = vadd.f32 %v1997, %v2108
      %v2160 = vadd.f32 %v1998, %v2111
      %v2161 = vadd.f32 %v1999, %v2114
      %v2162 = vadd.f32 %v2000, %v2117
      %v2163 = vadd.f32 %v2001, %v2120
      %v2164 = vadd.f32 %v2002, %v2123
      %v2165 = vadd.f32 %v2003, %v2126
      %v2166 = vadd.f32 %v2004, %v2129
      %v2167 = vadd.f32 %v2005, %v2132
      %v2168 = vadd.f32 %v2006, %v2135
      %v2169 = vadd.f32 %v2007, %v2138
      %v2170 = vadd.f32 %v2008, %v2141
      %v2171 = vadd.f32 %v2009, %v2144
      %v2172 = vadd.f32 %v2010, %v2147
      %v2173 = vadd.f32 %v2011, %v2150
      %v2174 = vadd.f32 %v2012, %v2153
      %2175 = vst.msk [vmem:[#allocation4] sm:$0xff] %vm295, %v2155
      %2176 = vst.msk [vmem:[#allocation4 + $0x8] sm:$0xff] %vm295, %v2156
      %2177 = vst.msk [vmem:[#allocation4 + $0x10] sm:$0xff] %vm295, %v2157
      %2178 = vst.msk [vmem:[#allocation4 + $0x18] sm:$0xff] %vm295, %v2158
      %2179 = vst.msk [vmem:[#allocation4 + $0x20] sm:$0xff] %vm295, %v2159
      %2180 = vst.msk [vmem:[#allocation4 + $0x28] sm:$0xff] %vm295, %v2160
      %2181 = vst.msk [vmem:[#allocation4 + $0x30] sm:$0xff] %vm295, %v2161
      %2182 = vst.msk [vmem:[#allocation4 + $0x38] sm:$0xff] %vm295, %v2162
      %2183 = vst.msk [vmem:[#allocation4 + $0x40] sm:$0xff] %vm295, %v2163
      %2184 = vst.msk [vmem:[#allocation4 + $0x48] sm:$0xff] %vm295, %v2164
      %2185 = vst.msk [vmem:[#allocation4 + $0x50] sm:$0xff] %vm295, %v2165
      %2186 = vst.msk [vmem:[#allocation4 + $0x58] sm:$0xff] %vm295, %v2166
      %2187 = vst.msk [vmem:[#allocation4 + $0x60] sm:$0xff] %vm295, %v2167
      %2188 = vst.msk [vmem:[#allocation4 + $0x68] sm:$0xff] %vm295, %v2168
      %2189 = vst.msk [vmem:[#allocation4 + $0x70] sm:$0xff] %vm295, %v2169
      %2190 = vst.msk [vmem:[#allocation4 + $0x78] sm:$0xff] %vm295, %v2170
      %2191 = vst.msk [vmem:[#allocation4 + $0x80] sm:$0xff] %vm295, %v2171
      %2192 = vst.msk [vmem:[#allocation4 + $0x88] sm:$0xff] %vm295, %v2172
      %2193 = vst.msk [vmem:[#allocation4 + $0x90] sm:$0xff] %vm295, %v2173
      %2194 = vst.msk [vmem:[#allocation4 + $0x98] sm:$0xff] %vm295, %v2174
      %v2195 = vld [vmem:[%s294 + $0x2] sm:$0xff]
      %v2196 = vld [vmem:[%s294 + $0xa] sm:$0xff]
      %v2197 = vld [vmem:[%s294 + $0x1a] sm:$0xff]
      %v2198 = vld [vmem:[%s294 + $0x22] sm:$0xff]
      %v2199 = vld [vmem:[%s294 + $0x32] sm:$0xff]
      %v2200 = vld [vmem:[%s294 + $0x3a] sm:$0xff]
      %v2201 = vld [vmem:[%s294 + $0x4a] sm:$0xff]
      %v2202 = vld [vmem:[%s294 + $0x52] sm:$0xff]
      %v2203 = vld [vmem:[%s294 + $0x62] sm:$0xff]
      %v2204 = vld [vmem:[%s294 + $0x6a] sm:$0xff]
      %v2205 = vld [vmem:[%s294 + $0x7a] sm:$0xff]
      %v2206 = vld [vmem:[%s294 + $0x82] sm:$0xff]
      %v2207 = vld [vmem:[%s294 + $0x92] sm:$0xff]
      %v2208 = vld [vmem:[%s294 + $0x9a] sm:$0xff]
      %v2209 = vld [vmem:[%s294 + $0xaa] sm:$0xff]
      %v2210 = vld [vmem:[%s294 + $0xb2] sm:$0xff]
      %v2211 = vld [vmem:[%s294 + $0xc2] sm:$0xff]
      %v2212 = vld [vmem:[%s294 + $0xca] sm:$0xff]
      %v2213 = vld [vmem:[%s294 + $0xda] sm:$0xff]
      %v2214 = vld [vmem:[%s294 + $0xe2] sm:$0xff]
      %v2215 = vld [vmem:[#allocation4] sm:$0xff]
      %v2216 = vld [vmem:[#allocation4 + $0x8] sm:$0xff]
      %v2217 = vld [vmem:[#allocation4 + $0x10] sm:$0xff]
      %v2218 = vld [vmem:[#allocation4 + $0x18] sm:$0xff]
      %v2219 = vld [vmem:[#allocation4 + $0x20] sm:$0xff]
      %v2220 = vld [vmem:[#allocation4 + $0x28] sm:$0xff]
      %v2221 = vld [vmem:[#allocation4 + $0x30] sm:$0xff]
      %v2222 = vld [vmem:[#allocation4 + $0x38] sm:$0xff]
      %v2223 = vld [vmem:[#allocation4 + $0x40] sm:$0xff]
      %v2224 = vld [vmem:[#allocation4 + $0x48] sm:$0xff]
      %v2225 = vld [vmem:[#allocation4 + $0x50] sm:$0xff]
      %v2226 = vld [vmem:[#allocation4 + $0x58] sm:$0xff]
      %v2227 = vld [vmem:[#allocation4 + $0x60] sm:$0xff]
      %v2228 = vld [vmem:[#allocation4 + $0x68] sm:$0xff]
      %v2229 = vld [vmem:[#allocation4 + $0x70] sm:$0xff]
      %v2230 = vld [vmem:[#allocation4 + $0x78] sm:$0xff]
      %v2231 = vld [vmem:[#allocation4 + $0x80] sm:$0xff]
      %v2232 = vld [vmem:[#allocation4 + $0x88] sm:$0xff]
      %v2233 = vld [vmem:[#allocation4 + $0x90] sm:$0xff]
      %v2234 = vld [vmem:[#allocation4 + $0x98] sm:$0xff]
      %s2235 = scalar_lea.vmem %s1, 32
      %v2236 = vld [vmem:[%s2235] sm:$0xf]
      %v2238 = vsel %vm295, %v2195, 0
      %v2241 = vsel %vm295, %v2196, 0
      %v2244 = vsel %vm295, %v2197, 0
      %v2247 = vsel %vm295, %v2198, 0
      %v2250 = vsel %vm295, %v2199, 0
      %v2253 = vsel %vm295, %v2200, 0
      %v2256 = vsel %vm295, %v2201, 0
      %v2259 = vsel %vm295, %v2202, 0
      %v2262 = vsel %vm295, %v2203, 0
      %v2265 = vsel %vm295, %v2204, 0
      %v2268 = vsel %vm295, %v2205, 0
      %v2271 = vsel %vm295, %v2206, 0
      %v2274 = vsel %vm295, %v2207, 0
      %v2277 = vsel %vm295, %v2208, 0
      %v2280 = vsel %vm295, %v2209, 0
      %v2283 = vsel %vm295, %v2210, 0
      %v2286 = vsel %vm295, %v2211, 0
      %v2289 = vsel %vm295, %v2212, 0
      %v2292 = vsel %vm295, %v2213, 0
      %v2295 = vsel %vm295, %v2214, 0
      %v2298 = vsel %vm520, %v2236, 0
      %2300 = vmatpush.msra.mxu0 0.0
      %2301 = vmatpush.msra.mxu0 0.0
      %2302 = vmatpush.msra.mxu0 0.0
      %2303 = vmatpush.msra.mxu0 0.0
      %2304 = vmatpush.msra.mxu0 0.0
      %2305 = vmatpush.msra.mxu0 0.0
      %2306 = vmatpush.msra.mxu0 0.0
      %2307 = vmatpush.msra.mxu0 0.0
      %2308 = vmatpush.msra.mxu0 0.0
      %2309 = vmatpush.msra.mxu0 0.0
      %2310 = vmatpush.msra.mxu0 0.0
      %2311 = vmatpush.msra.mxu0 0.0
      %2312 = vmatpush.msra.mxu0 0.0
      %2313 = vmatpush.msra.mxu0 0.0
      %2314 = vmatpush.msra.mxu0 0.0
      %2315 = vmatpush.msra.mxu0 %v2298
      %2316 = vmatmul.f32.gmra.mxu0 %v2238
      %v2317 = vpop.f32.mrf.mxu0
      %v2318 = vadd.f32 0.0, %v2317
      %2319 = vmatmul.f32.gmra.mxu0 %v2241
      %v2320 = vpop.f32.mrf.mxu0
      %v2321 = vadd.f32 0.0, %v2320
      %2322 = vmatmul.f32.gmra.mxu0 %v2244
      %v2323 = vpop.f32.mrf.mxu0
      %v2324 = vadd.f32 0.0, %v2323
      %2325 = vmatmul.f32.gmra.mxu0 %v2247
      %v2326 = vpop.f32.mrf.mxu0
      %v2327 = vadd.f32 0.0, %v2326
      %2328 = vmatmul.f32.gmra.mxu0 %v2250
      %v2329 = vpop.f32.mrf.mxu0
      %v2330 = vadd.f32 0.0, %v2329
      %2331 = vmatmul.f32.gmra.mxu0 %v2253
      %v2332 = vpop.f32.mrf.mxu0
      %v2333 = vadd.f32 0.0, %v2332
      %2334 = vmatmul.f32.gmra.mxu0 %v2256
      %v2335 = vpop.f32.mrf.mxu0
      %v2336 = vadd.f32 0.0, %v2335
      %2337 = vmatmul.f32.gmra.mxu0 %v2259
      %v2338 = vpop.f32.mrf.mxu0
      %v2339 = vadd.f32 0.0, %v2338
      %2340 = vmatmul.f32.gmra.mxu0 %v2262
      %v2341 = vpop.f32.mrf.mxu0
      %v2342 = vadd.f32 0.0, %v2341
      %2343 = vmatmul.f32.gmra.mxu0 %v2265
      %v2344 = vpop.f32.mrf.mxu0
      %v2345 = vadd.f32 0.0, %v2344
      %2346 = vmatmul.f32.gmra.mxu0 %v2268
      %v2347 = vpop.f32.mrf.mxu0
      %v2348 = vadd.f32 0.0, %v2347
      %2349 = vmatmul.f32.gmra.mxu0 %v2271
      %v2350 = vpop.f32.mrf.mxu0
      %v2351 = vadd.f32 0.0, %v2350
      %2352 = vmatmul.f32.gmra.mxu0 %v2274
      %v2353 = vpop.f32.mrf.mxu0
      %v2354 = vadd.f32 0.0, %v2353
      %2355 = vmatmul.f32.gmra.mxu0 %v2277
      %v2356 = vpop.f32.mrf.mxu0
      %v2357 = vadd.f32 0.0, %v2356
      %2358 = vmatmul.f32.gmra.mxu0 %v2280
      %v2359 = vpop.f32.mrf.mxu0
      %v2360 = vadd.f32 0.0, %v2359
      %2361 = vmatmul.f32.gmra.mxu0 %v2283
      %v2362 = vpop.f32.mrf.mxu0
      %v2363 = vadd.f32 0.0, %v2362
      %2364 = vmatmul.f32.gmra.mxu0 %v2286
      %v2365 = vpop.f32.mrf.mxu0
      %v2366 = vadd.f32 0.0, %v2365
      %2367 = vmatmul.f32.gmra.mxu0 %v2289
      %v2368 = vpop.f32.mrf.mxu0
      %v2369 = vadd.f32 0.0, %v2368
      %2370 = vmatmul.f32.gmra.mxu0 %v2292
      %v2371 = vpop.f32.mrf.mxu0
      %v2372 = vadd.f32 0.0, %v2371
      %2373 = vmatmul.f32.gmra.mxu0 %v2295
      %v2374 = vpop.f32.mrf.mxu0
      %v2375 = vadd.f32 0.0, %v2374
      %2376 = vdwg.mxu0
      %v2377 = vadd.f32 %v2215, %v2318
      %v2378 = vadd.f32 %v2216, %v2321
      %v2379 = vadd.f32 %v2217, %v2324
      %v2380 = vadd.f32 %v2218, %v2327
      %v2381 = vadd.f32 %v2219, %v2330
      %v2382 = vadd.f32 %v2220, %v2333
      %v2383 = vadd.f32 %v2221, %v2336
      %v2384 = vadd.f32 %v2222, %v2339
      %v2385 = vadd.f32 %v2223, %v2342
      %v2386 = vadd.f32 %v2224, %v2345
      %v2387 = vadd.f32 %v2225, %v2348
      %v2388 = vadd.f32 %v2226, %v2351
      %v2389 = vadd.f32 %v2227, %v2354
      %v2390 = vadd.f32 %v2228, %v2357
      %v2391 = vadd.f32 %v2229, %v2360
      %v2392 = vadd.f32 %v2230, %v2363
      %v2393 = vadd.f32 %v2231, %v2366
      %v2394 = vadd.f32 %v2232, %v2369
      %v2395 = vadd.f32 %v2233, %v2372
      %v2396 = vadd.f32 %v2234, %v2375
      %2397 = vst.msk [vmem:[#allocation4] sm:$0xff] %vm295, %v2377
      %2398 = vst.msk [vmem:[#allocation4 + $0x8] sm:$0xff] %vm295, %v2378
      %2399 = vst.msk [vmem:[#allocation4 + $0x10] sm:$0xff] %vm295, %v2379
      %2400 = vst.msk [vmem:[#allocation4 + $0x18] sm:$0xff] %vm295, %v2380
      %2401 = vst.msk [vmem:[#allocation4 + $0x20] sm:$0xff] %vm295, %v2381
      %2402 = vst.msk [vmem:[#allocation4 + $0x28] sm:$0xff] %vm295, %v2382
      %2403 = vst.msk [vmem:[#allocation4 + $0x30] sm:$0xff] %vm295, %v2383
      %2404 = vst.msk [vmem:[#allocation4 + $0x38] sm:$0xff] %vm295, %v2384
      %2405 = vst.msk [vmem:[#allocation4 + $0x40] sm:$0xff] %vm295, %v2385
      %2406 = vst.msk [vmem:[#allocation4 + $0x48] sm:$0xff] %vm295, %v2386
      %2407 = vst.msk [vmem:[#allocation4 + $0x50] sm:$0xff] %vm295, %v2387
      %2408 = vst.msk [vmem:[#allocation4 + $0x58] sm:$0xff] %vm295, %v2388
      %2409 = vst.msk [vmem:[#allocation4 + $0x60] sm:$0xff] %vm295, %v2389
      %2410 = vst.msk [vmem:[#allocation4 + $0x68] sm:$0xff] %vm295, %v2390
      %2411 = vst.msk [vmem:[#allocation4 + $0x70] sm:$0xff] %vm295, %v2391
      %2412 = vst.msk [vmem:[#allocation4 + $0x78] sm:$0xff] %vm295, %v2392
      %2413 = vst.msk [vmem:[#allocation4 + $0x80] sm:$0xff] %vm295, %v2393
      %2414 = vst.msk [vmem:[#allocation4 + $0x88] sm:$0xff] %vm295, %v2394
      %2415 = vst.msk [vmem:[#allocation4 + $0x90] sm:$0xff] %vm295, %v2395
      %2416 = vst.msk [vmem:[#allocation4 + $0x98] sm:$0xff] %vm295, %v2396
      %v2417 = vld [vmem:[#allocation4] sm:$0xff]
      %v2418 = vld [vmem:[#allocation4 + $0x8] sm:$0xff]
      %v2419 = vld [vmem:[#allocation4 + $0x10] sm:$0xff]
      %v2420 = vld [vmem:[#allocation4 + $0x18] sm:$0xff]
      %v2421 = vld [vmem:[#allocation4 + $0x20] sm:$0xff]
      %v2422 = vld [vmem:[#allocation4 + $0x28] sm:$0xff]
      %v2423 = vld [vmem:[#allocation4 + $0x30] sm:$0xff]
      %v2424 = vld [vmem:[#allocation4 + $0x38] sm:$0xff]
      %v2425 = vld [vmem:[#allocation4 + $0x40] sm:$0xff]
      %v2426 = vld [vmem:[#allocation4 + $0x48] sm:$0xff]
      %v2427 = vld [vmem:[#allocation4 + $0x50] sm:$0xff]
      %v2428 = vld [vmem:[#allocation4 + $0x58] sm:$0xff]
      %v2429 = vld [vmem:[#allocation4 + $0x60] sm:$0xff]
      %v2430 = vld [vmem:[#allocation4 + $0x68] sm:$0xff]
      %v2431 = vld [vmem:[#allocation4 + $0x70] sm:$0xff]
      %v2432 = vld [vmem:[#allocation4 + $0x78] sm:$0xff]
      %v2433 = vld [vmem:[#allocation4 + $0x80] sm:$0xff]
      %v2434 = vld [vmem:[#allocation4 + $0x88] sm:$0xff]
      %v2435 = vld [vmem:[#allocation4 + $0x90] sm:$0xff]
      %v2436 = vld [vmem:[#allocation4 + $0x98] sm:$0xff]
      %v2437 = vtanh.pop %v2417
      %v2438 = vtanh.pop %v2418
      %v2439 = vtanh.pop %v2419
      %v2440 = vtanh.pop %v2420
      %v2441 = vtanh.pop %v2421
      %v2442 = vtanh.pop %v2422
      %v2443 = vtanh.pop %v2423
      %v2444 = vtanh.pop %v2424
      %v2445 = vtanh.pop %v2425
      %v2446 = vtanh.pop %v2426
      %v2447 = vtanh.pop %v2427
      %v2448 = vtanh.pop %v2428
      %v2449 = vtanh.pop %v2429
      %v2450 = vtanh.pop %v2430
      %v2451 = vtanh.pop %v2431
      %v2452 = vtanh.pop %v2432
      %v2453 = vtanh.pop %v2433
      %v2454 = vtanh.pop %v2434
      %v2455 = vtanh.pop %v2435
      %v2456 = vtanh.pop %v2436
      %2457 = vst.msk [vmem:[#allocation3] sm:$0x1] %vm251, 0.0
      %2458 = vst.msk [vmem:[#allocation3 + $0x18] sm:$0x1] %vm251, 0.0
      %2459 = vst.msk [vmem:[#allocation3 + $0x30] sm:$0x1] %vm251, 0.0
      %2460 = vst.msk [vmem:[#allocation3 + $0x48] sm:$0x1] %vm251, 0.0
      %2461 = vst.msk [vmem:[#allocation3 + $0x60] sm:$0x1] %vm251, 0.0
      %2462 = vst.msk [vmem:[#allocation3 + $0x78] sm:$0x1] %vm251, 0.0
      %2463 = vst.msk [vmem:[#allocation3 + $0x90] sm:$0x1] %vm251, 0.0
      %2464 = vst.msk [vmem:[#allocation3 + $0xa8] sm:$0x1] %vm251, 0.0
      %2465 = vst.msk [vmem:[#allocation3 + $0xc0] sm:$0x1] %vm251, 0.0
      %2466 = vst.msk [vmem:[#allocation3 + $0xd8] sm:$0x1] %vm251, 0.0
      %2467 = vst.msk [vmem:[#allocation3 + $0x11] sm:$0x1] %vm251, 0.0
      %2468 = vst.msk [vmem:[#allocation3 + $0x29] sm:$0x1] %vm251, 0.0
      %2469 = vst.msk [vmem:[#allocation3 + $0x41] sm:$0x1] %vm251, 0.0
      %2470 = vst.msk [vmem:[#allocation3 + $0x59] sm:$0x1] %vm251, 0.0
      %2471 = vst.msk [vmem:[#allocation3 + $0x71] sm:$0x1] %vm251, 0.0
      %2472 = vst.msk [vmem:[#allocation3 + $0x89] sm:$0x1] %vm251, 0.0
      %2473 = vst.msk [vmem:[#allocation3 + $0xa1] sm:$0x1] %vm251, 0.0
      %2474 = vst.msk [vmem:[#allocation3 + $0xb9] sm:$0x1] %vm251, 0.0
      %2475 = vst.msk [vmem:[#allocation3 + $0xd1] sm:$0x1] %vm251, 0.0
      %2476 = vst.msk [vmem:[#allocation3 + $0xe9] sm:$0x1] %vm251, 0.0
      %2477 = vst.msk [vmem:[#allocation3 + $0x1] sm:$0xff] %vm295, %v2437
      %2478 = vst.msk [vmem:[#allocation3 + $0x9] sm:$0xff] %vm295, %v2438
      %2479 = vst.msk [vmem:[#allocation3 + $0x19] sm:$0xff] %vm295, %v2439
      %2480 = vst.msk [vmem:[#allocation3 + $0x21] sm:$0xff] %vm295, %v2440
      %2481 = vst.msk [vmem:[#allocation3 + $0x31] sm:$0xff] %vm295, %v2441
      %2482 = vst.msk [vmem:[#allocation3 + $0x39] sm:$0xff] %vm295, %v2442
      %2483 = vst.msk [vmem:[#allocation3 + $0x49] sm:$0xff] %vm295, %v2443
      %2484 = vst.msk [vmem:[#allocation3 + $0x51] sm:$0xff] %vm295, %v2444
      %2485 = vst.msk [vmem:[#allocation3 + $0x61] sm:$0xff] %vm295, %v2445
      %2486 = vst.msk [vmem:[#allocation3 + $0x69] sm:$0xff] %vm295, %v2446
      %2487 = vst.msk [vmem:[#allocation3 + $0x79] sm:$0xff] %vm295, %v2447
      %2488 = vst.msk [vmem:[#allocation3 + $0x81] sm:$0xff] %vm295, %v2448
      %2489 = vst.msk [vmem:[#allocation3 + $0x91] sm:$0xff] %vm295, %v2449
      %2490 = vst.msk [vmem:[#allocation3 + $0x99] sm:$0xff] %vm295, %v2450
      %2491 = vst.msk [vmem:[#allocation3 + $0xa9] sm:$0xff] %vm295, %v2451
      %2492 = vst.msk [vmem:[#allocation3 + $0xb1] sm:$0xff] %vm295, %v2452
      %2493 = vst.msk [vmem:[#allocation3 + $0xc1] sm:$0xff] %vm295, %v2453
      %2494 = vst.msk [vmem:[#allocation3 + $0xc9] sm:$0xff] %vm295, %v2454
      %2495 = vst.msk [vmem:[#allocation3 + $0xd9] sm:$0xff] %vm295, %v2455
      %2496 = vst.msk [vmem:[#allocation3 + $0xe1] sm:$0xff] %vm295, %v2456
      %p2497 = scmp.eq.s32.totalorder %s250, 0
      // Predicated region
      $region41: #{tpu_custom_call.1} parent=39 // pred_check
        %p2498 = pneg %p2497
      $region42: #{tpu_custom_call.1} parent=39 // pred_check_branch
        %2500 = sbr.rel (%p2498) target = $region44
      $region43: #{tpu_custom_call.1} parent=39 // pred_region
        %2501 = vst.msk [vmem:[#allocation3 + $0x1] sm:$0xff] %vm295, 0.0
        %2502 = vst.msk [vmem:[#allocation3 + $0x9] sm:$0xff] %vm295, 0.0
      $region44: #{tpu_custom_call.1} parent=39 // pred_fallthru
        _
      %p2503 = scmp.eq.s32.totalorder %s353, 16
      // Predicated region
      $region45: #{tpu_custom_call.1} parent=39 // pred_check
        %p2504 = pneg %p2503
      $region46: #{tpu_custom_call.1} parent=39 // pred_check_branch
        %2506 = sbr.rel (%p2504) target = $region48
      $region47: #{tpu_custom_call.1} parent=39 // pred_region
        %s2507 = scalar_lea.vmem [#allocation3], 216
        %2508 = vst.msk [vmem:[%s2507 + $0x1] sm:$0xff] %vm295, 0.0
        %2509 = vst.msk [vmem:[%s2507 + $0x9] sm:$0xff] %vm295, 0.0
      $region48: #{tpu_custom_call.1} parent=39 // pred_fallthru
        _
      %v2510 = vld [vmem:[%s4] sm:$0x1]
      %v2512 = vperm.slane %v2510, 0
      %2514 = vst.msk [vmem:[#allocation5] sm:$0xff] %vm295, %v2512
      %2515 = vst.msk [vmem:[#allocation5 + $0x8] sm:$0xff] %vm295, %v2512
      %2516 = vst.msk [vmem:[#allocation5 + $0x10] sm:$0xff] %vm295, %v2512
      %2517 = vst.msk [vmem:[#allocation5 + $0x18] sm:$0xff] %vm295, %v2512
      %2518 = vst.msk [vmem:[#allocation5 + $0x20] sm:$0xff] %vm295, %v2512
      %2519 = vst.msk [vmem:[#allocation5 + $0x28] sm:$0xff] %vm295, %v2512
      %2520 = vst.msk [vmem:[#allocation5 + $0x30] sm:$0xff] %vm295, %v2512
      %2521 = vst.msk [vmem:[#allocation5 + $0x38] sm:$0xff] %vm295, %v2512
      %2522 = vst.msk [vmem:[#allocation5 + $0x40] sm:$0xff] %vm295, %v2512
      %2523 = vst.msk [vmem:[#allocation5 + $0x48] sm:$0xff] %vm295, %v2512
      %2524 = vst.msk [vmem:[#allocation5 + $0x50] sm:$0xff] %vm295, %v2512
      %2525 = vst.msk [vmem:[#allocation5 + $0x58] sm:$0xff] %vm295, %v2512
      %2526 = vst.msk [vmem:[#allocation5 + $0x60] sm:$0xff] %vm295, %v2512
      %2527 = vst.msk [vmem:[#allocation5 + $0x68] sm:$0xff] %vm295, %v2512
      %2528 = vst.msk [vmem:[#allocation5 + $0x70] sm:$0xff] %vm295, %v2512
      %2529 = vst.msk [vmem:[#allocation5 + $0x78] sm:$0xff] %vm295, %v2512
      %v2530 = vld [vmem:[#allocation3] sm:$0xff]
      %v2531 = vld [vmem:[#allocation3 + $0x8] sm:$0xff]
      %v2532 = vld [vmem:[#allocation3 + $0x18] sm:$0xff]
      %v2533 = vld [vmem:[#allocation3 + $0x20] sm:$0xff]
      %v2534 = vld [vmem:[#allocation3 + $0x30] sm:$0xff]
      %v2535 = vld [vmem:[#allocation3 + $0x38] sm:$0xff]
      %v2536 = vld [vmem:[#allocation3 + $0x48] sm:$0xff]
      %v2537 = vld [vmem:[#allocation3 + $0x50] sm:$0xff]
      %v2538 = vld [vmem:[#allocation3 + $0x60] sm:$0xff]
      %v2539 = vld [vmem:[#allocation3 + $0x68] sm:$0xff]
      %v2540 = vld [vmem:[#allocation3 + $0x78] sm:$0xff]
      %v2541 = vld [vmem:[#allocation3 + $0x80] sm:$0xff]
      %v2542 = vld [vmem:[#allocation3 + $0x90] sm:$0xff]
      %v2543 = vld [vmem:[#allocation3 + $0x98] sm:$0xff]
      %v2544 = vld [vmem:[#allocation3 + $0xa8] sm:$0xff]
      %v2545 = vld [vmem:[#allocation3 + $0xb0] sm:$0xff]
      %v2546 = vld [vmem:[#allocation5] sm:$0xff]
      %v2547 = vld [vmem:[#allocation5 + $0x8] sm:$0xff]
      %v2548 = vld [vmem:[#allocation5 + $0x10] sm:$0xff]
      %v2549 = vld [vmem:[#allocation5 + $0x18] sm:$0xff]
      %v2550 = vld [vmem:[#allocation5 + $0x20] sm:$0xff]
      %v2551 = vld [vmem:[#allocation5 + $0x28] sm:$0xff]
      %v2552 = vld [vmem:[#allocation5 + $0x30] sm:$0xff]
      %v2553 = vld [vmem:[#allocation5 + $0x38] sm:$0xff]
      %v2554 = vld [vmem:[#allocation5 + $0x40] sm:$0xff]
      %v2555 = vld [vmem:[#allocation5 + $0x48] sm:$0xff]
      %v2556 = vld [vmem:[#allocation5 + $0x50] sm:$0xff]
      %v2557 = vld [vmem:[#allocation5 + $0x58] sm:$0xff]
      %v2558 = vld [vmem:[#allocation5 + $0x60] sm:$0xff]
      %v2559 = vld [vmem:[#allocation5 + $0x68] sm:$0xff]
      %v2560 = vld [vmem:[#allocation5 + $0x70] sm:$0xff]
      %v2561 = vld [vmem:[#allocation5 + $0x78] sm:$0xff]
      %v2562 = vld [vmem:[%s3] sm:$0xf]
      %v2564 = vsel %vm295, %v2530, 0
      %v2567 = vsel %vm295, %v2531, 0
      %v2570 = vsel %vm295, %v2532, 0
      %v2573 = vsel %vm295, %v2533, 0
      %v2576 = vsel %vm295, %v2534, 0
      %v2579 = vsel %vm295, %v2535, 0
      %v2582 = vsel %vm295, %v2536, 0
      %v2585 = vsel %vm295, %v2537, 0
      %v2588 = vsel %vm295, %v2538, 0
      %v2591 = vsel %vm295, %v2539, 0
      %v2594 = vsel %vm295, %v2540, 0
      %v2597 = vsel %vm295, %v2541, 0
      %v2600 = vsel %vm295, %v2542, 0
      %v2603 = vsel %vm295, %v2543, 0
      %v2606 = vsel %vm295, %v2544, 0
      %v2609 = vsel %vm295, %v2545, 0
      %v2612 = vsel %vm520, %v2562, 0
      %2614 = vmatpush.msra.mxu0 0.0
      %2615 = vmatpush.msra.mxu0 0.0
      %2616 = vmatpush.msra.mxu0 0.0
      %2617 = vmatpush.msra.mxu0 0.0
      %2618 = vmatpush.msra.mxu0 0.0
      %2619 = vmatpush.msra.mxu0 0.0
      %2620 = vmatpush.msra.mxu0 0.0
      %2621 = vmatpush.msra.mxu0 0.0
      %2622 = vmatpush.msra.mxu0 0.0
      %2623 = vmatpush.msra.mxu0 0.0
      %2624 = vmatpush.msra.mxu0 0.0
      %2625 = vmatpush.msra.mxu0 0.0
      %2626 = vmatpush.msra.mxu0 0.0
      %2627 = vmatpush.msra.mxu0 0.0
      %2628 = vmatpush.msra.mxu0 0.0
      %2629 = vmatpush.msra.mxu0 %v2612
      %2630 = vmatmul.f32.gmra.mxu0 %v2564
      %v2631 = vpop.f32.mrf.mxu0
      %v2632 = vadd.f32 0.0, %v2631
      %2633 = vmatmul.f32.gmra.mxu0 %v2567
      %v2634 = vpop.f32.mrf.mxu0
      %v2635 = vadd.f32 0.0, %v2634
      %2636 = vmatmul.f32.gmra.mxu0 %v2570
      %v2637 = vpop.f32.mrf.mxu0
      %v2638 = vadd.f32 0.0, %v2637
      %2639 = vmatmul.f32.gmra.mxu0 %v2573
      %v2640 = vpop.f32.mrf.mxu0
      %v2641 = vadd.f32 0.0, %v2640
      %2642 = vmatmul.f32.gmra.mxu0 %v2576
      %v2643 = vpop.f32.mrf.mxu0
      %v2644 = vadd.f32 0.0, %v2643
      %2645 = vmatmul.f32.gmra.mxu0 %v2579
      %v2646 = vpop.f32.mrf.mxu0
      %v2647 = vadd.f32 0.0, %v2646
      %2648 = vmatmul.f32.gmra.mxu0 %v2582
      %v2649 = vpop.f32.mrf.mxu0
      %v2650 = vadd.f32 0.0, %v2649
      %2651 = vmatmul.f32.gmra.mxu0 %v2585
      %v2652 = vpop.f32.mrf.mxu0
      %v2653 = vadd.f32 0.0, %v2652
      %2654 = vmatmul.f32.gmra.mxu0 %v2588
      %v2655 = vpop.f32.mrf.mxu0
      %v2656 = vadd.f32 0.0, %v2655
      %2657 = vmatmul.f32.gmra.mxu0 %v2591
      %v2658 = vpop.f32.mrf.mxu0
      %v2659 = vadd.f32 0.0, %v2658
      %2660 = vmatmul.f32.gmra.mxu0 %v2594
      %v2661 = vpop.f32.mrf.mxu0
      %v2662 = vadd.f32 0.0, %v2661
      %2663 = vmatmul.f32.gmra.mxu0 %v2597
      %v2664 = vpop.f32.mrf.mxu0
      %v2665 = vadd.f32 0.0, %v2664
      %2666 = vmatmul.f32.gmra.mxu0 %v2600
      %v2667 = vpop.f32.mrf.mxu0
      %v2668 = vadd.f32 0.0, %v2667
      %2669 = vmatmul.f32.gmra.mxu0 %v2603
      %v2670 = vpop.f32.mrf.mxu0
      %v2671 = vadd.f32 0.0, %v2670
      %2672 = vmatmul.f32.gmra.mxu0 %v2606
      %v2673 = vpop.f32.mrf.mxu0
      %v2674 = vadd.f32 0.0, %v2673
      %2675 = vmatmul.f32.gmra.mxu0 %v2609
      %v2676 = vpop.f32.mrf.mxu0
      %v2677 = vadd.f32 0.0, %v2676
      %2678 = vdwg.mxu0
      %v2679 = vadd.f32 %v2546, %v2632
      %v2680 = vadd.f32 %v2547, %v2635
      %v2681 = vadd.f32 %v2548, %v2638
      %v2682 = vadd.f32 %v2549, %v2641
      %v2683 = vadd.f32 %v2550, %v2644
      %v2684 = vadd.f32 %v2551, %v2647
      %v2685 = vadd.f32 %v2552, %v2650
      %v2686 = vadd.f32 %v2553, %v2653
      %v2687 = vadd.f32 %v2554, %v2656
      %v2688 = vadd.f32 %v2555, %v2659
      %v2689 = vadd.f32 %v2556, %v2662
      %v2690 = vadd.f32 %v2557, %v2665
      %v2691 = vadd.f32 %v2558, %v2668
      %v2692 = vadd.f32 %v2559, %v2671
      %v2693 = vadd.f32 %v2560, %v2674
      %v2694 = vadd.f32 %v2561, %v2677
      %2695 = vst.msk [vmem:[#allocation5] sm:$0xff] %vm295, %v2679
      %2696 = vst.msk [vmem:[#allocation5 + $0x8] sm:$0xff] %vm295, %v2680
      %2697 = vst.msk [vmem:[#allocation5 + $0x10] sm:$0xff] %vm295, %v2681
      %2698 = vst.msk [vmem:[#allocation5 + $0x18] sm:$0xff] %vm295, %v2682
      %2699 = vst.msk [vmem:[#allocation5 + $0x20] sm:$0xff] %vm295, %v2683
      %2700 = vst.msk [vmem:[#allocation5 + $0x28] sm:$0xff] %vm295, %v2684
      %2701 = vst.msk [vmem:[#allocation5 + $0x30] sm:$0xff] %vm295, %v2685
      %2702 = vst.msk [vmem:[#allocation5 + $0x38] sm:$0xff] %vm295, %v2686
      %2703 = vst.msk [vmem:[#allocation5 + $0x40] sm:$0xff] %vm295, %v2687
      %2704 = vst.msk [vmem:[#allocation5 + $0x48] sm:$0xff] %vm295, %v2688
      %2705 = vst.msk [vmem:[#allocation5 + $0x50] sm:$0xff] %vm295, %v2689
      %2706 = vst.msk [vmem:[#allocation5 + $0x58] sm:$0xff] %vm295, %v2690
      %2707 = vst.msk [vmem:[#allocation5 + $0x60] sm:$0xff] %vm295, %v2691
      %2708 = vst.msk [vmem:[#allocation5 + $0x68] sm:$0xff] %vm295, %v2692
      %2709 = vst.msk [vmem:[#allocation5 + $0x70] sm:$0xff] %vm295, %v2693
      %2710 = vst.msk [vmem:[#allocation5 + $0x78] sm:$0xff] %vm295, %v2694
      %v2711 = vld [vmem:[#allocation3 + $0x1] sm:$0xff]
      %v2712 = vld [vmem:[#allocation3 + $0x9] sm:$0xff]
      %v2713 = vld [vmem:[#allocation3 + $0x19] sm:$0xff]
      %v2714 = vld [vmem:[#allocation3 + $0x21] sm:$0xff]
      %v2715 = vld [vmem:[#allocation3 + $0x31] sm:$0xff]
      %v2716 = vld [vmem:[#allocation3 + $0x39] sm:$0xff]
      %v2717 = vld [vmem:[#allocation3 + $0x49] sm:$0xff]
      %v2718 = vld [vmem:[#allocation3 + $0x51] sm:$0xff]
      %v2719 = vld [vmem:[#allocation3 + $0x61] sm:$0xff]
      %v2720 = vld [vmem:[#allocation3 + $0x69] sm:$0xff]
      %v2721 = vld [vmem:[#allocation3 + $0x79] sm:$0xff]
      %v2722 = vld [vmem:[#allocation3 + $0x81] sm:$0xff]
      %v2723 = vld [vmem:[#allocation3 + $0x91] sm:$0xff]
      %v2724 = vld [vmem:[#allocation3 + $0x99] sm:$0xff]
      %v2725 = vld [vmem:[#allocation3 + $0xa9] sm:$0xff]
      %v2726 = vld [vmem:[#allocation3 + $0xb1] sm:$0xff]
      %v2727 = vld [vmem:[#allocation5] sm:$0xff]
      %v2728 = vld [vmem:[#allocation5 + $0x8] sm:$0xff]
      %v2729 = vld [vmem:[#allocation5 + $0x10] sm:$0xff]
      %v2730 = vld [vmem:[#allocation5 + $0x18] sm:$0xff]
      %v2731 = vld [vmem:[#allocation5 + $0x20] sm:$0xff]
      %v2732 = vld [vmem:[#allocation5 + $0x28] sm:$0xff]
      %v2733 = vld [vmem:[#allocation5 + $0x30] sm:$0xff]
      %v2734 = vld [vmem:[#allocation5 + $0x38] sm:$0xff]
      %v2735 = vld [vmem:[#allocation5 + $0x40] sm:$0xff]
      %v2736 = vld [vmem:[#allocation5 + $0x48] sm:$0xff]
      %v2737 = vld [vmem:[#allocation5 + $0x50] sm:$0xff]
      %v2738 = vld [vmem:[#allocation5 + $0x58] sm:$0xff]
      %v2739 = vld [vmem:[#allocation5 + $0x60] sm:$0xff]
      %v2740 = vld [vmem:[#allocation5 + $0x68] sm:$0xff]
      %v2741 = vld [vmem:[#allocation5 + $0x70] sm:$0xff]
      %v2742 = vld [vmem:[#allocation5 + $0x78] sm:$0xff]
      %s2743 = scalar_lea.vmem %s3, 4
      %v2744 = vld [vmem:[%s2743] sm:$0xf]
      %v2746 = vsel %vm295, %v2711, 0
      %v2749 = vsel %vm295, %v2712, 0
      %v2752 = vsel %vm295, %v2713, 0
      %v2755 = vsel %vm295, %v2714, 0
      %v2758 = vsel %vm295, %v2715, 0
      %v2761 = vsel %vm295, %v2716, 0
      %v2764 = vsel %vm295, %v2717, 0
      %v2767 = vsel %vm295, %v2718, 0
      %v2770 = vsel %vm295, %v2719, 0
      %v2773 = vsel %vm295, %v2720, 0
      %v2776 = vsel %vm295, %v2721, 0
      %v2779 = vsel %vm295, %v2722, 0
      %v2782 = vsel %vm295, %v2723, 0
      %v2785 = vsel %vm295, %v2724, 0
      %v2788 = vsel %vm295, %v2725, 0
      %v2791 = vsel %vm295, %v2726, 0
      %v2794 = vsel %vm520, %v2744, 0
      %2796 = vmatpush.msra.mxu0 0.0
      %2797 = vmatpush.msra.mxu0 0.0
      %2798 = vmatpush.msra.mxu0 0.0
      %2799 = vmatpush.msra.mxu0 0.0
      %2800 = vmatpush.msra.mxu0 0.0
      %2801 = vmatpush.msra.mxu0 0.0
      %2802 = vmatpush.msra.mxu0 0.0
      %2803 = vmatpush.msra.mxu0 0.0
      %2804 = vmatpush.msra.mxu0 0.0
      %2805 = vmatpush.msra.mxu0 0.0
      %2806 = vmatpush.msra.mxu0 0.0
      %2807 = vmatpush.msra.mxu0 0.0
      %2808 = vmatpush.msra.mxu0 0.0
      %2809 = vmatpush.msra.mxu0 0.0
      %2810 = vmatpush.msra.mxu0 0.0
      %2811 = vmatpush.msra.mxu0 %v2794
      %2812 = vmatmul.f32.gmra.mxu0 %v2746
      %v2813 = vpop.f32.mrf.mxu0
      %v2814 = vadd.f32 0.0, %v2813
      %2815 = vmatmul.f32.gmra.mxu0 %v2749
      %v2816 = vpop.f32.mrf.mxu0
      %v2817 = vadd.f32 0.0, %v2816
      %2818 = vmatmul.f32.gmra.mxu0 %v2752
      %v2819 = vpop.f32.mrf.mxu0
      %v2820 = vadd.f32 0.0, %v2819
      %2821 = vmatmul.f32.gmra.mxu0 %v2755
      %v2822 = vpop.f32.mrf.mxu0
      %v2823 = vadd.f32 0.0, %v2822
      %2824 = vmatmul.f32.gmra.mxu0 %v2758
      %v2825 = vpop.f32.mrf.mxu0
      %v2826 = vadd.f32 0.0, %v2825
      %2827 = vmatmul.f32.gmra.mxu0 %v2761
      %v2828 = vpop.f32.mrf.mxu0
      %v2829 = vadd.f32 0.0, %v2828
      %2830 = vmatmul.f32.gmra.mxu0 %v2764
      %v2831 = vpop.f32.mrf.mxu0
      %v2832 = vadd.f32 0.0, %v2831
      %2833 = vmatmul.f32.gmra.mxu0 %v2767
      %v2834 = vpop.f32.mrf.mxu0
      %v2835 = vadd.f32 0.0, %v2834
      %2836 = vmatmul.f32.gmra.mxu0 %v2770
      %v2837 = vpop.f32.mrf.mxu0
      %v2838 = vadd.f32 0.0, %v2837
      %2839 = vmatmul.f32.gmra.mxu0 %v2773
      %v2840 = vpop.f32.mrf.mxu0
      %v2841 = vadd.f32 0.0, %v2840
      %2842 = vmatmul.f32.gmra.mxu0 %v2776
      %v2843 = vpop.f32.mrf.mxu0
      %v2844 = vadd.f32 0.0, %v2843
      %2845 = vmatmul.f32.gmra.mxu0 %v2779
      %v2846 = vpop.f32.mrf.mxu0
      %v2847 = vadd.f32 0.0, %v2846
      %2848 = vmatmul.f32.gmra.mxu0 %v2782
      %v2849 = vpop.f32.mrf.mxu0
      %v2850 = vadd.f32 0.0, %v2849
      %2851 = vmatmul.f32.gmra.mxu0 %v2785
      %v2852 = vpop.f32.mrf.mxu0
      %v2853 = vadd.f32 0.0, %v2852
      %2854 = vmatmul.f32.gmra.mxu0 %v2788
      %v2855 = vpop.f32.mrf.mxu0
      %v2856 = vadd.f32 0.0, %v2855
      %2857 = vmatmul.f32.gmra.mxu0 %v2791
      %v2858 = vpop.f32.mrf.mxu0
      %v2859 = vadd.f32 0.0, %v2858
      %2860 = vdwg.mxu0
      %v2861 = vadd.f32 %v2727, %v2814
      %v2862 = vadd.f32 %v2728, %v2817
      %v2863 = vadd.f32 %v2729, %v2820
      %v2864 = vadd.f32 %v2730, %v2823
      %v2865 = vadd.f32 %v2731, %v2826
      %v2866 = vadd.f32 %v2732, %v2829
      %v2867 = vadd.f32 %v2733, %v2832
      %v2868 = vadd.f32 %v2734, %v2835
      %v2869 = vadd.f32 %v2735, %v2838
      %v2870 = vadd.f32 %v2736, %v2841
      %v2871 = vadd.f32 %v2737, %v2844
      %v2872 = vadd.f32 %v2738, %v2847
      %v2873 = vadd.f32 %v2739, %v2850
      %v2874 = vadd.f32 %v2740, %v2853
      %v2875 = vadd.f32 %v2741, %v2856
      %v2876 = vadd.f32 %v2742, %v2859
      %2877 = vst.msk [vmem:[#allocation5] sm:$0xff] %vm295, %v2861
      %2878 = vst.msk [vmem:[#allocation5 + $0x8] sm:$0xff] %vm295, %v2862
      %2879 = vst.msk [vmem:[#allocation5 + $0x10] sm:$0xff] %vm295, %v2863
      %2880 = vst.msk [vmem:[#allocation5 + $0x18] sm:$0xff] %vm295, %v2864
      %2881 = vst.msk [vmem:[#allocation5 + $0x20] sm:$0xff] %vm295, %v2865
      %2882 = vst.msk [vmem:[#allocation5 + $0x28] sm:$0xff] %vm295, %v2866
      %2883 = vst.msk [vmem:[#allocation5 + $0x30] sm:$0xff] %vm295, %v2867
      %2884 = vst.msk [vmem:[#allocation5 + $0x38] sm:$0xff] %vm295, %v2868
      %2885 = vst.msk [vmem:[#allocation5 + $0x40] sm:$0xff] %vm295, %v2869
      %2886 = vst.msk [vmem:[#allocation5 + $0x48] sm:$0xff] %vm295, %v2870
      %2887 = vst.msk [vmem:[#allocation5 + $0x50] sm:$0xff] %vm295, %v2871
      %2888 = vst.msk [vmem:[#allocation5 + $0x58] sm:$0xff] %vm295, %v2872
      %2889 = vst.msk [vmem:[#allocation5 + $0x60] sm:$0xff] %vm295, %v2873
      %2890 = vst.msk [vmem:[#allocation5 + $0x68] sm:$0xff] %vm295, %v2874
      %2891 = vst.msk [vmem:[#allocation5 + $0x70] sm:$0xff] %vm295, %v2875
      %2892 = vst.msk [vmem:[#allocation5 + $0x78] sm:$0xff] %vm295, %v2876
      %v2893 = vld [vmem:[#allocation3 + $0x2] sm:$0xff]
      %v2894 = vld [vmem:[#allocation3 + $0xa] sm:$0xff]
      %v2895 = vld [vmem:[#allocation3 + $0x1a] sm:$0xff]
      %v2896 = vld [vmem:[#allocation3 + $0x22] sm:$0xff]
      %v2897 = vld [vmem:[#allocation3 + $0x32] sm:$0xff]
      %v2898 = vld [vmem:[#allocation3 + $0x3a] sm:$0xff]
      %v2899 = vld [vmem:[#allocation3 + $0x4a] sm:$0xff]
      %v2900 = vld [vmem:[#allocation3 + $0x52] sm:$0xff]
      %v2901 = vld [vmem:[#allocation3 + $0x62] sm:$0xff]
      %v2902 = vld [vmem:[#allocation3 + $0x6a] sm:$0xff]
      %v2903 = vld [vmem:[#allocation3 + $0x7a] sm:$0xff]
      %v2904 = vld [vmem:[#allocation3 + $0x82] sm:$0xff]
      %v2905 = vld [vmem:[#allocation3 + $0x92] sm:$0xff]
      %v2906 = vld [vmem:[#allocation3 + $0x9a] sm:$0xff]
      %v2907 = vld [vmem:[#allocation3 + $0xaa] sm:$0xff]
      %v2908 = vld [vmem:[#allocation3 + $0xb2] sm:$0xff]
      %v2909 = vld [vmem:[#allocation5] sm:$0xff]
      %v2910 = vld [vmem:[#allocation5 + $0x8] sm:$0xff]
      %v2911 = vld [vmem:[#allocation5 + $0x10] sm:$0xff]
      %v2912 = vld [vmem:[#allocation5 + $0x18] sm:$0xff]
      %v2913 = vld [vmem:[#allocation5 + $0x20] sm:$0xff]
      %v2914 = vld [vmem:[#allocation5 + $0x28] sm:$0xff]
      %v2915 = vld [vmem:[#allocation5 + $0x30] sm:$0xff]
      %v2916 = vld [vmem:[#allocation5 + $0x38] sm:$0xff]
      %v2917 = vld [vmem:[#allocation5 + $0x40] sm:$0xff]
      %v2918 = vld [vmem:[#allocation5 + $0x48] sm:$0xff]
      %v2919 = vld [vmem:[#allocation5 + $0x50] sm:$0xff]
      %v2920 = vld [vmem:[#allocation5 + $0x58] sm:$0xff]
      %v2921 = vld [vmem:[#allocation5 + $0x60] sm:$0xff]
      %v2922 = vld [vmem:[#allocation5 + $0x68] sm:$0xff]
      %v2923 = vld [vmem:[#allocation5 + $0x70] sm:$0xff]
      %v2924 = vld [vmem:[#allocation5 + $0x78] sm:$0xff]
      %s2925 = scalar_lea.vmem %s3, 8
      %v2926 = vld [vmem:[%s2925] sm:$0xf]
      %v2928 = vsel %vm295, %v2893, 0
      %v2931 = vsel %vm295, %v2894, 0
      %v2934 = vsel %vm295, %v2895, 0
      %v2937 = vsel %vm295, %v2896, 0
      %v2940 = vsel %vm295, %v2897, 0
      %v2943 = vsel %vm295, %v2898, 0
      %v2946 = vsel %vm295, %v2899, 0
      %v2949 = vsel %vm295, %v2900, 0
      %v2952 = vsel %vm295, %v2901, 0
      %v2955 = vsel %vm295, %v2902, 0
      %v2958 = vsel %vm295, %v2903, 0
      %v2961 = vsel %vm295, %v2904, 0
      %v2964 = vsel %vm295, %v2905, 0
      %v2967 = vsel %vm295, %v2906, 0
      %v2970 = vsel %vm295, %v2907, 0
      %v2973 = vsel %vm295, %v2908, 0
      %v2976 = vsel %vm520, %v2926, 0
      %2978 = vmatpush.msra.mxu0 0.0
      %2979 = vmatpush.msra.mxu0 0.0
      %2980 = vmatpush.msra.mxu0 0.0
      %2981 = vmatpush.msra.mxu0 0.0
      %2982 = vmatpush.msra.mxu0 0.0
      %2983 = vmatpush.msra.mxu0 0.0
      %2984 = vmatpush.msra.mxu0 0.0
      %2985 = vmatpush.msra.mxu0 0.0
      %2986 = vmatpush.msra.mxu0 0.0
      %2987 = vmatpush.msra.mxu0 0.0
      %2988 = vmatpush.msra.mxu0 0.0
      %2989 = vmatpush.msra.mxu0 0.0
      %2990 = vmatpush.msra.mxu0 0.0
      %2991 = vmatpush.msra.mxu0 0.0
      %2992 = vmatpush.msra.mxu0 0.0
      %2993 = vmatpush.msra.mxu0 %v2976
      %2994 = vmatmul.f32.gmra.mxu0 %v2928
      %v2995 = vpop.f32.mrf.mxu0
      %v2996 = vadd.f32 0.0, %v2995
      %2997 = vmatmul.f32.gmra.mxu0 %v2931
      %v2998 = vpop.f32.mrf.mxu0
      %v2999 = vadd.f32 0.0, %v2998
      %3000 = vmatmul.f32.gmra.mxu0 %v2934
      %v3001 = vpop.f32.mrf.mxu0
      %v3002 = vadd.f32 0.0, %v3001
      %3003 = vmatmul.f32.gmra.mxu0 %v2937
      %v3004 = vpop.f32.mrf.mxu0
      %v3005 = vadd.f32 0.0, %v3004
      %3006 = vmatmul.f32.gmra.mxu0 %v2940
      %v3007 = vpop.f32.mrf.mxu0
      %v3008 = vadd.f32 0.0, %v3007
      %3009 = vmatmul.f32.gmra.mxu0 %v2943
      %v3010 = vpop.f32.mrf.mxu0
      %v3011 = vadd.f32 0.0, %v3010
      %3012 = vmatmul.f32.gmra.mxu0 %v2946
      %v3013 = vpop.f32.mrf.mxu0
      %v3014 = vadd.f32 0.0, %v3013
      %3015 = vmatmul.f32.gmra.mxu0 %v2949
      %v3016 = vpop.f32.mrf.mxu0
      %v3017 = vadd.f32 0.0, %v3016
      %3018 = vmatmul.f32.gmra.mxu0 %v2952
      %v3019 = vpop.f32.mrf.mxu0
      %v3020 = vadd.f32 0.0, %v3019
      %3021 = vmatmul.f32.gmra.mxu0 %v2955
      %v3022 = vpop.f32.mrf.mxu0
      %v3023 = vadd.f32 0.0, %v3022
      %3024 = vmatmul.f32.gmra.mxu0 %v2958
      %v3025 = vpop.f32.mrf.mxu0
      %v3026 = vadd.f32 0.0, %v3025
      %3027 = vmatmul.f32.gmra.mxu0 %v2961
      %v3028 = vpop.f32.mrf.mxu0
      %v3029 = vadd.f32 0.0, %v3028
      %3030 = vmatmul.f32.gmra.mxu0 %v2964
      %v3031 = vpop.f32.mrf.mxu0
      %v3032 = vadd.f32 0.0, %v3031
      %3033 = vmatmul.f32.gmra.mxu0 %v2967
      %v3034 = vpop.f32.mrf.mxu0
      %v3035 = vadd.f32 0.0, %v3034
      %3036 = vmatmul.f32.gmra.mxu0 %v2970
      %v3037 = vpop.f32.mrf.mxu0
      %v3038 = vadd.f32 0.0, %v3037
      %3039 = vmatmul.f32.gmra.mxu0 %v2973
      %v3040 = vpop.f32.mrf.mxu0
      %v3041 = vadd.f32 0.0, %v3040
      %3042 = vdwg.mxu0
      %v3043 = vadd.f32 %v2909, %v2996
      %v3044 = vadd.f32 %v2910, %v2999
      %v3045 = vadd.f32 %v2911, %v3002
      %v3046 = vadd.f32 %v2912, %v3005
      %v3047 = vadd.f32 %v2913, %v3008
      %v3048 = vadd.f32 %v2914, %v3011
      %v3049 = vadd.f32 %v2915, %v3014
      %v3050 = vadd.f32 %v2916, %v3017
      %v3051 = vadd.f32 %v2917, %v3020
      %v3052 = vadd.f32 %v2918, %v3023
      %v3053 = vadd.f32 %v2919, %v3026
      %v3054 = vadd.f32 %v2920, %v3029
      %v3055 = vadd.f32 %v2921, %v3032
      %v3056 = vadd.f32 %v2922, %v3035
      %v3057 = vadd.f32 %v2923, %v3038
      %v3058 = vadd.f32 %v2924, %v3041
      %3059 = vst.msk [vmem:[#allocation5] sm:$0xff] %vm295, %v3043
      %3060 = vst.msk [vmem:[#allocation5 + $0x8] sm:$0xff] %vm295, %v3044
      %3061 = vst.msk [vmem:[#allocation5 + $0x10] sm:$0xff] %vm295, %v3045
      %3062 = vst.msk [vmem:[#allocation5 + $0x18] sm:$0xff] %vm295, %v3046
      %3063 = vst.msk [vmem:[#allocation5 + $0x20] sm:$0xff] %vm295, %v3047
      %3064 = vst.msk [vmem:[#allocation5 + $0x28] sm:$0xff] %vm295, %v3048
      %3065 = vst.msk [vmem:[#allocation5 + $0x30] sm:$0xff] %vm295, %v3049
      %3066 = vst.msk [vmem:[#allocation5 + $0x38] sm:$0xff] %vm295, %v3050
      %3067 = vst.msk [vmem:[#allocation5 + $0x40] sm:$0xff] %vm295, %v3051
      %3068 = vst.msk [vmem:[#allocation5 + $0x48] sm:$0xff] %vm295, %v3052
      %3069 = vst.msk [vmem:[#allocation5 + $0x50] sm:$0xff] %vm295, %v3053
      %3070 = vst.msk [vmem:[#allocation5 + $0x58] sm:$0xff] %vm295, %v3054
      %3071 = vst.msk [vmem:[#allocation5 + $0x60] sm:$0xff] %vm295, %v3055
      %3072 = vst.msk [vmem:[#allocation5 + $0x68] sm:$0xff] %vm295, %v3056
      %3073 = vst.msk [vmem:[#allocation5 + $0x70] sm:$0xff] %vm295, %v3057
      %3074 = vst.msk [vmem:[#allocation5 + $0x78] sm:$0xff] %vm295, %v3058
      %s3075 = scalar_lea.vmem [#allocation3], 24
      %v3076 = vld [vmem:[%s3075] sm:$0xff]
      %v3077 = vld [vmem:[%s3075 + $0x8] sm:$0xff]
      %v3078 = vld [vmem:[%s3075 + $0x18] sm:$0xff]
      %v3079 = vld [vmem:[%s3075 + $0x20] sm:$0xff]
      %v3080 = vld [vmem:[%s3075 + $0x30] sm:$0xff]
      %v3081 = vld [vmem:[%s3075 + $0x38] sm:$0xff]
      %v3082 = vld [vmem:[%s3075 + $0x48] sm:$0xff]
      %v3083 = vld [vmem:[%s3075 + $0x50] sm:$0xff]
      %v3084 = vld [vmem:[%s3075 + $0x60] sm:$0xff]
      %v3085 = vld [vmem:[%s3075 + $0x68] sm:$0xff]
      %v3086 = vld [vmem:[%s3075 + $0x78] sm:$0xff]
      %v3087 = vld [vmem:[%s3075 + $0x80] sm:$0xff]
      %v3088 = vld [vmem:[%s3075 + $0x90] sm:$0xff]
      %v3089 = vld [vmem:[%s3075 + $0x98] sm:$0xff]
      %v3090 = vld [vmem:[%s3075 + $0xa8] sm:$0xff]
      %v3091 = vld [vmem:[%s3075 + $0xb0] sm:$0xff]
      %v3092 = vld [vmem:[#allocation5] sm:$0xff]
      %v3093 = vld [vmem:[#allocation5 + $0x8] sm:$0xff]
      %v3094 = vld [vmem:[#allocation5 + $0x10] sm:$0xff]
      %v3095 = vld [vmem:[#allocation5 + $0x18] sm:$0xff]
      %v3096 = vld [vmem:[#allocation5 + $0x20] sm:$0xff]
      %v3097 = vld [vmem:[#allocation5 + $0x28] sm:$0xff]
      %v3098 = vld [vmem:[#allocation5 + $0x30] sm:$0xff]
      %v3099 = vld [vmem:[#allocation5 + $0x38] sm:$0xff]
      %v3100 = vld [vmem:[#allocation5 + $0x40] sm:$0xff]
      %v3101 = vld [vmem:[#allocation5 + $0x48] sm:$0xff]
      %v3102 = vld [vmem:[#allocation5 + $0x50] sm:$0xff]
      %v3103 = vld [vmem:[#allocation5 + $0x58] sm:$0xff]
      %v3104 = vld [vmem:[#allocation5 + $0x60] sm:$0xff]
      %v3105 = vld [vmem:[#allocation5 + $0x68] sm:$0xff]
      %v3106 = vld [vmem:[#allocation5 + $0x70] sm:$0xff]
      %v3107 = vld [vmem:[#allocation5 + $0x78] sm:$0xff]
      %s3108 = scalar_lea.vmem %s3, 12
      %v3109 = vld [vmem:[%s3108] sm:$0xf]
      %v3111 = vsel %vm295, %v3076, 0
      %v3114 = vsel %vm295, %v3077, 0
      %v3117 = vsel %vm295, %v3078, 0
      %v3120 = vsel %vm295, %v3079, 0
      %v3123 = vsel %vm295, %v3080, 0
      %v3126 = vsel %vm295, %v3081, 0
      %v3129 = vsel %vm295, %v3082, 0
      %v3132 = vsel %vm295, %v3083, 0
      %v3135 = vsel %vm295, %v3084, 0
      %v3138 = vsel %vm295, %v3085, 0
      %v3141 = vsel %vm295, %v3086, 0
      %v3144 = vsel %vm295, %v3087, 0
      %v3147 = vsel %vm295, %v3088, 0
      %v3150 = vsel %vm295, %v3089, 0
      %v3153 = vsel %vm295, %v3090, 0
      %v3156 = vsel %vm295, %v3091, 0
      %v3159 = vsel %vm520, %v3109, 0
      %3161 = vmatpush.msra.mxu0 0.0
      %3162 = vmatpush.msra.mxu0 0.0
      %3163 = vmatpush.msra.mxu0 0.0
      %3164 = vmatpush.msra.mxu0 0.0
      %3165 = vmatpush.msra.mxu0 0.0
      %3166 = vmatpush.msra.mxu0 0.0
      %3167 = vmatpush.msra.mxu0 0.0
      %3168 = vmatpush.msra.mxu0 0.0
      %3169 = vmatpush.msra.mxu0 0.0
      %3170 = vmatpush.msra.mxu0 0.0
      %3171 = vmatpush.msra.mxu0 0.0
      %3172 = vmatpush.msra.mxu0 0.0
      %3173 = vmatpush.msra.mxu0 0.0
      %3174 = vmatpush.msra.mxu0 0.0
      %3175 = vmatpush.msra.mxu0 0.0
      %3176 = vmatpush.msra.mxu0 %v3159
      %3177 = vmatmul.f32.gmra.mxu0 %v3111
      %v3178 = vpop.f32.mrf.mxu0
      %v3179 = vadd.f32 0.0, %v3178
      %3180 = vmatmul.f32.gmra.mxu0 %v3114
      %v3181 = vpop.f32.mrf.mxu0
      %v3182 = vadd.f32 0.0, %v3181
      %3183 = vmatmul.f32.gmra.mxu0 %v3117
      %v3184 = vpop.f32.mrf.mxu0
      %v3185 = vadd.f32 0.0, %v3184
      %3186 = vmatmul.f32.gmra.mxu0 %v3120
      %v3187 = vpop.f32.mrf.mxu0
      %v3188 = vadd.f32 0.0, %v3187
      %3189 = vmatmul.f32.gmra.mxu0 %v3123
      %v3190 = vpop.f32.mrf.mxu0
      %v3191 = vadd.f32 0.0, %v3190
      %3192 = vmatmul.f32.gmra.mxu0 %v3126
      %v3193 = vpop.f32.mrf.mxu0
      %v3194 = vadd.f32 0.0, %v3193
      %3195 = vmatmul.f32.gmra.mxu0 %v3129
      %v3196 = vpop.f32.mrf.mxu0
      %v3197 = vadd.f32 0.0, %v3196
      %3198 = vmatmul.f32.gmra.mxu0 %v3132
      %v3199 = vpop.f32.mrf.mxu0
      %v3200 = vadd.f32 0.0, %v3199
      %3201 = vmatmul.f32.gmra.mxu0 %v3135
      %v3202 = vpop.f32.mrf.mxu0
      %v3203 = vadd.f32 0.0, %v3202
      %3204 = vmatmul.f32.gmra.mxu0 %v3138
      %v3205 = vpop.f32.mrf.mxu0
      %v3206 = vadd.f32 0.0, %v3205
      %3207 = vmatmul.f32.gmra.mxu0 %v3141
      %v3208 = vpop.f32.mrf.mxu0
      %v3209 = vadd.f32 0.0, %v3208
      %3210 = vmatmul.f32.gmra.mxu0 %v3144
      %v3211 = vpop.f32.mrf.mxu0
      %v3212 = vadd.f32 0.0, %v3211
      %3213 = vmatmul.f32.gmra.mxu0 %v3147
      %v3214 = vpop.f32.mrf.mxu0
      %v3215 = vadd.f32 0.0, %v3214
      %3216 = vmatmul.f32.gmra.mxu0 %v3150
      %v3217 = vpop.f32.mrf.mxu0
      %v3218 = vadd.f32 0.0, %v3217
      %3219 = vmatmul.f32.gmra.mxu0 %v3153
      %v3220 = vpop.f32.mrf.mxu0
      %v3221 = vadd.f32 0.0, %v3220
      %3222 = vmatmul.f32.gmra.mxu0 %v3156
      %v3223 = vpop.f32.mrf.mxu0
      %v3224 = vadd.f32 0.0, %v3223
      %3225 = vdwg.mxu0
      %v3226 = vadd.f32 %v3092, %v3179
      %v3227 = vadd.f32 %v3093, %v3182
      %v3228 = vadd.f32 %v3094, %v3185
      %v3229 = vadd.f32 %v3095, %v3188
      %v3230 = vadd.f32 %v3096, %v3191
      %v3231 = vadd.f32 %v3097, %v3194
      %v3232 = vadd.f32 %v3098, %v3197
      %v3233 = vadd.f32 %v3099, %v3200
      %v3234 = vadd.f32 %v3100, %v3203
      %v3235 = vadd.f32 %v3101, %v3206
      %v3236 = vadd.f32 %v3102, %v3209
      %v3237 = vadd.f32 %v3103, %v3212
      %v3238 = vadd.f32 %v3104, %v3215
      %v3239 = vadd.f32 %v3105, %v3218
      %v3240 = vadd.f32 %v3106, %v3221
      %v3241 = vadd.f32 %v3107, %v3224
      %3242 = vst.msk [vmem:[#allocation5] sm:$0xff] %vm295, %v3226
      %3243 = vst.msk [vmem:[#allocation5 + $0x8] sm:$0xff] %vm295, %v3227
      %3244 = vst.msk [vmem:[#allocation5 + $0x10] sm:$0xff] %vm295, %v3228
      %3245 = vst.msk [vmem:[#allocation5 + $0x18] sm:$0xff] %vm295, %v3229
      %3246 = vst.msk [vmem:[#allocation5 + $0x20] sm:$0xff] %vm295, %v3230
      %3247 = vst.msk [vmem:[#allocation5 + $0x28] sm:$0xff] %vm295, %v3231
      %3248 = vst.msk [vmem:[#allocation5 + $0x30] sm:$0xff] %vm295, %v3232
      %3249 = vst.msk [vmem:[#allocation5 + $0x38] sm:$0xff] %vm295, %v3233
      %3250 = vst.msk [vmem:[#allocation5 + $0x40] sm:$0xff] %vm295, %v3234
      %3251 = vst.msk [vmem:[#allocation5 + $0x48] sm:$0xff] %vm295, %v3235
      %3252 = vst.msk [vmem:[#allocation5 + $0x50] sm:$0xff] %vm295, %v3236
      %3253 = vst.msk [vmem:[#allocation5 + $0x58] sm:$0xff] %vm295, %v3237
      %3254 = vst.msk [vmem:[#allocation5 + $0x60] sm:$0xff] %vm295, %v3238
      %3255 = vst.msk [vmem:[#allocation5 + $0x68] sm:$0xff] %vm295, %v3239
      %3256 = vst.msk [vmem:[#allocation5 + $0x70] sm:$0xff] %vm295, %v3240
      %3257 = vst.msk [vmem:[#allocation5 + $0x78] sm:$0xff] %vm295, %v3241
      %v3258 = vld [vmem:[%s3075 + $0x1] sm:$0xff]
      %v3259 = vld [vmem:[%s3075 + $0x9] sm:$0xff]
      %v3260 = vld [vmem:[%s3075 + $0x19] sm:$0xff]
      %v3261 = vld [vmem:[%s3075 + $0x21] sm:$0xff]
      %v3262 = vld [vmem:[%s3075 + $0x31] sm:$0xff]
      %v3263 = vld [vmem:[%s3075 + $0x39] sm:$0xff]
      %v3264 = vld [vmem:[%s3075 + $0x49] sm:$0xff]
      %v3265 = vld [vmem:[%s3075 + $0x51] sm:$0xff]
      %v3266 = vld [vmem:[%s3075 + $0x61] sm:$0xff]
      %v3267 = vld [vmem:[%s3075 + $0x69] sm:$0xff]
      %v3268 = vld [vmem:[%s3075 + $0x79] sm:$0xff]
      %v3269 = vld [vmem:[%s3075 + $0x81] sm:$0xff]
      %v3270 = vld [vmem:[%s3075 + $0x91] sm:$0xff]
      %v3271 = vld [vmem:[%s3075 + $0x99] sm:$0xff]
      %v3272 = vld [vmem:[%s3075 + $0xa9] sm:$0xff]
      %v3273 = vld [vmem:[%s3075 + $0xb1] sm:$0xff]
      %v3274 = vld [vmem:[#allocation5] sm:$0xff]
      %v3275 = vld [vmem:[#allocation5 + $0x8] sm:$0xff]
      %v3276 = vld [vmem:[#allocation5 + $0x10] sm:$0xff]
      %v3277 = vld [vmem:[#allocation5 + $0x18] sm:$0xff]
      %v3278 = vld [vmem:[#allocation5 + $0x20] sm:$0xff]
      %v3279 = vld [vmem:[#allocation5 + $0x28] sm:$0xff]
      %v3280 = vld [vmem:[#allocation5 + $0x30] sm:$0xff]
      %v3281 = vld [vmem:[#allocation5 + $0x38] sm:$0xff]
      %v3282 = vld [vmem:[#allocation5 + $0x40] sm:$0xff]
      %v3283 = vld [vmem:[#allocation5 + $0x48] sm:$0xff]
      %v3284 = vld [vmem:[#allocation5 + $0x50] sm:$0xff]
      %v3285 = vld [vmem:[#allocation5 + $0x58] sm:$0xff]
      %v3286 = vld [vmem:[#allocation5 + $0x60] sm:$0xff]
      %v3287 = vld [vmem:[#allocation5 + $0x68] sm:$0xff]
      %v3288 = vld [vmem:[#allocation5 + $0x70] sm:$0xff]
      %v3289 = vld [vmem:[#allocation5 + $0x78] sm:$0xff]
      %s3290 = scalar_lea.vmem %s3, 16
      %v3291 = vld [vmem:[%s3290] sm:$0xf]
      %v3293 = vsel %vm295, %v3258, 0
      %v3296 = vsel %vm295, %v3259, 0
      %v3299 = vsel %vm295, %v3260, 0
      %v3302 = vsel %vm295, %v3261, 0
      %v3305 = vsel %vm295, %v3262, 0
      %v3308 = vsel %vm295, %v3263, 0
      %v3311 = vsel %vm295, %v3264, 0
      %v3314 = vsel %vm295, %v3265, 0
      %v3317 = vsel %vm295, %v3266, 0
      %v3320 = vsel %vm295, %v3267, 0
      %v3323 = vsel %vm295, %v3268, 0
      %v3326 = vsel %vm295, %v3269, 0
      %v3329 = vsel %vm295, %v3270, 0
      %v3332 = vsel %vm295, %v3271, 0
      %v3335 = vsel %vm295, %v3272, 0
      %v3338 = vsel %vm295, %v3273, 0
      %v3341 = vsel %vm520, %v3291, 0
      %3343 = vmatpush.msra.mxu0 0.0
      %3344 = vmatpush.msra.mxu0 0.0
      %3345 = vmatpush.msra.mxu0 0.0
      %3346 = vmatpush.msra.mxu0 0.0
      %3347 = vmatpush.msra.mxu0 0.0
      %3348 = vmatpush.msra.mxu0 0.0
      %3349 = vmatpush.msra.mxu0 0.0
      %3350 = vmatpush.msra.mxu0 0.0
      %3351 = vmatpush.msra.mxu0 0.0
      %3352 = vmatpush.msra.mxu0 0.0
      %3353 = vmatpush.msra.mxu0 0.0
      %3354 = vmatpush.msra.mxu0 0.0
      %3355 = vmatpush.msra.mxu0 0.0
      %3356 = vmatpush.msra.mxu0 0.0
      %3357 = vmatpush.msra.mxu0 0.0
      %3358 = vmatpush.msra.mxu0 %v3341
      %3359 = vmatmul.f32.gmra.mxu0 %v3293
      %v3360 = vpop.f32.mrf.mxu0
      %v3361 = vadd.f32 0.0, %v3360
      %3362 = vmatmul.f32.gmra.mxu0 %v3296
      %v3363 = vpop.f32.mrf.mxu0
      %v3364 = vadd.f32 0.0, %v3363
      %3365 = vmatmul.f32.gmra.mxu0 %v3299
      %v3366 = vpop.f32.mrf.mxu0
      %v3367 = vadd.f32 0.0, %v3366
      %3368 = vmatmul.f32.gmra.mxu0 %v3302
      %v3369 = vpop.f32.mrf.mxu0
      %v3370 = vadd.f32 0.0, %v3369
      %3371 = vmatmul.f32.gmra.mxu0 %v3305
      %v3372 = vpop.f32.mrf.mxu0
      %v3373 = vadd.f32 0.0, %v3372
      %3374 = vmatmul.f32.gmra.mxu0 %v3308
      %v3375 = vpop.f32.mrf.mxu0
      %v3376 = vadd.f32 0.0, %v3375
      %3377 = vmatmul.f32.gmra.mxu0 %v3311
      %v3378 = vpop.f32.mrf.mxu0
      %v3379 = vadd.f32 0.0, %v3378
      %3380 = vmatmul.f32.gmra.mxu0 %v3314
      %v3381 = vpop.f32.mrf.mxu0
      %v3382 = vadd.f32 0.0, %v3381
      %3383 = vmatmul.f32.gmra.mxu0 %v3317
      %v3384 = vpop.f32.mrf.mxu0
      %v3385 = vadd.f32 0.0, %v3384
      %3386 = vmatmul.f32.gmra.mxu0 %v3320
      %v3387 = vpop.f32.mrf.mxu0
      %v3388 = vadd.f32 0.0, %v3387
      %3389 = vmatmul.f32.gmra.mxu0 %v3323
      %v3390 = vpop.f32.mrf.mxu0
      %v3391 = vadd.f32 0.0, %v3390
      %3392 = vmatmul.f32.gmra.mxu0 %v3326
      %v3393 = vpop.f32.mrf.mxu0
      %v3394 = vadd.f32 0.0, %v3393
      %3395 = vmatmul.f32.gmra.mxu0 %v3329
      %v3396 = vpop.f32.mrf.mxu0
      %v3397 = vadd.f32 0.0, %v3396
      %3398 = vmatmul.f32.gmra.mxu0 %v3332
      %v3399 = vpop.f32.mrf.mxu0
      %v3400 = vadd.f32 0.0, %v3399
      %3401 = vmatmul.f32.gmra.mxu0 %v3335
      %v3402 = vpop.f32.mrf.mxu0
      %v3403 = vadd.f32 0.0, %v3402
      %3404 = vmatmul.f32.gmra.mxu0 %v3338
      %v3405 = vpop.f32.mrf.mxu0
      %v3406 = vadd.f32 0.0, %v3405
      %3407 = vdwg.mxu0
      %v3408 = vadd.f32 %v3274, %v3361
      %v3409 = vadd.f32 %v3275, %v3364
      %v3410 = vadd.f32 %v3276, %v3367
      %v3411 = vadd.f32 %v3277, %v3370
      %v3412 = vadd.f32 %v3278, %v3373
      %v3413 = vadd.f32 %v3279, %v3376
      %v3414 = vadd.f32 %v3280, %v3379
      %v3415 = vadd.f32 %v3281, %v3382
      %v3416 = vadd.f32 %v3282, %v3385
      %v3417 = vadd.f32 %v3283, %v3388
      %v3418 = vadd.f32 %v3284, %v3391
      %v3419 = vadd.f32 %v3285, %v3394
      %v3420 = vadd.f32 %v3286, %v3397
      %v3421 = vadd.f32 %v3287, %v3400
      %v3422 = vadd.f32 %v3288, %v3403
      %v3423 = vadd.f32 %v3289, %v3406
      %3424 = vst.msk [vmem:[#allocation5] sm:$0xff] %vm295, %v3408
      %3425 = vst.msk [vmem:[#allocation5 + $0x8] sm:$0xff] %vm295, %v3409
      %3426 = vst.msk [vmem:[#allocation5 + $0x10] sm:$0xff] %vm295, %v3410
      %3427 = vst.msk [vmem:[#allocation5 + $0x18] sm:$0xff] %vm295, %v3411
      %3428 = vst.msk [vmem:[#allocation5 + $0x20] sm:$0xff] %vm295, %v3412
      %3429 = vst.msk [vmem:[#allocation5 + $0x28] sm:$0xff] %vm295, %v3413
      %3430 = vst.msk [vmem:[#allocation5 + $0x30] sm:$0xff] %vm295, %v3414
      %3431 = vst.msk [vmem:[#allocation5 + $0x38] sm:$0xff] %vm295, %v3415
      %3432 = vst.msk [vmem:[#allocation5 + $0x40] sm:$0xff] %vm295, %v3416
      %3433 = vst.msk [vmem:[#allocation5 + $0x48] sm:$0xff] %vm295, %v3417
      %3434 = vst.msk [vmem:[#allocation5 + $0x50] sm:$0xff] %vm295, %v3418
      %3435 = vst.msk [vmem:[#allocation5 + $0x58] sm:$0xff] %vm295, %v3419
      %3436 = vst.msk [vmem:[#allocation5 + $0x60] sm:$0xff] %vm295, %v3420
      %3437 = vst.msk [vmem:[#allocation5 + $0x68] sm:$0xff] %vm295, %v3421
      %3438 = vst.msk [vmem:[#allocation5 + $0x70] sm:$0xff] %vm295, %v3422
      %3439 = vst.msk [vmem:[#allocation5 + $0x78] sm:$0xff] %vm295, %v3423
      %v3440 = vld [vmem:[%s3075 + $0x2] sm:$0xff]
      %v3441 = vld [vmem:[%s3075 + $0xa] sm:$0xff]
      %v3442 = vld [vmem:[%s3075 + $0x1a] sm:$0xff]
      %v3443 = vld [vmem:[%s3075 + $0x22] sm:$0xff]
      %v3444 = vld [vmem:[%s3075 + $0x32] sm:$0xff]
      %v3445 = vld [vmem:[%s3075 + $0x3a] sm:$0xff]
      %v3446 = vld [vmem:[%s3075 + $0x4a] sm:$0xff]
      %v3447 = vld [vmem:[%s3075 + $0x52] sm:$0xff]
      %v3448 = vld [vmem:[%s3075 + $0x62] sm:$0xff]
      %v3449 = vld [vmem:[%s3075 + $0x6a] sm:$0xff]
      %v3450 = vld [vmem:[%s3075 + $0x7a] sm:$0xff]
      %v3451 = vld [vmem:[%s3075 + $0x82] sm:$0xff]
      %v3452 = vld [vmem:[%s3075 + $0x92] sm:$0xff]
      %v3453 = vld [vmem:[%s3075 + $0x9a] sm:$0xff]
      %v3454 = vld [vmem:[%s3075 + $0xaa] sm:$0xff]
      %v3455 = vld [vmem:[%s3075 + $0xb2] sm:$0xff]
      %v3456 = vld [vmem:[#allocation5] sm:$0xff]
      %v3457 = vld [vmem:[#allocation5 + $0x8] sm:$0xff]
      %v3458 = vld [vmem:[#allocation5 + $0x10] sm:$0xff]
      %v3459 = vld [vmem:[#allocation5 + $0x18] sm:$0xff]
      %v3460 = vld [vmem:[#allocation5 + $0x20] sm:$0xff]
      %v3461 = vld [vmem:[#allocation5 + $0x28] sm:$0xff]
      %v3462 = vld [vmem:[#allocation5 + $0x30] sm:$0xff]
      %v3463 = vld [vmem:[#allocation5 + $0x38] sm:$0xff]
      %v3464 = vld [vmem:[#allocation5 + $0x40] sm:$0xff]
      %v3465 = vld [vmem:[#allocation5 + $0x48] sm:$0xff]
      %v3466 = vld [vmem:[#allocation5 + $0x50] sm:$0xff]
      %v3467 = vld [vmem:[#allocation5 + $0x58] sm:$0xff]
      %v3468 = vld [vmem:[#allocation5 + $0x60] sm:$0xff]
      %v3469 = vld [vmem:[#allocation5 + $0x68] sm:$0xff]
      %v3470 = vld [vmem:[#allocation5 + $0x70] sm:$0xff]
      %v3471 = vld [vmem:[#allocation5 + $0x78] sm:$0xff]
      %s3472 = scalar_lea.vmem %s3, 20
      %v3473 = vld [vmem:[%s3472] sm:$0xf]
      %v3475 = vsel %vm295, %v3440, 0
      %v3478 = vsel %vm295, %v3441, 0
      %v3481 = vsel %vm295, %v3442, 0
      %v3484 = vsel %vm295, %v3443, 0
      %v3487 = vsel %vm295, %v3444, 0
      %v3490 = vsel %vm295, %v3445, 0
      %v3493 = vsel %vm295, %v3446, 0
      %v3496 = vsel %vm295, %v3447, 0
      %v3499 = vsel %vm295, %v3448, 0
      %v3502 = vsel %vm295, %v3449, 0
      %v3505 = vsel %vm295, %v3450, 0
      %v3508 = vsel %vm295, %v3451, 0
      %v3511 = vsel %vm295, %v3452, 0
      %v3514 = vsel %vm295, %v3453, 0
      %v3517 = vsel %vm295, %v3454, 0
      %v3520 = vsel %vm295, %v3455, 0
      %v3523 = vsel %vm520, %v3473, 0
      %3525 = vmatpush.msra.mxu0 0.0
      %3526 = vmatpush.msra.mxu0 0.0
      %3527 = vmatpush.msra.mxu0 0.0
      %3528 = vmatpush.msra.mxu0 0.0
      %3529 = vmatpush.msra.mxu0 0.0
      %3530 = vmatpush.msra.mxu0 0.0
      %3531 = vmatpush.msra.mxu0 0.0
      %3532 = vmatpush.msra.mxu0 0.0
      %3533 = vmatpush.msra.mxu0 0.0
      %3534 = vmatpush.msra.mxu0 0.0
      %3535 = vmatpush.msra.mxu0 0.0
      %3536 = vmatpush.msra.mxu0 0.0
      %3537 = vmatpush.msra.mxu0 0.0
      %3538 = vmatpush.msra.mxu0 0.0
      %3539 = vmatpush.msra.mxu0 0.0
      %3540 = vmatpush.msra.mxu0 %v3523
      %3541 = vmatmul.f32.gmra.mxu0 %v3475
      %v3542 = vpop.f32.mrf.mxu0
      %v3543 = vadd.f32 0.0, %v3542
      %3544 = vmatmul.f32.gmra.mxu0 %v3478
      %v3545 = vpop.f32.mrf.mxu0
      %v3546 = vadd.f32 0.0, %v3545
      %3547 = vmatmul.f32.gmra.mxu0 %v3481
      %v3548 = vpop.f32.mrf.mxu0
      %v3549 = vadd.f32 0.0, %v3548
      %3550 = vmatmul.f32.gmra.mxu0 %v3484
      %v3551 = vpop.f32.mrf.mxu0
      %v3552 = vadd.f32 0.0, %v3551
      %3553 = vmatmul.f32.gmra.mxu0 %v3487
      %v3554 = vpop.f32.mrf.mxu0
      %v3555 = vadd.f32 0.0, %v3554
      %3556 = vmatmul.f32.gmra.mxu0 %v3490
      %v3557 = vpop.f32.mrf.mxu0
      %v3558 = vadd.f32 0.0, %v3557
      %3559 = vmatmul.f32.gmra.mxu0 %v3493
      %v3560 = vpop.f32.mrf.mxu0
      %v3561 = vadd.f32 0.0, %v3560
      %3562 = vmatmul.f32.gmra.mxu0 %v3496
      %v3563 = vpop.f32.mrf.mxu0
      %v3564 = vadd.f32 0.0, %v3563
      %3565 = vmatmul.f32.gmra.mxu0 %v3499
      %v3566 = vpop.f32.mrf.mxu0
      %v3567 = vadd.f32 0.0, %v3566
      %3568 = vmatmul.f32.gmra.mxu0 %v3502
      %v3569 = vpop.f32.mrf.mxu0
      %v3570 = vadd.f32 0.0, %v3569
      %3571 = vmatmul.f32.gmra.mxu0 %v3505
      %v3572 = vpop.f32.mrf.mxu0
      %v3573 = vadd.f32 0.0, %v3572
      %3574 = vmatmul.f32.gmra.mxu0 %v3508
      %v3575 = vpop.f32.mrf.mxu0
      %v3576 = vadd.f32 0.0, %v3575
      %3577 = vmatmul.f32.gmra.mxu0 %v3511
      %v3578 = vpop.f32.mrf.mxu0
      %v3579 = vadd.f32 0.0, %v3578
      %3580 = vmatmul.f32.gmra.mxu0 %v3514
      %v3581 = vpop.f32.mrf.mxu0
      %v3582 = vadd.f32 0.0, %v3581
      %3583 = vmatmul.f32.gmra.mxu0 %v3517
      %v3584 = vpop.f32.mrf.mxu0
      %v3585 = vadd.f32 0.0, %v3584
      %3586 = vmatmul.f32.gmra.mxu0 %v3520
      %v3587 = vpop.f32.mrf.mxu0
      %v3588 = vadd.f32 0.0, %v3587
      %3589 = vdwg.mxu0
      %v3590 = vadd.f32 %v3456, %v3543
      %v3591 = vadd.f32 %v3457, %v3546
      %v3592 = vadd.f32 %v3458, %v3549
      %v3593 = vadd.f32 %v3459, %v3552
      %v3594 = vadd.f32 %v3460, %v3555
      %v3595 = vadd.f32 %v3461, %v3558
      %v3596 = vadd.f32 %v3462, %v3561
      %v3597 = vadd.f32 %v3463, %v3564
      %v3598 = vadd.f32 %v3464, %v3567
      %v3599 = vadd.f32 %v3465, %v3570
      %v3600 = vadd.f32 %v3466, %v3573
      %v3601 = vadd.f32 %v3467, %v3576
      %v3602 = vadd.f32 %v3468, %v3579
      %v3603 = vadd.f32 %v3469, %v3582
      %v3604 = vadd.f32 %v3470, %v3585
      %v3605 = vadd.f32 %v3471, %v3588
      %3606 = vst.msk [vmem:[#allocation5] sm:$0xff] %vm295, %v3590
      %3607 = vst.msk [vmem:[#allocation5 + $0x8] sm:$0xff] %vm295, %v3591
      %3608 = vst.msk [vmem:[#allocation5 + $0x10] sm:$0xff] %vm295, %v3592
      %3609 = vst.msk [vmem:[#allocation5 + $0x18] sm:$0xff] %vm295, %v3593
      %3610 = vst.msk [vmem:[#allocation5 + $0x20] sm:$0xff] %vm295, %v3594
      %3611 = vst.msk [vmem:[#allocation5 + $0x28] sm:$0xff] %vm295, %v3595
      %3612 = vst.msk [vmem:[#allocation5 + $0x30] sm:$0xff] %vm295, %v3596
      %3613 = vst.msk [vmem:[#allocation5 + $0x38] sm:$0xff] %vm295, %v3597
      %3614 = vst.msk [vmem:[#allocation5 + $0x40] sm:$0xff] %vm295, %v3598
      %3615 = vst.msk [vmem:[#allocation5 + $0x48] sm:$0xff] %vm295, %v3599
      %3616 = vst.msk [vmem:[#allocation5 + $0x50] sm:$0xff] %vm295, %v3600
      %3617 = vst.msk [vmem:[#allocation5 + $0x58] sm:$0xff] %vm295, %v3601
      %3618 = vst.msk [vmem:[#allocation5 + $0x60] sm:$0xff] %vm295, %v3602
      %3619 = vst.msk [vmem:[#allocation5 + $0x68] sm:$0xff] %vm295, %v3603
      %3620 = vst.msk [vmem:[#allocation5 + $0x70] sm:$0xff] %vm295, %v3604
      %3621 = vst.msk [vmem:[#allocation5 + $0x78] sm:$0xff] %vm295, %v3605
      %s3622 = scalar_lea.vmem [#allocation3], 48
      %v3623 = vld [vmem:[%s3622] sm:$0xff]
      %v3624 = vld [vmem:[%s3622 + $0x8] sm:$0xff]
      %v3625 = vld [vmem:[%s3622 + $0x18] sm:$0xff]
      %v3626 = vld [vmem:[%s3622 + $0x20] sm:$0xff]
      %v3627 = vld [vmem:[%s3622 + $0x30] sm:$0xff]
      %v3628 = vld [vmem:[%s3622 + $0x38] sm:$0xff]
      %v3629 = vld [vmem:[%s3622 + $0x48] sm:$0xff]
      %v3630 = vld [vmem:[%s3622 + $0x50] sm:$0xff]
      %v3631 = vld [vmem:[%s3622 + $0x60] sm:$0xff]
      %v3632 = vld [vmem:[%s3622 + $0x68] sm:$0xff]
      %v3633 = vld [vmem:[%s3622 + $0x78] sm:$0xff]
      %v3634 = vld [vmem:[%s3622 + $0x80] sm:$0xff]
      %v3635 = vld [vmem:[%s3622 + $0x90] sm:$0xff]
      %v3636 = vld [vmem:[%s3622 + $0x98] sm:$0xff]
      %v3637 = vld [vmem:[%s3622 + $0xa8] sm:$0xff]
      %v3638 = vld [vmem:[%s3622 + $0xb0] sm:$0xff]
      %v3639 = vld [vmem:[#allocation5] sm:$0xff]
      %v3640 = vld [vmem:[#allocation5 + $0x8] sm:$0xff]
      %v3641 = vld [vmem:[#allocation5 + $0x10] sm:$0xff]
      %v3642 = vld [vmem:[#allocation5 + $0x18] sm:$0xff]
      %v3643 = vld [vmem:[#allocation5 + $0x20] sm:$0xff]
      %v3644 = vld [vmem:[#allocation5 + $0x28] sm:$0xff]
      %v3645 = vld [vmem:[#allocation5 + $0x30] sm:$0xff]
      %v3646 = vld [vmem:[#allocation5 + $0x38] sm:$0xff]
      %v3647 = vld [vmem:[#allocation5 + $0x40] sm:$0xff]
      %v3648 = vld [vmem:[#allocation5 + $0x48] sm:$0xff]
      %v3649 = vld [vmem:[#allocation5 + $0x50] sm:$0xff]
      %v3650 = vld [vmem:[#allocation5 + $0x58] sm:$0xff]
      %v3651 = vld [vmem:[#allocation5 + $0x60] sm:$0xff]
      %v3652 = vld [vmem:[#allocation5 + $0x68] sm:$0xff]
      %v3653 = vld [vmem:[#allocation5 + $0x70] sm:$0xff]
      %v3654 = vld [vmem:[#allocation5 + $0x78] sm:$0xff]
      %s3655 = scalar_lea.vmem %s3, 24
      %v3656 = vld [vmem:[%s3655] sm:$0xf]
      %v3658 = vsel %vm295, %v3623, 0
      %v3661 = vsel %vm295, %v3624, 0
      %v3664 = vsel %vm295, %v3625, 0
      %v3667 = vsel %vm295, %v3626, 0
      %v3670 = vsel %vm295, %v3627, 0
      %v3673 = vsel %vm295, %v3628, 0
      %v3676 = vsel %vm295, %v3629, 0
      %v3679 = vsel %vm295, %v3630, 0
      %v3682 = vsel %vm295, %v3631, 0
      %v3685 = vsel %vm295, %v3632, 0
      %v3688 = vsel %vm295, %v3633, 0
      %v3691 = vsel %vm295, %v3634, 0
      %v3694 = vsel %vm295, %v3635, 0
      %v3697 = vsel %vm295, %v3636, 0
      %v3700 = vsel %vm295, %v3637, 0
      %v3703 = vsel %vm295, %v3638, 0
      %v3706 = vsel %vm520, %v3656, 0
      %3708 = vmatpush.msra.mxu0 0.0
      %3709 = vmatpush.msra.mxu0 0.0
      %3710 = vmatpush.msra.mxu0 0.0
      %3711 = vmatpush.msra.mxu0 0.0
      %3712 = vmatpush.msra.mxu0 0.0
      %3713 = vmatpush.msra.mxu0 0.0
      %3714 = vmatpush.msra.mxu0 0.0
      %3715 = vmatpush.msra.mxu0 0.0
      %3716 = vmatpush.msra.mxu0 0.0
      %3717 = vmatpush.msra.mxu0 0.0
      %3718 = vmatpush.msra.mxu0 0.0
      %3719 = vmatpush.msra.mxu0 0.0
      %3720 = vmatpush.msra.mxu0 0.0
      %3721 = vmatpush.msra.mxu0 0.0
      %3722 = vmatpush.msra.mxu0 0.0
      %3723 = vmatpush.msra.mxu0 %v3706
      %3724 = vmatmul.f32.gmra.mxu0 %v3658
      %v3725 = vpop.f32.mrf.mxu0
      %v3726 = vadd.f32 0.0, %v3725
      %3727 = vmatmul.f32.gmra.mxu0 %v3661
      %v3728 = vpop.f32.mrf.mxu0
      %v3729 = vadd.f32 0.0, %v3728
      %3730 = vmatmul.f32.gmra.mxu0 %v3664
      %v3731 = vpop.f32.mrf.mxu0
      %v3732 = vadd.f32 0.0, %v3731
      %3733 = vmatmul.f32.gmra.mxu0 %v3667
      %v3734 = vpop.f32.mrf.mxu0
      %v3735 = vadd.f32 0.0, %v3734
      %3736 = vmatmul.f32.gmra.mxu0 %v3670
      %v3737 = vpop.f32.mrf.mxu0
      %v3738 = vadd.f32 0.0, %v3737
      %3739 = vmatmul.f32.gmra.mxu0 %v3673
      %v3740 = vpop.f32.mrf.mxu0
      %v3741 = vadd.f32 0.0, %v3740
      %3742 = vmatmul.f32.gmra.mxu0 %v3676
      %v3743 = vpop.f32.mrf.mxu0
      %v3744 = vadd.f32 0.0, %v3743
      %3745 = vmatmul.f32.gmra.mxu0 %v3679
      %v3746 = vpop.f32.mrf.mxu0
      %v3747 = vadd.f32 0.0, %v3746
      %3748 = vmatmul.f32.gmra.mxu0 %v3682
      %v3749 = vpop.f32.mrf.mxu0
      %v3750 = vadd.f32 0.0, %v3749
      %3751 = vmatmul.f32.gmra.mxu0 %v3685
      %v3752 = vpop.f32.mrf.mxu0
      %v3753 = vadd.f32 0.0, %v3752
      %3754 = vmatmul.f32.gmra.mxu0 %v3688
      %v3755 = vpop.f32.mrf.mxu0
      %v3756 = vadd.f32 0.0, %v3755
      %3757 = vmatmul.f32.gmra.mxu0 %v3691
      %v3758 = vpop.f32.mrf.mxu0
      %v3759 = vadd.f32 0.0, %v3758
      %3760 = vmatmul.f32.gmra.mxu0 %v3694
      %v3761 = vpop.f32.mrf.mxu0
      %v3762 = vadd.f32 0.0, %v3761
      %3763 = vmatmul.f32.gmra.mxu0 %v3697
      %v3764 = vpop.f32.mrf.mxu0
      %v3765 = vadd.f32 0.0, %v3764
      %3766 = vmatmul.f32.gmra.mxu0 %v3700
      %v3767 = vpop.f32.mrf.mxu0
      %v3768 = vadd.f32 0.0, %v3767
      %3769 = vmatmul.f32.gmra.mxu0 %v3703
      %v3770 = vpop.f32.mrf.mxu0
      %v3771 = vadd.f32 0.0, %v3770
      %3772 = vdwg.mxu0
      %v3773 = vadd.f32 %v3639, %v3726
      %v3774 = vadd.f32 %v3640, %v3729
      %v3775 = vadd.f32 %v3641, %v3732
      %v3776 = vadd.f32 %v3642, %v3735
      %v3777 = vadd.f32 %v3643, %v3738
      %v3778 = vadd.f32 %v3644, %v3741
      %v3779 = vadd.f32 %v3645, %v3744
      %v3780 = vadd.f32 %v3646, %v3747
      %v3781 = vadd.f32 %v3647, %v3750
      %v3782 = vadd.f32 %v3648, %v3753
      %v3783 = vadd.f32 %v3649, %v3756
      %v3784 = vadd.f32 %v3650, %v3759
      %v3785 = vadd.f32 %v3651, %v3762
      %v3786 = vadd.f32 %v3652, %v3765
      %v3787 = vadd.f32 %v3653, %v3768
      %v3788 = vadd.f32 %v3654, %v3771
      %3789 = vst.msk [vmem:[#allocation5] sm:$0xff] %vm295, %v3773
      %3790 = vst.msk [vmem:[#allocation5 + $0x8] sm:$0xff] %vm295, %v3774
      %3791 = vst.msk [vmem:[#allocation5 + $0x10] sm:$0xff] %vm295, %v3775
      %3792 = vst.msk [vmem:[#allocation5 + $0x18] sm:$0xff] %vm295, %v3776
      %3793 = vst.msk [vmem:[#allocation5 + $0x20] sm:$0xff] %vm295, %v3777
      %3794 = vst.msk [vmem:[#allocation5 + $0x28] sm:$0xff] %vm295, %v3778
      %3795 = vst.msk [vmem:[#allocation5 + $0x30] sm:$0xff] %vm295, %v3779
      %3796 = vst.msk [vmem:[#allocation5 + $0x38] sm:$0xff] %vm295, %v3780
      %3797 = vst.msk [vmem:[#allocation5 + $0x40] sm:$0xff] %vm295, %v3781
      %3798 = vst.msk [vmem:[#allocation5 + $0x48] sm:$0xff] %vm295, %v3782
      %3799 = vst.msk [vmem:[#allocation5 + $0x50] sm:$0xff] %vm295, %v3783
      %3800 = vst.msk [vmem:[#allocation5 + $0x58] sm:$0xff] %vm295, %v3784
      %3801 = vst.msk [vmem:[#allocation5 + $0x60] sm:$0xff] %vm295, %v3785
      %3802 = vst.msk [vmem:[#allocation5 + $0x68] sm:$0xff] %vm295, %v3786
      %3803 = vst.msk [vmem:[#allocation5 + $0x70] sm:$0xff] %vm295, %v3787
      %3804 = vst.msk [vmem:[#allocation5 + $0x78] sm:$0xff] %vm295, %v3788
      %v3805 = vld [vmem:[%s3622 + $0x1] sm:$0xff]
      %v3806 = vld [vmem:[%s3622 + $0x9] sm:$0xff]
      %v3807 = vld [vmem:[%s3622 + $0x19] sm:$0xff]
      %v3808 = vld [vmem:[%s3622 + $0x21] sm:$0xff]
      %v3809 = vld [vmem:[%s3622 + $0x31] sm:$0xff]
      %v3810 = vld [vmem:[%s3622 + $0x39] sm:$0xff]
      %v3811 = vld [vmem:[%s3622 + $0x49] sm:$0xff]
      %v3812 = vld [vmem:[%s3622 + $0x51] sm:$0xff]
      %v3813 = vld [vmem:[%s3622 + $0x61] sm:$0xff]
      %v3814 = vld [vmem:[%s3622 + $0x69] sm:$0xff]
      %v3815 = vld [vmem:[%s3622 + $0x79] sm:$0xff]
      %v3816 = vld [vmem:[%s3622 + $0x81] sm:$0xff]
      %v3817 = vld [vmem:[%s3622 + $0x91] sm:$0xff]
      %v3818 = vld [vmem:[%s3622 + $0x99] sm:$0xff]
      %v3819 = vld [vmem:[%s3622 + $0xa9] sm:$0xff]
      %v3820 = vld [vmem:[%s3622 + $0xb1] sm:$0xff]
      %v3821 = vld [vmem:[#allocation5] sm:$0xff]
      %v3822 = vld [vmem:[#allocation5 + $0x8] sm:$0xff]
      %v3823 = vld [vmem:[#allocation5 + $0x10] sm:$0xff]
      %v3824 = vld [vmem:[#allocation5 + $0x18] sm:$0xff]
      %v3825 = vld [vmem:[#allocation5 + $0x20] sm:$0xff]
      %v3826 = vld [vmem:[#allocation5 + $0x28] sm:$0xff]
      %v3827 = vld [vmem:[#allocation5 + $0x30] sm:$0xff]
      %v3828 = vld [vmem:[#allocation5 + $0x38] sm:$0xff]
      %v3829 = vld [vmem:[#allocation5 + $0x40] sm:$0xff]
      %v3830 = vld [vmem:[#allocation5 + $0x48] sm:$0xff]
      %v3831 = vld [vmem:[#allocation5 + $0x50] sm:$0xff]
      %v3832 = vld [vmem:[#allocation5 + $0x58] sm:$0xff]
      %v3833 = vld [vmem:[#allocation5 + $0x60] sm:$0xff]
      %v3834 = vld [vmem:[#allocation5 + $0x68] sm:$0xff]
      %v3835 = vld [vmem:[#allocation5 + $0x70] sm:$0xff]
      %v3836 = vld [vmem:[#allocation5 + $0x78] sm:$0xff]
      %s3837 = scalar_lea.vmem %s3, 28
      %v3838 = vld [vmem:[%s3837] sm:$0xf]
      %v3840 = vsel %vm295, %v3805, 0
      %v3843 = vsel %vm295, %v3806, 0
      %v3846 = vsel %vm295, %v3807, 0
      %v3849 = vsel %vm295, %v3808, 0
      %v3852 = vsel %vm295, %v3809, 0
      %v3855 = vsel %vm295, %v3810, 0
      %v3858 = vsel %vm295, %v3811, 0
      %v3861 = vsel %vm295, %v3812, 0
      %v3864 = vsel %vm295, %v3813, 0
      %v3867 = vsel %vm295, %v3814, 0
      %v3870 = vsel %vm295, %v3815, 0
      %v3873 = vsel %vm295, %v3816, 0
      %v3876 = vsel %vm295, %v3817, 0
      %v3879 = vsel %vm295, %v3818, 0
      %v3882 = vsel %vm295, %v3819, 0
      %v3885 = vsel %vm295, %v3820, 0
      %v3888 = vsel %vm520, %v3838, 0
      %3890 = vmatpush.msra.mxu0 0.0
      %3891 = vmatpush.msra.mxu0 0.0
      %3892 = vmatpush.msra.mxu0 0.0
      %3893 = vmatpush.msra.mxu0 0.0
      %3894 = vmatpush.msra.mxu0 0.0
      %3895 = vmatpush.msra.mxu0 0.0
      %3896 = vmatpush.msra.mxu0 0.0
      %3897 = vmatpush.msra.mxu0 0.0
      %3898 = vmatpush.msra.mxu0 0.0
      %3899 = vmatpush.msra.mxu0 0.0
      %3900 = vmatpush.msra.mxu0 0.0
      %3901 = vmatpush.msra.mxu0 0.0
      %3902 = vmatpush.msra.mxu0 0.0
      %3903 = vmatpush.msra.mxu0 0.0
      %3904 = vmatpush.msra.mxu0 0.0
      %3905 = vmatpush.msra.mxu0 %v3888
      %3906 = vmatmul.f32.gmra.mxu0 %v3840
      %v3907 = vpop.f32.mrf.mxu0
      %v3908 = vadd.f32 0.0, %v3907
      %3909 = vmatmul.f32.gmra.mxu0 %v3843
      %v3910 = vpop.f32.mrf.mxu0
      %v3911 = vadd.f32 0.0, %v3910
      %3912 = vmatmul.f32.gmra.mxu0 %v3846
      %v3913 = vpop.f32.mrf.mxu0
      %v3914 = vadd.f32 0.0, %v3913
      %3915 = vmatmul.f32.gmra.mxu0 %v3849
      %v3916 = vpop.f32.mrf.mxu0
      %v3917 = vadd.f32 0.0, %v3916
      %3918 = vmatmul.f32.gmra.mxu0 %v3852
      %v3919 = vpop.f32.mrf.mxu0
      %v3920 = vadd.f32 0.0, %v3919
      %3921 = vmatmul.f32.gmra.mxu0 %v3855
      %v3922 = vpop.f32.mrf.mxu0
      %v3923 = vadd.f32 0.0, %v3922
      %3924 = vmatmul.f32.gmra.mxu0 %v3858
      %v3925 = vpop.f32.mrf.mxu0
      %v3926 = vadd.f32 0.0, %v3925
      %3927 = vmatmul.f32.gmra.mxu0 %v3861
      %v3928 = vpop.f32.mrf.mxu0
      %v3929 = vadd.f32 0.0, %v3928
      %3930 = vmatmul.f32.gmra.mxu0 %v3864
      %v3931 = vpop.f32.mrf.mxu0
      %v3932 = vadd.f32 0.0, %v3931
      %3933 = vmatmul.f32.gmra.mxu0 %v3867
      %v3934 = vpop.f32.mrf.mxu0
      %v3935 = vadd.f32 0.0, %v3934
      %3936 = vmatmul.f32.gmra.mxu0 %v3870
      %v3937 = vpop.f32.mrf.mxu0
      %v3938 = vadd.f32 0.0, %v3937
      %3939 = vmatmul.f32.gmra.mxu0 %v3873
      %v3940 = vpop.f32.mrf.mxu0
      %v3941 = vadd.f32 0.0, %v3940
      %3942 = vmatmul.f32.gmra.mxu0 %v3876
      %v3943 = vpop.f32.mrf.mxu0
      %v3944 = vadd.f32 0.0, %v3943
      %3945 = vmatmul.f32.gmra.mxu0 %v3879
      %v3946 = vpop.f32.mrf.mxu0
      %v3947 = vadd.f32 0.0, %v3946
      %3948 = vmatmul.f32.gmra.mxu0 %v3882
      %v3949 = vpop.f32.mrf.mxu0
      %v3950 = vadd.f32 0.0, %v3949
      %3951 = vmatmul.f32.gmra.mxu0 %v3885
      %v3952 = vpop.f32.mrf.mxu0
      %v3953 = vadd.f32 0.0, %v3952
      %3954 = vdwg.mxu0
      %v3955 = vadd.f32 %v3821, %v3908
      %v3956 = vadd.f32 %v3822, %v3911
      %v3957 = vadd.f32 %v3823, %v3914
      %v3958 = vadd.f32 %v3824, %v3917
      %v3959 = vadd.f32 %v3825, %v3920
      %v3960 = vadd.f32 %v3826, %v3923
      %v3961 = vadd.f32 %v3827, %v3926
      %v3962 = vadd.f32 %v3828, %v3929
      %v3963 = vadd.f32 %v3829, %v3932
      %v3964 = vadd.f32 %v3830, %v3935
      %v3965 = vadd.f32 %v3831, %v3938
      %v3966 = vadd.f32 %v3832, %v3941
      %v3967 = vadd.f32 %v3833, %v3944
      %v3968 = vadd.f32 %v3834, %v3947
      %v3969 = vadd.f32 %v3835, %v3950
      %v3970 = vadd.f32 %v3836, %v3953
      %3971 = vst.msk [vmem:[#allocation5] sm:$0xff] %vm295, %v3955
      %3972 = vst.msk [vmem:[#allocation5 + $0x8] sm:$0xff] %vm295, %v3956
      %3973 = vst.msk [vmem:[#allocation5 + $0x10] sm:$0xff] %vm295, %v3957
      %3974 = vst.msk [vmem:[#allocation5 + $0x18] sm:$0xff] %vm295, %v3958
      %3975 = vst.msk [vmem:[#allocation5 + $0x20] sm:$0xff] %vm295, %v3959
      %3976 = vst.msk [vmem:[#allocation5 + $0x28] sm:$0xff] %vm295, %v3960
      %3977 = vst.msk [vmem:[#allocation5 + $0x30] sm:$0xff] %vm295, %v3961
      %3978 = vst.msk [vmem:[#allocation5 + $0x38] sm:$0xff] %vm295, %v3962
      %3979 = vst.msk [vmem:[#allocation5 + $0x40] sm:$0xff] %vm295, %v3963
      %3980 = vst.msk [vmem:[#allocation5 + $0x48] sm:$0xff] %vm295, %v3964
      %3981 = vst.msk [vmem:[#allocation5 + $0x50] sm:$0xff] %vm295, %v3965
      %3982 = vst.msk [vmem:[#allocation5 + $0x58] sm:$0xff] %vm295, %v3966
      %3983 = vst.msk [vmem:[#allocation5 + $0x60] sm:$0xff] %vm295, %v3967
      %3984 = vst.msk [vmem:[#allocation5 + $0x68] sm:$0xff] %vm295, %v3968
      %3985 = vst.msk [vmem:[#allocation5 + $0x70] sm:$0xff] %vm295, %v3969
      %3986 = vst.msk [vmem:[#allocation5 + $0x78] sm:$0xff] %vm295, %v3970
      %v3987 = vld [vmem:[%s3622 + $0x2] sm:$0xff]
      %v3988 = vld [vmem:[%s3622 + $0xa] sm:$0xff]
      %v3989 = vld [vmem:[%s3622 + $0x1a] sm:$0xff]
      %v3990 = vld [vmem:[%s3622 + $0x22] sm:$0xff]
      %v3991 = vld [vmem:[%s3622 + $0x32] sm:$0xff]
      %v3992 = vld [vmem:[%s3622 + $0x3a] sm:$0xff]
      %v3993 = vld [vmem:[%s3622 + $0x4a] sm:$0xff]
      %v3994 = vld [vmem:[%s3622 + $0x52] sm:$0xff]
      %v3995 = vld [vmem:[%s3622 + $0x62] sm:$0xff]
      %v3996 = vld [vmem:[%s3622 + $0x6a] sm:$0xff]
      %v3997 = vld [vmem:[%s3622 + $0x7a] sm:$0xff]
      %v3998 = vld [vmem:[%s3622 + $0x82] sm:$0xff]
      %v3999 = vld [vmem:[%s3622 + $0x92] sm:$0xff]
      %v4000 = vld [vmem:[%s3622 + $0x9a] sm:$0xff]
      %v4001 = vld [vmem:[%s3622 + $0xaa] sm:$0xff]
      %v4002 = vld [vmem:[%s3622 + $0xb2] sm:$0xff]
      %v4003 = vld [vmem:[#allocation5] sm:$0xff]
      %v4004 = vld [vmem:[#allocation5 + $0x8] sm:$0xff]
      %v4005 = vld [vmem:[#allocation5 + $0x10] sm:$0xff]
      %v4006 = vld [vmem:[#allocation5 + $0x18] sm:$0xff]
      %v4007 = vld [vmem:[#allocation5 + $0x20] sm:$0xff]
      %v4008 = vld [vmem:[#allocation5 + $0x28] sm:$0xff]
      %v4009 = vld [vmem:[#allocation5 + $0x30] sm:$0xff]
      %v4010 = vld [vmem:[#allocation5 + $0x38] sm:$0xff]
      %v4011 = vld [vmem:[#allocation5 + $0x40] sm:$0xff]
      %v4012 = vld [vmem:[#allocation5 + $0x48] sm:$0xff]
      %v4013 = vld [vmem:[#allocation5 + $0x50] sm:$0xff]
      %v4014 = vld [vmem:[#allocation5 + $0x58] sm:$0xff]
      %v4015 = vld [vmem:[#allocation5 + $0x60] sm:$0xff]
      %v4016 = vld [vmem:[#allocation5 + $0x68] sm:$0xff]
      %v4017 = vld [vmem:[#allocation5 + $0x70] sm:$0xff]
      %v4018 = vld [vmem:[#allocation5 + $0x78] sm:$0xff]
      %s4019 = scalar_lea.vmem %s3, 32
      %v4020 = vld [vmem:[%s4019] sm:$0xf]
      %v4022 = vsel %vm295, %v3987, 0
      %v4025 = vsel %vm295, %v3988, 0
      %v4028 = vsel %vm295, %v3989, 0
      %v4031 = vsel %vm295, %v3990, 0
      %v4034 = vsel %vm295, %v3991, 0
      %v4037 = vsel %vm295, %v3992, 0
      %v4040 = vsel %vm295, %v3993, 0
      %v4043 = vsel %vm295, %v3994, 0
      %v4046 = vsel %vm295, %v3995, 0
      %v4049 = vsel %vm295, %v3996, 0
      %v4052 = vsel %vm295, %v3997, 0
      %v4055 = vsel %vm295, %v3998, 0
      %v4058 = vsel %vm295, %v3999, 0
      %v4061 = vsel %vm295, %v4000, 0
      %v4064 = vsel %vm295, %v4001, 0
      %v4067 = vsel %vm295, %v4002, 0
      %v4070 = vsel %vm520, %v4020, 0
      %4072 = vmatpush.msra.mxu0 0.0
      %4073 = vmatpush.msra.mxu0 0.0
      %4074 = vmatpush.msra.mxu0 0.0
      %4075 = vmatpush.msra.mxu0 0.0
      %4076 = vmatpush.msra.mxu0 0.0
      %4077 = vmatpush.msra.mxu0 0.0
      %4078 = vmatpush.msra.mxu0 0.0
      %4079 = vmatpush.msra.mxu0 0.0
      %4080 = vmatpush.msra.mxu0 0.0
      %4081 = vmatpush.msra.mxu0 0.0
      %4082 = vmatpush.msra.mxu0 0.0
      %4083 = vmatpush.msra.mxu0 0.0
      %4084 = vmatpush.msra.mxu0 0.0
      %4085 = vmatpush.msra.mxu0 0.0
      %4086 = vmatpush.msra.mxu0 0.0
      %4087 = vmatpush.msra.mxu0 %v4070
      %4088 = vmatmul.f32.gmra.mxu0 %v4022
      %v4089 = vpop.f32.mrf.mxu0
      %v4090 = vadd.f32 0.0, %v4089
      %4091 = vmatmul.f32.gmra.mxu0 %v4025
      %v4092 = vpop.f32.mrf.mxu0
      %v4093 = vadd.f32 0.0, %v4092
      %4094 = vmatmul.f32.gmra.mxu0 %v4028
      %v4095 = vpop.f32.mrf.mxu0
      %v4096 = vadd.f32 0.0, %v4095
      %4097 = vmatmul.f32.gmra.mxu0 %v4031
      %v4098 = vpop.f32.mrf.mxu0
      %v4099 = vadd.f32 0.0, %v4098
      %4100 = vmatmul.f32.gmra.mxu0 %v4034
      %v4101 = vpop.f32.mrf.mxu0
      %v4102 = vadd.f32 0.0, %v4101
      %4103 = vmatmul.f32.gmra.mxu0 %v4037
      %v4104 = vpop.f32.mrf.mxu0
      %v4105 = vadd.f32 0.0, %v4104
      %4106 = vmatmul.f32.gmra.mxu0 %v4040
      %v4107 = vpop.f32.mrf.mxu0
      %v4108 = vadd.f32 0.0, %v4107
      %4109 = vmatmul.f32.gmra.mxu0 %v4043
      %v4110 = vpop.f32.mrf.mxu0
      %v4111 = vadd.f32 0.0, %v4110
      %4112 = vmatmul.f32.gmra.mxu0 %v4046
      %v4113 = vpop.f32.mrf.mxu0
      %v4114 = vadd.f32 0.0, %v4113
      %4115 = vmatmul.f32.gmra.mxu0 %v4049
      %v4116 = vpop.f32.mrf.mxu0
      %v4117 = vadd.f32 0.0, %v4116
      %4118 = vmatmul.f32.gmra.mxu0 %v4052
      %v4119 = vpop.f32.mrf.mxu0
      %v4120 = vadd.f32 0.0, %v4119
      %4121 = vmatmul.f32.gmra.mxu0 %v4055
      %v4122 = vpop.f32.mrf.mxu0
      %v4123 = vadd.f32 0.0, %v4122
      %4124 = vmatmul.f32.gmra.mxu0 %v4058
      %v4125 = vpop.f32.mrf.mxu0
      %v4126 = vadd.f32 0.0, %v4125
      %4127 = vmatmul.f32.gmra.mxu0 %v4061
      %v4128 = vpop.f32.mrf.mxu0
      %v4129 = vadd.f32 0.0, %v4128
      %4130 = vmatmul.f32.gmra.mxu0 %v4064
      %v4131 = vpop.f32.mrf.mxu0
      %v4132 = vadd.f32 0.0, %v4131
      %4133 = vmatmul.f32.gmra.mxu0 %v4067
      %v4134 = vpop.f32.mrf.mxu0
      %v4135 = vadd.f32 0.0, %v4134
      %4136 = vdwg.mxu0
      %v4137 = vadd.f32 %v4003, %v4090
      %v4138 = vadd.f32 %v4004, %v4093
      %v4139 = vadd.f32 %v4005, %v4096
      %v4140 = vadd.f32 %v4006, %v4099
      %v4141 = vadd.f32 %v4007, %v4102
      %v4142 = vadd.f32 %v4008, %v4105
      %v4143 = vadd.f32 %v4009, %v4108
      %v4144 = vadd.f32 %v4010, %v4111
      %v4145 = vadd.f32 %v4011, %v4114
      %v4146 = vadd.f32 %v4012, %v4117
      %v4147 = vadd.f32 %v4013, %v4120
      %v4148 = vadd.f32 %v4014, %v4123
      %v4149 = vadd.f32 %v4015, %v4126
      %v4150 = vadd.f32 %v4016, %v4129
      %v4151 = vadd.f32 %v4017, %v4132
      %v4152 = vadd.f32 %v4018, %v4135
      %4153 = vst.msk [vmem:[#allocation5] sm:$0xff] %vm295, %v4137
      %4154 = vst.msk [vmem:[#allocation5 + $0x8] sm:$0xff] %vm295, %v4138
      %4155 = vst.msk [vmem:[#allocation5 + $0x10] sm:$0xff] %vm295, %v4139
      %4156 = vst.msk [vmem:[#allocation5 + $0x18] sm:$0xff] %vm295, %v4140
      %4157 = vst.msk [vmem:[#allocation5 + $0x20] sm:$0xff] %vm295, %v4141
      %4158 = vst.msk [vmem:[#allocation5 + $0x28] sm:$0xff] %vm295, %v4142
      %4159 = vst.msk [vmem:[#allocation5 + $0x30] sm:$0xff] %vm295, %v4143
      %4160 = vst.msk [vmem:[#allocation5 + $0x38] sm:$0xff] %vm295, %v4144
      %4161 = vst.msk [vmem:[#allocation5 + $0x40] sm:$0xff] %vm295, %v4145
      %4162 = vst.msk [vmem:[#allocation5 + $0x48] sm:$0xff] %vm295, %v4146
      %4163 = vst.msk [vmem:[#allocation5 + $0x50] sm:$0xff] %vm295, %v4147
      %4164 = vst.msk [vmem:[#allocation5 + $0x58] sm:$0xff] %vm295, %v4148
      %4165 = vst.msk [vmem:[#allocation5 + $0x60] sm:$0xff] %vm295, %v4149
      %4166 = vst.msk [vmem:[#allocation5 + $0x68] sm:$0xff] %vm295, %v4150
      %4167 = vst.msk [vmem:[#allocation5 + $0x70] sm:$0xff] %vm295, %v4151
      %4168 = vst.msk [vmem:[#allocation5 + $0x78] sm:$0xff] %vm295, %v4152
      %v4169 = vld [vmem:[%s277] sm:$0xff]
      %v4170 = vld [vmem:[%s277 + $0x8] sm:$0xff]
      %v4171 = vld [vmem:[%s277 + $0x10] sm:$0xff]
      %v4172 = vld [vmem:[%s277 + $0x18] sm:$0xff]
      %v4173 = vld [vmem:[%s277 + $0x20] sm:$0xff]
      %v4174 = vld [vmem:[%s277 + $0x28] sm:$0xff]
      %v4175 = vld [vmem:[%s277 + $0x30] sm:$0xff]
      %v4176 = vld [vmem:[%s277 + $0x38] sm:$0xff]
      %v4177 = vld [vmem:[%s277 + $0x40] sm:$0xff]
      %v4178 = vld [vmem:[%s277 + $0x48] sm:$0xff]
      %v4179 = vld [vmem:[%s277 + $0x50] sm:$0xff]
      %v4180 = vld [vmem:[%s277 + $0x58] sm:$0xff]
      %v4181 = vld [vmem:[%s277 + $0x60] sm:$0xff]
      %v4182 = vld [vmem:[%s277 + $0x68] sm:$0xff]
      %v4183 = vld [vmem:[%s277 + $0x70] sm:$0xff]
      %v4184 = vld [vmem:[%s277 + $0x78] sm:$0xff]
      %v4185 = vld [vmem:[#allocation5] sm:$0xff]
      %v4186 = vld [vmem:[#allocation5 + $0x8] sm:$0xff]
      %v4187 = vld [vmem:[#allocation5 + $0x10] sm:$0xff]
      %v4188 = vld [vmem:[#allocation5 + $0x18] sm:$0xff]
      %v4189 = vld [vmem:[#allocation5 + $0x20] sm:$0xff]
      %v4190 = vld [vmem:[#allocation5 + $0x28] sm:$0xff]
      %v4191 = vld [vmem:[#allocation5 + $0x30] sm:$0xff]
      %v4192 = vld [vmem:[#allocation5 + $0x38] sm:$0xff]
      %v4193 = vld [vmem:[#allocation5 + $0x40] sm:$0xff]
      %v4194 = vld [vmem:[#allocation5 + $0x48] sm:$0xff]
      %v4195 = vld [vmem:[#allocation5 + $0x50] sm:$0xff]
      %v4196 = vld [vmem:[#allocation5 + $0x58] sm:$0xff]
      %v4197 = vld [vmem:[#allocation5 + $0x60] sm:$0xff]
      %v4198 = vld [vmem:[#allocation5 + $0x68] sm:$0xff]
      %v4199 = vld [vmem:[#allocation5 + $0x70] sm:$0xff]
      %v4200 = vld [vmem:[#allocation5 + $0x78] sm:$0xff]
      %v4201 = vadd.f32 %v4169, %v4185
      %v4202 = vadd.f32 %v4170, %v4186
      %v4203 = vadd.f32 %v4171, %v4187
      %v4204 = vadd.f32 %v4172, %v4188
      %v4205 = vadd.f32 %v4173, %v4189
      %v4206 = vadd.f32 %v4174, %v4190
      %v4207 = vadd.f32 %v4175, %v4191
      %v4208 = vadd.f32 %v4176, %v4192
      %v4209 = vadd.f32 %v4177, %v4193
      %v4210 = vadd.f32 %v4178, %v4194
      %v4211 = vadd.f32 %v4179, %v4195
      %v4212 = vadd.f32 %v4180, %v4196
      %v4213 = vadd.f32 %v4181, %v4197
      %v4214 = vadd.f32 %v4182, %v4198
      %v4215 = vadd.f32 %v4183, %v4199
      %v4216 = vadd.f32 %v4184, %v4200
      %v4217 = vtanh.pop %v4201
      %v4218 = vtanh.pop %v4202
      %v4219 = vtanh.pop %v4203
      %v4220 = vtanh.pop %v4204
      %v4221 = vtanh.pop %v4205
      %v4222 = vtanh.pop %v4206
      %v4223 = vtanh.pop %v4207
      %v4224 = vtanh.pop %v4208
      %v4225 = vtanh.pop %v4209
      %v4226 = vtanh.pop %v4210
      %v4227 = vtanh.pop %v4211
      %v4228 = vtanh.pop %v4212
      %v4229 = vtanh.pop %v4213
      %v4230 = vtanh.pop %v4214
      %v4231 = vtanh.pop %v4215
      %v4232 = vtanh.pop %v4216
      %4233 = vst.msk [vmem:[%s248] sm:$0xff] %vm295, %v4217
      %4234 = vst.msk [vmem:[%s248 + $0x8] sm:$0xff] %vm295, %v4218
      %4235 = vst.msk [vmem:[%s248 + $0x10] sm:$0xff] %vm295, %v4219
      %4236 = vst.msk [vmem:[%s248 + $0x18] sm:$0xff] %vm295, %v4220
      %4237 = vst.msk [vmem:[%s248 + $0x20] sm:$0xff] %vm295, %v4221
      %4238 = vst.msk [vmem:[%s248 + $0x28] sm:$0xff] %vm295, %v4222
      %4239 = vst.msk [vmem:[%s248 + $0x30] sm:$0xff] %vm295, %v4223
      %4240 = vst.msk [vmem:[%s248 + $0x38] sm:$0xff] %vm295, %v4224
      %4241 = vst.msk [vmem:[%s248 + $0x40] sm:$0xff] %vm295, %v4225
      %4242 = vst.msk [vmem:[%s248 + $0x48] sm:$0xff] %vm295, %v4226
      %4243 = vst.msk [vmem:[%s248 + $0x50] sm:$0xff] %vm295, %v4227
      %4244 = vst.msk [vmem:[%s248 + $0x58] sm:$0xff] %vm295, %v4228
      %4245 = vst.msk [vmem:[%s248 + $0x60] sm:$0xff] %vm295, %v4229
      %4246 = vst.msk [vmem:[%s248 + $0x68] sm:$0xff] %vm295, %v4230
      %4247 = vst.msk [vmem:[%s248 + $0x70] sm:$0xff] %vm295, %v4231
      %4248 = vst.msk [vmem:[%s248 + $0x78] sm:$0xff] %vm295, %v4232
      %s4249 = smul.u32 8, %s21
      %p4250 = scmp.lt.s32.totalorder %s20, 1
      %s4251 = scalar_select %p4250, %s20, 1
      %p4252 = scmp.lt.s32.totalorder %s4249, 15
      %s4253 = scalar_select %p4252, %s4249, 15
      %s4254 = smul.addr %s4253, 2
      %s4255 = smul.addr %s4251, 32
      %s4256 = sadd.s32 %s4254, %s4255
      %s4257 = smul.addr %s4256, 8
      %s4258 = scalar_lea.vmem %s5, %s4257
      // Predicated region
      $region49: #{tpu_custom_call.1} parent=39 // pred_check
        %p4259 = pneg %p158
      $region50: #{tpu_custom_call.1} parent=39 // pred_check_branch
        %4261 = sbr.rel (%p4259) target = $region52
      $region51: #{tpu_custom_call.1} parent=39 // pred_region
        %s4262 = smul.u32 8, %s21
      $region52: #{tpu_custom_call.1} parent=39 // pred_fallthru
        _
    $region40: #{tpu_custom_call.1} parent=5 // pred_fallthru
      _
    %p4263 = scmp.le.s32.totalorder 2, %s11
    // Predicated region
    $region53: #{tpu_custom_call.1} parent=5 // pred_check
      %p4264 = pneg %p4263
    $region54: #{tpu_custom_call.1} parent=5 // pred_check_branch
      %4266 = sbr.rel (%p4264) target = $region56
    $region55: #{tpu_custom_call.1} parent=5 // pred_region
      %s4267 = ssub.s32 %s11, 2
      // Predicated region
      $region57: #{tpu_custom_call.1} parent=55 // pred_check
        %p4268 = pneg %p164
      $region58: #{tpu_custom_call.1} parent=55 // pred_check_branch
        %4270 = sbr.rel (%p4268) target = $region60
      $region59: #{tpu_custom_call.1} parent=55 // pred_region
        %s4271 = smul.u32 8, %s23
        %p4272 = scmp.lt.s32.totalorder %s22, 1
        %s4273 = scalar_select %p4272, %s22, 1
        %p4274 = scmp.lt.s32.totalorder %s4271, 15
        %s4275 = scalar_select %p4274, %s4271, 15
        %s4276 = smul.addr %s4275, 2
        %s4277 = smul.addr %s4273, 32
        %s4278 = sadd.s32 %s4276, %s4277
        %s4279 = smul.addr %s4278, 8
        %s4280 = scalar_lea.vmem %s5, %s4279
      $region60: #{tpu_custom_call.1} parent=55 // pred_fallthru
        _
    $region56: #{tpu_custom_call.1} parent=5 // pred_fallthru
      _
  $region6: #{tpu_custom_call.1} parent=0 // loop_footer
    %s15 = sadd.s32 1, %s11
  $region7: #{tpu_custom_call.1} parent=0 // loop_footer_branch
    %10 = sbr.rel target = $region3
  $region8: #{tpu_custom_call.1} parent=0 // loop_exit
    _

</llo_original>
